<compile_context>
chip_gen: v7x
topology: tpu7x:2x2x1
jax: 0.10.0
libtpu: 0.0.40
codegen_flags: <defaults>
</compile_context>

<pallas_src>
import math
from functools import partial

import jax
import jax.numpy as jnp
import numpy as np
from jax.experimental import pallas as pl
from jax.experimental.pallas import tpu as pltpu


# --------------------------------------------------------------------------
# Pallas kernel: one time-chunk (Tc steps) of a fused bidirectional LSTM layer
# --------------------------------------------------------------------------
def bilstm_chunk_kernel(len_ref, gxf_ref, gxb_ref, whf_ref, whb_ref,
                        outf_ref, outb_ref,
                        hf_scr, cf_scr, hb_scr, cb_scr, *, t_total):
    """len_ref : (B, 1) int32   per-sequence lengths (grid-constant)
    gxf_ref : (Tc, B, 4H) f32  fwd input-gate pre-activations, chunk tb
              (original time order, PyTorch gate order i,f,g,o)
    gxb_ref : (Tc, B, 4H) f32  bwd input-gate pre-activations, chunk nT-1-tb
              (original time order; indexed reversed in-kernel)
    whf/whb : (H, 4H) bf16     recurrent weights W_hh^T per direction
    outf_ref: (Tc, B, H) f32   fwd hidden states, chunk tb
    outb_ref: (Tc, B, H) f32   bwd hidden states, chunk nT-1-tb (orig. time)
    *_scr   : (B, H) f32       carried per-direction h / c state
    """
    tb = pl.program_id(0)
    Tc, B, G4 = gxf_ref.shape
    H = G4 // 4

    @pl.when(tb == 0)
    def _():
        hf_scr[...] = jnp.zeros_like(hf_scr)
        cf_scr[...] = jnp.zeros_like(cf_scr)
        hb_scr[...] = jnp.zeros_like(hb_scr)
        cb_scr[...] = jnp.zeros_like(cb_scr)

    lens = len_ref[...]                         # (B, 1) int32, hoisted
    wf = whf_ref[...]                           # (H, 4H) bf16, hoisted
    wb = whb_ref[...]

    h_f = hf_scr[...]
    c_f = cf_scr[...]
    h_b = hb_scr[...]
    c_b = cb_scr[...]

    for tc in range(Tc):                        # static full unroll
        t_f = tb * Tc + tc                      # fwd original time
        t_b = t_total - 1 - t_f                 # bwd original time

        # two small recurrent matmuls (bf16 operands, f32 accumulation)
        rec_f = jnp.dot(h_f.astype(jnp.bfloat16), wf,
                        preferred_element_type=jnp.float32)     # (B, 4H)
        rec_b = jnp.dot(h_b.astype(jnp.bfloat16), wb,
                        preferred_element_type=jnp.float32)

        gf = gxf_ref[tc] + rec_f
        gb = gxb_ref[Tc - 1 - tc] + rec_b

        # forward direction gate math (PyTorch order i, f, g, o)
        i_f = jax.nn.sigmoid(gf[:, 0 * H:1 * H])
        f_f = jax.nn.sigmoid(gf[:, 1 * H:2 * H])
        g_f = jnp.tanh(gf[:, 2 * H:3 * H])
        o_f = jax.nn.sigmoid(gf[:, 3 * H:4 * H])
        cf_new = f_f * c_f + i_f * g_f
        hf_new = o_f * jnp.tanh(cf_new)

        # backward direction gate math
        i_b = jax.nn.sigmoid(gb[:, 0 * H:1 * H])
        f_b = jax.nn.sigmoid(gb[:, 1 * H:2 * H])
        g_b = jnp.tanh(gb[:, 2 * H:3 * H])
        o_b = jax.nn.sigmoid(gb[:, 3 * H:4 * H])
        cb_new = f_b * c_b + i_b * g_b
        hb_new = o_b * jnp.tanh(cb_new)

        # packed-sequence masking, built in-kernel (no mask DMA stream)
        valid_f = t_f < lens                    # (B, 1) bool
        valid_b = t_b < lens

        h_f = jnp.where(valid_f, hf_new, h_f)
        c_f = jnp.where(valid_f, cf_new, c_f)
        h_b = jnp.where(valid_b, hb_new, h_b)
        c_b = jnp.where(valid_b, cb_new, c_b)

        outf_ref[tc] = jnp.where(valid_f, hf_new, 0.0).astype(outf_ref.dtype)
        outb_ref[Tc - 1 - tc] = jnp.where(valid_b, hb_new, 0.0).astype(outb_ref.dtype)

    hf_scr[...] = h_f
    cf_scr[...] = c_f
    hb_scr[...] = h_b
    cb_scr[...] = c_b


def _bilstm_pallas(gx, len_b1, whT_f, whT_b, Tc):
    T_pad, B, G8 = gx.shape
    H = G8 // 8
    nT = T_pad // Tc

    if (4 * H) % 128 == 0:
        # block the gate axis in half: every gx element is read exactly once
        gxf_arr, gxb_arr = gx, gx
        gxf_spec = pl.BlockSpec((Tc, B, 4 * H), lambda tb: (tb, 0, 0))
        gxb_spec = pl.BlockSpec((Tc, B, 4 * H), lambda tb: (nT - 1 - tb, 0, 1))
    else:
        # fallback for small/odd H: materialize the two halves
        gxf_arr = gx[..., :4 * H]
        gxb_arr = gx[..., 4 * H:]
        gxf_spec = pl.BlockSpec((Tc, B, 4 * H), lambda tb: (tb, 0, 0))
        gxb_spec = pl.BlockSpec((Tc, B, 4 * H), lambda tb: (nT - 1 - tb, 0, 0))

    return pl.pallas_call(
        partial(bilstm_chunk_kernel, t_total=T_pad),
        out_shape=(jax.ShapeDtypeStruct((T_pad, B, H), jnp.float32),
                   jax.ShapeDtypeStruct((T_pad, B, H), jnp.float32)),
        grid_spec=pltpu.PrefetchScalarGridSpec(
            num_scalar_prefetch=0,
            grid=(nT,),
            in_specs=[
                pl.BlockSpec((B, 1), lambda tb: (0, 0)),          # lengths
                gxf_spec,                                          # fwd gates
                gxb_spec,                                          # bwd gates
                pl.BlockSpec((H, 4 * H), lambda tb: (0, 0)),       # W_hh^T fwd
                pl.BlockSpec((H, 4 * H), lambda tb: (0, 0)),       # W_hh^T bwd
            ],
            out_specs=[
                pl.BlockSpec((Tc, B, H), lambda tb: (tb, 0, 0)),          # h fwd
                pl.BlockSpec((Tc, B, H), lambda tb: (nT - 1 - tb, 0, 0)),  # h bwd
            ],
            scratch_shapes=[
                pltpu.VMEM((B, H), jnp.float32),   # h fwd
                pltpu.VMEM((B, H), jnp.float32),   # c fwd
                pltpu.VMEM((B, H), jnp.float32),   # h bwd
                pltpu.VMEM((B, H), jnp.float32),   # c bwd
            ],
        ),
        compiler_params=pltpu.CompilerParams(
            dimension_semantics=("arbitrary",),                     # serial recurrence
        ),
    )(len_b1, gxf_arr, gxb_arr, whT_f, whT_b)


# --------------------------------------------------------------------------
# One bidirectional layer: hoisted fused input projection + sequential kernel
# --------------------------------------------------------------------------
def bilstm_layer(x_tbd, len_b1, p, *, tc_max=16):
    T, B, D = x_tbd.shape
    H = p["whhT_f"].shape[0]
    Tc = T if T <= tc_max else tc_max
    T_pad = -(-T // Tc) * Tc
    if T_pad != T:
        x_tbd = jnp.concatenate(
            [x_tbd, jnp.zeros((T_pad - T, B, D), x_tbd.dtype)], axis=0)

    # one time-parallel input projection for both directions (bf16 MXU, f32 acc)
    xb = x_tbd.astype(jnp.bfloat16)
    gx = jnp.einsum("tbd,dg->tbg", xb, p["wihT"],
                    preferred_element_type=jnp.float32) + p["bias"]   # (T_pad,B,8H)

    out_f, out_b = _bilstm_pallas(gx, len_b1, p["whhT_f"], p["whhT_b"], Tc)
    return jnp.concatenate([out_f, out_b], axis=-1)[:T]               # (T, B, 2H)


# --------------------------------------------------------------------------
# Parameter construction (deterministic, mirrors nn.LSTM shapes / init)
# --------------------------------------------------------------------------
def init_lstm_params(key, input_size, hidden_size, num_layers):
    k = 1.0 / math.sqrt(hidden_size)
    H = hidden_size
    params = []
    for layer in range(num_layers):
        d_in = input_size if layer == 0 else 2 * H
        dir_p = []
        for _direction in range(2):                       # forward, reverse
            key, k1, k2, k3, k4 = jax.random.split(key, 5)
            w_ih = jax.random.uniform(k1, (4 * H, d_in), jnp.float32, -k, k)
            w_hh = jax.random.uniform(k2, (4 * H, H), jnp.float32, -k, k)
            b_ih = jax.random.uniform(k3, (4 * H,), jnp.float32, -k, k)
            b_hh = jax.random.uniform(k4, (4 * H,), jnp.float32, -k, k)
            dir_p.append((w_ih, w_hh, b_ih + b_hh))
        (wih_f, whh_f, b_f), (wih_b, whh_b, b_b) = dir_p

        params.append(dict(
            # fused input weight, columns [i f g o]_fwd | [i f g o]_bwd
            wihT=jnp.concatenate([wih_f.T, wih_b.T], axis=1).astype(jnp.bfloat16),
            bias=jnp.concatenate([b_f, b_b]),              # (8H,) f32 (b_ih+b_hh)
            whhT_f=whh_f.T.astype(jnp.bfloat16),           # (H, 4H)
            whhT_b=whh_b.T.astype(jnp.bfloat16),           # (H, 4H)
        ))
    return params


# --------------------------------------------------------------------------
# SemanticRNN.forward equivalent
# --------------------------------------------------------------------------
@partial(jax.jit, static_argnames=("t_out",))
def _rnn_core(x_tbd, len_b1, params, t_out):
    h = x_tbd
    for p in params:
        h = bilstm_layer(h, len_b1, p)
        # TODO(synk): nn.LSTM applies inter-layer dropout only in train mode;
        # this is the eval-mode forward (no dropout).
    return jnp.transpose(h, (1, 0, 2))[:, :t_out, :]


def semantic_rnn_forward(x_btd, lengths_np, params):
    """x_btd: (B, T, D) padded batch-first input; lengths_np: int lengths.

    Equivalent to packing x with `lengths`, running the bidirectional LSTM and
    returning pad_packed_sequence(..., batch_first=True) -> (B, max(lengths), 2H).
    """
    B, _, _ = x_btd.shape
    x = jnp.transpose(x_btd, (1, 0, 2)).astype(jnp.float32)   # (T, B, D)
    len_b1 = jnp.asarray(lengths_np, jnp.int32).reshape(B, 1)
    t_out = int(np.max(lengths_np))       # pad_packed_sequence pads to max len
    return _rnn_core(x, len_b1, params, t_out)                # (B, T_out, 2H)


if __name__ == "__main__":
    # Small shapes consistent with the module
    B, T, D, H, L = 2, 8, 16, 32, 2

    key = jax.random.PRNGKey(0)
    k_x, k_p = jax.random.split(key)

    x = jax.random.normal(k_x, (B, T, D), dtype=jnp.float32)
    lengths = np.array([T, T - 3], dtype=np.int32)   # variable-length packed batch

    params = init_lstm_params(k_p, input_size=D, hidden_size=H, num_layers=L)

    out = semantic_rnn_forward(x, lengths, params)
    out = jax.block_until_ready(out)

    assert out.shape == (B, int(np.max(lengths)), 2 * H), out.shape
    assert bool(jnp.all(jnp.isfinite(out)))
    # padded positions of the shorter sequence must be exactly zero
    assert float(jnp.abs(out[1, lengths[1]:, :]).max()) == 0.0

    print("KERNEL_OK")
</pallas_src>

<mosaic_0001>
module attributes {stable_mosaic.version = 11 : i64} {
  func.func @bilstm_chunk_kernel(%arg0: i32, %arg1: memref<2x1xi32, #tpu.memory_space<vmem>>, %arg2: memref<8x2x128xf32, #tpu.memory_space<vmem>>, %arg3: memref<8x2x128xf32, #tpu.memory_space<vmem>>, %arg4: memref<32x128xbf16, #tpu.memory_space<vmem>>, %arg5: memref<32x128xbf16, #tpu.memory_space<vmem>>, %arg6: memref<8x2x32xf32, #tpu.memory_space<vmem>>, %arg7: memref<8x2x32xf32, #tpu.memory_space<vmem>>, %arg8: memref<2x32xf32, #tpu.memory_space<vmem>>, %arg9: memref<2x32xf32, #tpu.memory_space<vmem>>, %arg10: memref<2x32xf32, #tpu.memory_space<vmem>>, %arg11: memref<2x32xf32, #tpu.memory_space<vmem>>) attributes {dimension_semantics = [#tpu.dimension_semantics<arbitrary>], iteration_bounds = array<i64: 1>, scalar_prefetch = 0 : i64, scratch_operands = 4 : i64, tpu.core_type = #tpu.core_type<tc>, window_params = [{pipeline_mode = #tpu.pipeline_mode<synchronous>, transform_indices = @transform_0, window_bounds = array<i64: 2, 1>}, {transform_indices = @transform_1, window_bounds = array<i64: 8, 2, 128>}, {transform_indices = @transform_2, window_bounds = array<i64: 8, 2, 128>}, {pipeline_mode = #tpu.pipeline_mode<synchronous>, transform_indices = @transform_3, window_bounds = array<i64: 32, 128>}, {pipeline_mode = #tpu.pipeline_mode<synchronous>, transform_indices = @transform_4, window_bounds = array<i64: 32, 128>}, {transform_indices = @transform_5, window_bounds = array<i64: 8, 2, 32>}, {transform_indices = @transform_6, window_bounds = array<i64: 8, 2, 32>}]} {
    %c0_i32 = arith.constant 0 : i32
    %0 = arith.cmpi eq, %arg0, %c0_i32 : i32
    %1 = arith.extui %0 : i1 to i32
    %c0_i32_0 = arith.constant 0 : i32
    %2 = arith.cmpi ne, %1, %c0_i32_0 : i32
    scf.if %2 {
      %cst_206 = arith.constant 0.000000e+00 : f32
      %758 = vector.broadcast %cst_206 : f32 to vector<2x32xf32>
      %c0_207 = arith.constant 0 : index
      %c0_208 = arith.constant 0 : index
      %759 = vector.load %arg8[%c0_207, %c0_208] : memref<2x32xf32, #tpu.memory_space<vmem>>, vector<2x32xf32>
      tpu.vector_store %arg8[%c0_207, %c0_208], %758 {strides = array<i32>} : memref<2x32xf32, #tpu.memory_space<vmem>>, vector<2x32xf32>,
      %cst_209 = arith.constant 0.000000e+00 : f32
      %760 = vector.broadcast %cst_209 : f32 to vector<2x32xf32>
      %c0_210 = arith.constant 0 : index
      %c0_211 = arith.constant 0 : index
      %761 = vector.load %arg9[%c0_210, %c0_211] : memref<2x32xf32, #tpu.memory_space<vmem>>, vector<2x32xf32>
      tpu.vector_store %arg9[%c0_210, %c0_211], %760 {strides = array<i32>} : memref<2x32xf32, #tpu.memory_space<vmem>>, vector<2x32xf32>,
      %cst_212 = arith.constant 0.000000e+00 : f32
      %762 = vector.broadcast %cst_212 : f32 to vector<2x32xf32>
      %c0_213 = arith.constant 0 : index
      %c0_214 = arith.constant 0 : index
      %763 = vector.load %arg10[%c0_213, %c0_214] : memref<2x32xf32, #tpu.memory_space<vmem>>, vector<2x32xf32>
      tpu.vector_store %arg10[%c0_213, %c0_214], %762 {strides = array<i32>} : memref<2x32xf32, #tpu.memory_space<vmem>>, vector<2x32xf32>,
      %cst_215 = arith.constant 0.000000e+00 : f32
      %764 = vector.broadcast %cst_215 : f32 to vector<2x32xf32>
      %c0_216 = arith.constant 0 : index
      %c0_217 = arith.constant 0 : index
      %765 = vector.load %arg11[%c0_216, %c0_217] : memref<2x32xf32, #tpu.memory_space<vmem>>, vector<2x32xf32>
      tpu.vector_store %arg11[%c0_216, %c0_217], %764 {strides = array<i32>} : memref<2x32xf32, #tpu.memory_space<vmem>>, vector<2x32xf32>,
    } else {
    }
    %c0 = arith.constant 0 : index
    %c0_1 = arith.constant 0 : index
    %3 = vector.load %arg1[%c0, %c0_1] : memref<2x1xi32, #tpu.memory_space<vmem>>, vector<2x1xi32>
    %c0_2 = arith.constant 0 : index
    %c0_3 = arith.constant 0 : index
    %4 = vector.load %arg4[%c0_2, %c0_3] : memref<32x128xbf16, #tpu.memory_space<vmem>>, vector<32x128xbf16>
    %c0_4 = arith.constant 0 : index
    %c0_5 = arith.constant 0 : index
    %5 = vector.load %arg5[%c0_4, %c0_5] : memref<32x128xbf16, #tpu.memory_space<vmem>>, vector<32x128xbf16>
    %c0_6 = arith.constant 0 : index
    %c0_7 = arith.constant 0 : index
    %6 = vector.load %arg8[%c0_6, %c0_7] : memref<2x32xf32, #tpu.memory_space<vmem>>, vector<2x32xf32>
    %c0_8 = arith.constant 0 : index
    %c0_9 = arith.constant 0 : index
    %7 = vector.load %arg9[%c0_8, %c0_9] : memref<2x32xf32, #tpu.memory_space<vmem>>, vector<2x32xf32>
    %c0_10 = arith.constant 0 : index
    %c0_11 = arith.constant 0 : index
    %8 = vector.load %arg10[%c0_10, %c0_11] : memref<2x32xf32, #tpu.memory_space<vmem>>, vector<2x32xf32>
    %c0_12 = arith.constant 0 : index
    %c0_13 = arith.constant 0 : index
    %9 = vector.load %arg11[%c0_12, %c0_13] : memref<2x32xf32, #tpu.memory_space<vmem>>, vector<2x32xf32>
    %c8_i32 = arith.constant 8 : i32
    %10 = arith.muli %arg0, %c8_i32 : i32
    %c0_i32_14 = arith.constant 0 : i32
    %11 = arith.addi %10, %c0_i32_14 : i32
    %c7_i32 = arith.constant 7 : i32
    %12 = arith.subi %c7_i32, %11 : i32
    %13 = arith.truncf %6 : vector<2x32xf32> to vector<2x32xbf16>
    %cst = arith.constant dense<0.000000e+00> : vector<2x128xf32>
    %14 = tpu.matmul %13, %4, %cst {dimension_numbers = #tpu.dot_dimension_numbers<[1], [0], [0], [1], [0, 0, 1, 1], [], []>} : vector<2x32xbf16>, vector<32x128xbf16>, vector<2x128xf32> -> vector<2x128xf32>
    %15 = arith.truncf %8 : vector<2x32xf32> to vector<2x32xbf16>
    %cst_15 = arith.constant dense<0.000000e+00> : vector<2x128xf32>
    %16 = tpu.matmul %15, %5, %cst_15 {dimension_numbers = #tpu.dot_dimension_numbers<[1], [0], [0], [1], [0, 0, 1, 1], [], []>} : vector<2x32xbf16>, vector<32x128xbf16>, vector<2x128xf32> -> vector<2x128xf32>
    %c0_16 = arith.constant 0 : index
    %c0_17 = arith.constant 0 : index
    %c0_18 = arith.constant 0 : index
    %17 = vector.load %arg2[%c0_16, %c0_17, %c0_18] : memref<8x2x128xf32, #tpu.memory_space<vmem>>, vector<1x2x128xf32>
    %18 = vector.shape_cast %17 : vector<1x2x128xf32> to vector<2x128xf32>
    %19 = arith.addf %18, %14 : vector<2x128xf32>
    %c7 = arith.constant 7 : index
    %c0_19 = arith.constant 0 : index
    %c0_20 = arith.constant 0 : index
    %20 = vector.load %arg3[%c7, %c0_19, %c0_20] : memref<8x2x128xf32, #tpu.memory_space<vmem>>, vector<1x2x128xf32>
    %21 = vector.shape_cast %20 : vector<1x2x128xf32> to vector<2x128xf32>
    %22 = arith.addf %21, %16 : vector<2x128xf32>
    %23 = vector.extract_strided_slice %19 {offsets = [0, 0], sizes = [2, 32], strides = [1, 1]} : vector<2x128xf32> to vector<2x32xf32>
    %24 = arith.negf %23 : vector<2x32xf32>
    %25 = math.exp %24 : vector<2x32xf32>
    %cst_21 = arith.constant 1.000000e+00 : f32
    %26 = vector.broadcast %cst_21 : f32 to vector<2x32xf32>
    %27 = arith.addf %26, %25 : vector<2x32xf32>
    %28 = arith.divf %26, %27 : vector<2x32xf32>
    %29 = vector.extract_strided_slice %19 {offsets = [0, 32], sizes = [2, 32], strides = [1, 1]} : vector<2x128xf32> to vector<2x32xf32>
    %30 = arith.negf %29 : vector<2x32xf32>
    %31 = math.exp %30 : vector<2x32xf32>
    %cst_22 = arith.constant 1.000000e+00 : f32
    %32 = vector.broadcast %cst_22 : f32 to vector<2x32xf32>
    %33 = arith.addf %32, %31 : vector<2x32xf32>
    %34 = arith.divf %32, %33 : vector<2x32xf32>
    %35 = vector.extract_strided_slice %19 {offsets = [0, 64], sizes = [2, 32], strides = [1, 1]} : vector<2x128xf32> to vector<2x32xf32>
    %36 = math.tanh %35 : vector<2x32xf32>
    %37 = vector.extract_strided_slice %19 {offsets = [0, 96], sizes = [2, 32], strides = [1, 1]} : vector<2x128xf32> to vector<2x32xf32>
    %38 = arith.negf %37 : vector<2x32xf32>
    %39 = math.exp %38 : vector<2x32xf32>
    %cst_23 = arith.constant 1.000000e+00 : f32
    %40 = vector.broadcast %cst_23 : f32 to vector<2x32xf32>
    %41 = arith.addf %40, %39 : vector<2x32xf32>
    %42 = arith.divf %40, %41 : vector<2x32xf32>
    %43 = arith.mulf %34, %7 : vector<2x32xf32>
    %44 = arith.mulf %28, %36 : vector<2x32xf32>
    %45 = arith.addf %43, %44 : vector<2x32xf32>
    %46 = math.tanh %45 : vector<2x32xf32>
    %47 = arith.mulf %42, %46 : vector<2x32xf32>
    %48 = vector.extract_strided_slice %22 {offsets = [0, 0], sizes = [2, 32], strides = [1, 1]} : vector<2x128xf32> to vector<2x32xf32>
    %49 = arith.negf %48 : vector<2x32xf32>
    %50 = math.exp %49 : vector<2x32xf32>
    %cst_24 = arith.constant 1.000000e+00 : f32
    %51 = vector.broadcast %cst_24 : f32 to vector<2x32xf32>
    %52 = arith.addf %51, %50 : vector<2x32xf32>
    %53 = arith.divf %51, %52 : vector<2x32xf32>
    %54 = vector.extract_strided_slice %22 {offsets = [0, 32], sizes = [2, 32], strides = [1, 1]} : vector<2x128xf32> to vector<2x32xf32>
    %55 = arith.negf %54 : vector<2x32xf32>
    %56 = math.exp %55 : vector<2x32xf32>
    %cst_25 = arith.constant 1.000000e+00 : f32
    %57 = vector.broadcast %cst_25 : f32 to vector<2x32xf32>
    %58 = arith.addf %57, %56 : vector<2x32xf32>
    %59 = arith.divf %57, %58 : vector<2x32xf32>
    %60 = vector.extract_strided_slice %22 {offsets = [0, 64], sizes = [2, 32], strides = [1, 1]} : vector<2x128xf32> to vector<2x32xf32>
    %61 = math.tanh %60 : vector<2x32xf32>
    %62 = vector.extract_strided_slice %22 {offsets = [0, 96], sizes = [2, 32], strides = [1, 1]} : vector<2x128xf32> to vector<2x32xf32>
    %63 = arith.negf %62 : vector<2x32xf32>
    %64 = math.exp %63 : vector<2x32xf32>
    %cst_26 = arith.constant 1.000000e+00 : f32
    %65 = vector.broadcast %cst_26 : f32 to vector<2x32xf32>
    %66 = arith.addf %65, %64 : vector<2x32xf32>
    %67 = arith.divf %65, %66 : vector<2x32xf32>
    %68 = arith.mulf %59, %9 : vector<2x32xf32>
    %69 = arith.mulf %53, %61 : vector<2x32xf32>
    %70 = arith.addf %68, %69 : vector<2x32xf32>
    %71 = math.tanh %70 : vector<2x32xf32>
    %72 = arith.mulf %67, %71 : vector<2x32xf32>
    %73 = vector.broadcast %11 : i32 to vector<2x1xi32>
    %74 = arith.cmpi slt, %73, %3 : vector<2x1xi32>
    %75 = vector.broadcast %12 : i32 to vector<2x1xi32>
    %76 = arith.cmpi slt, %75, %3 : vector<2x1xi32>
    %77 = vector.shape_cast %74 : vector<2x1xi1> to vector<2x1xi1>
    %78 = vector.broadcast %77 : vector<2x1xi1> to vector<2x32xi1>
    %79 = arith.select %78, %47, %6 : vector<2x32xi1>, vector<2x32xf32>
    %80 = vector.shape_cast %74 : vector<2x1xi1> to vector<2x1xi1>
    %81 = vector.broadcast %80 : vector<2x1xi1> to vector<2x32xi1>
    %82 = arith.select %81, %45, %7 : vector<2x32xi1>, vector<2x32xf32>
    %83 = vector.shape_cast %76 : vector<2x1xi1> to vector<2x1xi1>
    %84 = vector.broadcast %83 : vector<2x1xi1> to vector<2x32xi1>
    %85 = arith.select %84, %72, %8 : vector<2x32xi1>, vector<2x32xf32>
    %86 = vector.shape_cast %76 : vector<2x1xi1> to vector<2x1xi1>
    %87 = vector.broadcast %86 : vector<2x1xi1> to vector<2x32xi1>
    %88 = arith.select %87, %70, %9 : vector<2x32xi1>, vector<2x32xf32>
    %cst_27 = arith.constant 0.000000e+00 : f32
    %89 = vector.shape_cast %74 : vector<2x1xi1> to vector<2x1xi1>
    %90 = vector.broadcast %89 : vector<2x1xi1> to vector<2x32xi1>
    %91 = vector.broadcast %cst_27 : f32 to vector<2x32xf32>
    %92 = arith.select %90, %47, %91 : vector<2x32xi1>, vector<2x32xf32>
    %c0_28 = arith.constant 0 : index
    %c0_29 = arith.constant 0 : index
    %c0_30 = arith.constant 0 : index
    %93 = vector.load %arg6[%c0_28, %c0_29, %c0_30] : memref<8x2x32xf32, #tpu.memory_space<vmem>>, vector<1x2x32xf32>
    %94 = vector.shape_cast %93 : vector<1x2x32xf32> to vector<2x32xf32>
    %95 = vector.shape_cast %92 : vector<2x32xf32> to vector<1x2x32xf32>
    tpu.vector_store %arg6[%c0_28, %c0_29, %c0_30], %95 {strides = array<i32>} : memref<8x2x32xf32, #tpu.memory_space<vmem>>, vector<1x2x32xf32>,
    %cst_31 = arith.constant 0.000000e+00 : f32
    %96 = vector.shape_cast %76 : vector<2x1xi1> to vector<2x1xi1>
    %97 = vector.broadcast %96 : vector<2x1xi1> to vector<2x32xi1>
    %98 = vector.broadcast %cst_31 : f32 to vector<2x32xf32>
    %99 = arith.select %97, %72, %98 : vector<2x32xi1>, vector<2x32xf32>
    %c7_32 = arith.constant 7 : index
    %c0_33 = arith.constant 0 : index
    %c0_34 = arith.constant 0 : index
    %100 = vector.load %arg7[%c7_32, %c0_33, %c0_34] : memref<8x2x32xf32, #tpu.memory_space<vmem>>, vector<1x2x32xf32>
    %101 = vector.shape_cast %100 : vector<1x2x32xf32> to vector<2x32xf32>
    %102 = vector.shape_cast %99 : vector<2x32xf32> to vector<1x2x32xf32>
    tpu.vector_store %arg7[%c7_32, %c0_33, %c0_34], %102 {strides = array<i32>} : memref<8x2x32xf32, #tpu.memory_space<vmem>>, vector<1x2x32xf32>,
    %c8_i32_35 = arith.constant 8 : i32
    %103 = arith.muli %arg0, %c8_i32_35 : i32
    %c1_i32 = arith.constant 1 : i32
    %104 = arith.addi %103, %c1_i32 : i32
    %c7_i32_36 = arith.constant 7 : i32
    %105 = arith.subi %c7_i32_36, %104 : i32
    %106 = arith.truncf %79 : vector<2x32xf32> to vector<2x32xbf16>
    %cst_37 = arith.constant dense<0.000000e+00> : vector<2x128xf32>
    %107 = tpu.matmul %106, %4, %cst_37 {dimension_numbers = #tpu.dot_dimension_numbers<[1], [0], [0], [1], [0, 0, 1, 1], [], []>} : vector<2x32xbf16>, vector<32x128xbf16>, vector<2x128xf32> -> vector<2x128xf32>
    %108 = arith.truncf %85 : vector<2x32xf32> to vector<2x32xbf16>
    %cst_38 = arith.constant dense<0.000000e+00> : vector<2x128xf32>
    %109 = tpu.matmul %108, %5, %cst_38 {dimension_numbers = #tpu.dot_dimension_numbers<[1], [0], [0], [1], [0, 0, 1, 1], [], []>} : vector<2x32xbf16>, vector<32x128xbf16>, vector<2x128xf32> -> vector<2x128xf32>
    %c1 = arith.constant 1 : index
    %c0_39 = arith.constant 0 : index
    %c0_40 = arith.constant 0 : index
    %110 = vector.load %arg2[%c1, %c0_39, %c0_40] : memref<8x2x128xf32, #tpu.memory_space<vmem>>, vector<1x2x128xf32>
    %111 = vector.shape_cast %110 : vector<1x2x128xf32> to vector<2x128xf32>
    %112 = arith.addf %111, %107 : vector<2x128xf32>
    %c6 = arith.constant 6 : index
    %c0_41 = arith.constant 0 : index
    %c0_42 = arith.constant 0 : index
    %113 = vector.load %arg3[%c6, %c0_41, %c0_42] : memref<8x2x128xf32, #tpu.memory_space<vmem>>, vector<1x2x128xf32>
    %114 = vector.shape_cast %113 : vector<1x2x128xf32> to vector<2x128xf32>
    %115 = arith.addf %114, %109 : vector<2x128xf32>
    %116 = vector.extract_strided_slice %112 {offsets = [0, 0], sizes = [2, 32], strides = [1, 1]} : vector<2x128xf32> to vector<2x32xf32>
    %117 = arith.negf %116 : vector<2x32xf32>
    %118 = math.exp %117 : vector<2x32xf32>
    %cst_43 = arith.constant 1.000000e+00 : f32
    %119 = vector.broadcast %cst_43 : f32 to vector<2x32xf32>
    %120 = arith.addf %119, %118 : vector<2x32xf32>
    %121 = arith.divf %119, %120 : vector<2x32xf32>
    %122 = vector.extract_strided_slice %112 {offsets = [0, 32], sizes = [2, 32], strides = [1, 1]} : vector<2x128xf32> to vector<2x32xf32>
    %123 = arith.negf %122 : vector<2x32xf32>
    %124 = math.exp %123 : vector<2x32xf32>
    %cst_44 = arith.constant 1.000000e+00 : f32
    %125 = vector.broadcast %cst_44 : f32 to vector<2x32xf32>
    %126 = arith.addf %125, %124 : vector<2x32xf32>
    %127 = arith.divf %125, %126 : vector<2x32xf32>
    %128 = vector.extract_strided_slice %112 {offsets = [0, 64], sizes = [2, 32], strides = [1, 1]} : vector<2x128xf32> to vector<2x32xf32>
    %129 = math.tanh %128 : vector<2x32xf32>
    %130 = vector.extract_strided_slice %112 {offsets = [0, 96], sizes = [2, 32], strides = [1, 1]} : vector<2x128xf32> to vector<2x32xf32>
    %131 = arith.negf %130 : vector<2x32xf32>
    %132 = math.exp %131 : vector<2x32xf32>
    %cst_45 = arith.constant 1.000000e+00 : f32
    %133 = vector.broadcast %cst_45 : f32 to vector<2x32xf32>
    %134 = arith.addf %133, %132 : vector<2x32xf32>
    %135 = arith.divf %133, %134 : vector<2x32xf32>
    %136 = arith.mulf %127, %82 : vector<2x32xf32>
    %137 = arith.mulf %121, %129 : vector<2x32xf32>
    %138 = arith.addf %136, %137 : vector<2x32xf32>
    %139 = math.tanh %138 : vector<2x32xf32>
    %140 = arith.mulf %135, %139 : vector<2x32xf32>
    %141 = vector.extract_strided_slice %115 {offsets = [0, 0], sizes = [2, 32], strides = [1, 1]} : vector<2x128xf32> to vector<2x32xf32>
    %142 = arith.negf %141 : vector<2x32xf32>
    %143 = math.exp %142 : vector<2x32xf32>
    %cst_46 = arith.constant 1.000000e+00 : f32
    %144 = vector.broadcast %cst_46 : f32 to vector<2x32xf32>
    %145 = arith.addf %144, %143 : vector<2x32xf32>
    %146 = arith.divf %144, %145 : vector<2x32xf32>
    %147 = vector.extract_strided_slice %115 {offsets = [0, 32], sizes = [2, 32], strides = [1, 1]} : vector<2x128xf32> to vector<2x32xf32>
    %148 = arith.negf %147 : vector<2x32xf32>
    %149 = math.exp %148 : vector<2x32xf32>
    %cst_47 = arith.constant 1.000000e+00 : f32
    %150 = vector.broadcast %cst_47 : f32 to vector<2x32xf32>
    %151 = arith.addf %150, %149 : vector<2x32xf32>
    %152 = arith.divf %150, %151 : vector<2x32xf32>
    %153 = vector.extract_strided_slice %115 {offsets = [0, 64], sizes = [2, 32], strides = [1, 1]} : vector<2x128xf32> to vector<2x32xf32>
    %154 = math.tanh %153 : vector<2x32xf32>
    %155 = vector.extract_strided_slice %115 {offsets = [0, 96], sizes = [2, 32], strides = [1, 1]} : vector<2x128xf32> to vector<2x32xf32>
    %156 = arith.negf %155 : vector<2x32xf32>
    %157 = math.exp %156 : vector<2x32xf32>
    %cst_48 = arith.constant 1.000000e+00 : f32
    %158 = vector.broadcast %cst_48 : f32 to vector<2x32xf32>
    %159 = arith.addf %158, %157 : vector<2x32xf32>
    %160 = arith.divf %158, %159 : vector<2x32xf32>
    %161 = arith.mulf %152, %88 : vector<2x32xf32>
    %162 = arith.mulf %146, %154 : vector<2x32xf32>
    %163 = arith.addf %161, %162 : vector<2x32xf32>
    %164 = math.tanh %163 : vector<2x32xf32>
    %165 = arith.mulf %160, %164 : vector<2x32xf32>
    %166 = vector.broadcast %104 : i32 to vector<2x1xi32>
    %167 = arith.cmpi slt, %166, %3 : vector<2x1xi32>
    %168 = vector.broadcast %105 : i32 to vector<2x1xi32>
    %169 = arith.cmpi slt, %168, %3 : vector<2x1xi32>
    %170 = vector.shape_cast %167 : vector<2x1xi1> to vector<2x1xi1>
    %171 = vector.broadcast %170 : vector<2x1xi1> to vector<2x32xi1>
    %172 = arith.select %171, %140, %79 : vector<2x32xi1>, vector<2x32xf32>
    %173 = vector.shape_cast %167 : vector<2x1xi1> to vector<2x1xi1>
    %174 = vector.broadcast %173 : vector<2x1xi1> to vector<2x32xi1>
    %175 = arith.select %174, %138, %82 : vector<2x32xi1>, vector<2x32xf32>
    %176 = vector.shape_cast %169 : vector<2x1xi1> to vector<2x1xi1>
    %177 = vector.broadcast %176 : vector<2x1xi1> to vector<2x32xi1>
    %178 = arith.select %177, %165, %85 : vector<2x32xi1>, vector<2x32xf32>
    %179 = vector.shape_cast %169 : vector<2x1xi1> to vector<2x1xi1>
    %180 = vector.broadcast %179 : vector<2x1xi1> to vector<2x32xi1>
    %181 = arith.select %180, %163, %88 : vector<2x32xi1>, vector<2x32xf32>
    %cst_49 = arith.constant 0.000000e+00 : f32
    %182 = vector.shape_cast %167 : vector<2x1xi1> to vector<2x1xi1>
    %183 = vector.broadcast %182 : vector<2x1xi1> to vector<2x32xi1>
    %184 = vector.broadcast %cst_49 : f32 to vector<2x32xf32>
    %185 = arith.select %183, %140, %184 : vector<2x32xi1>, vector<2x32xf32>
    %c1_50 = arith.constant 1 : index
    %c0_51 = arith.constant 0 : index
    %c0_52 = arith.constant 0 : index
    %186 = vector.load %arg6[%c1_50, %c0_51, %c0_52] : memref<8x2x32xf32, #tpu.memory_space<vmem>>, vector<1x2x32xf32>
    %187 = vector.shape_cast %186 : vector<1x2x32xf32> to vector<2x32xf32>
    %188 = vector.shape_cast %185 : vector<2x32xf32> to vector<1x2x32xf32>
    tpu.vector_store %arg6[%c1_50, %c0_51, %c0_52], %188 {strides = array<i32>} : memref<8x2x32xf32, #tpu.memory_space<vmem>>, vector<1x2x32xf32>,
    %cst_53 = arith.constant 0.000000e+00 : f32
    %189 = vector.shape_cast %169 : vector<2x1xi1> to vector<2x1xi1>
    %190 = vector.broadcast %189 : vector<2x1xi1> to vector<2x32xi1>
    %191 = vector.broadcast %cst_53 : f32 to vector<2x32xf32>
    %192 = arith.select %190, %165, %191 : vector<2x32xi1>, vector<2x32xf32>
    %c6_54 = arith.constant 6 : index
    %c0_55 = arith.constant 0 : index
    %c0_56 = arith.constant 0 : index
    %193 = vector.load %arg7[%c6_54, %c0_55, %c0_56] : memref<8x2x32xf32, #tpu.memory_space<vmem>>, vector<1x2x32xf32>
    %194 = vector.shape_cast %193 : vector<1x2x32xf32> to vector<2x32xf32>
    %195 = vector.shape_cast %192 : vector<2x32xf32> to vector<1x2x32xf32>
    tpu.vector_store %arg7[%c6_54, %c0_55, %c0_56], %195 {strides = array<i32>} : memref<8x2x32xf32, #tpu.memory_space<vmem>>, vector<1x2x32xf32>,
    %c8_i32_57 = arith.constant 8 : i32
    %196 = arith.muli %arg0, %c8_i32_57 : i32
    %c2_i32 = arith.constant 2 : i32
    %197 = arith.addi %196, %c2_i32 : i32
    %c7_i32_58 = arith.constant 7 : i32
    %198 = arith.subi %c7_i32_58, %197 : i32
    %199 = arith.truncf %172 : vector<2x32xf32> to vector<2x32xbf16>
    %cst_59 = arith.constant dense<0.000000e+00> : vector<2x128xf32>
    %200 = tpu.matmul %199, %4, %cst_59 {dimension_numbers = #tpu.dot_dimension_numbers<[1], [0], [0], [1], [0, 0, 1, 1], [], []>} : vector<2x32xbf16>, vector<32x128xbf16>, vector<2x128xf32> -> vector<2x128xf32>
    %201 = arith.truncf %178 : vector<2x32xf32> to vector<2x32xbf16>
    %cst_60 = arith.constant dense<0.000000e+00> : vector<2x128xf32>
    %202 = tpu.matmul %201, %5, %cst_60 {dimension_numbers = #tpu.dot_dimension_numbers<[1], [0], [0], [1], [0, 0, 1, 1], [], []>} : vector<2x32xbf16>, vector<32x128xbf16>, vector<2x128xf32> -> vector<2x128xf32>
    %c2 = arith.constant 2 : index
    %c0_61 = arith.constant 0 : index
    %c0_62 = arith.constant 0 : index
    %203 = vector.load %arg2[%c2, %c0_61, %c0_62] : memref<8x2x128xf32, #tpu.memory_space<vmem>>, vector<1x2x128xf32>
    %204 = vector.shape_cast %203 : vector<1x2x128xf32> to vector<2x128xf32>
    %205 = arith.addf %204, %200 : vector<2x128xf32>
    %c5 = arith.constant 5 : index
    %c0_63 = arith.constant 0 : index
    %c0_64 = arith.constant 0 : index
    %206 = vector.load %arg3[%c5, %c0_63, %c0_64] : memref<8x2x128xf32, #tpu.memory_space<vmem>>, vector<1x2x128xf32>
    %207 = vector.shape_cast %206 : vector<1x2x128xf32> to vector<2x128xf32>
    %208 = arith.addf %207, %202 : vector<2x128xf32>
    %209 = vector.extract_strided_slice %205 {offsets = [0, 0], sizes = [2, 32], strides = [1, 1]} : vector<2x128xf32> to vector<2x32xf32>
    %210 = arith.negf %209 : vector<2x32xf32>
    %211 = math.exp %210 : vector<2x32xf32>
    %cst_65 = arith.constant 1.000000e+00 : f32
    %212 = vector.broadcast %cst_65 : f32 to vector<2x32xf32>
    %213 = arith.addf %212, %211 : vector<2x32xf32>
    %214 = arith.divf %212, %213 : vector<2x32xf32>
    %215 = vector.extract_strided_slice %205 {offsets = [0, 32], sizes = [2, 32], strides = [1, 1]} : vector<2x128xf32> to vector<2x32xf32>
    %216 = arith.negf %215 : vector<2x32xf32>
    %217 = math.exp %216 : vector<2x32xf32>
    %cst_66 = arith.constant 1.000000e+00 : f32
    %218 = vector.broadcast %cst_66 : f32 to vector<2x32xf32>
    %219 = arith.addf %218, %217 : vector<2x32xf32>
    %220 = arith.divf %218, %219 : vector<2x32xf32>
    %221 = vector.extract_strided_slice %205 {offsets = [0, 64], sizes = [2, 32], strides = [1, 1]} : vector<2x128xf32> to vector<2x32xf32>
    %222 = math.tanh %221 : vector<2x32xf32>
    %223 = vector.extract_strided_slice %205 {offsets = [0, 96], sizes = [2, 32], strides = [1, 1]} : vector<2x128xf32> to vector<2x32xf32>
    %224 = arith.negf %223 : vector<2x32xf32>
    %225 = math.exp %224 : vector<2x32xf32>
    %cst_67 = arith.constant 1.000000e+00 : f32
    %226 = vector.broadcast %cst_67 : f32 to vector<2x32xf32>
    %227 = arith.addf %226, %225 : vector<2x32xf32>
    %228 = arith.divf %226, %227 : vector<2x32xf32>
    %229 = arith.mulf %220, %175 : vector<2x32xf32>
    %230 = arith.mulf %214, %222 : vector<2x32xf32>
    %231 = arith.addf %229, %230 : vector<2x32xf32>
    %232 = math.tanh %231 : vector<2x32xf32>
    %233 = arith.mulf %228, %232 : vector<2x32xf32>
    %234 = vector.extract_strided_slice %208 {offsets = [0, 0], sizes = [2, 32], strides = [1, 1]} : vector<2x128xf32> to vector<2x32xf32>
    %235 = arith.negf %234 : vector<2x32xf32>
    %236 = math.exp %235 : vector<2x32xf32>
    %cst_68 = arith.constant 1.000000e+00 : f32
    %237 = vector.broadcast %cst_68 : f32 to vector<2x32xf32>
    %238 = arith.addf %237, %236 : vector<2x32xf32>
    %239 = arith.divf %237, %238 : vector<2x32xf32>
    %240 = vector.extract_strided_slice %208 {offsets = [0, 32], sizes = [2, 32], strides = [1, 1]} : vector<2x128xf32> to vector<2x32xf32>
    %241 = arith.negf %240 : vector<2x32xf32>
    %242 = math.exp %241 : vector<2x32xf32>
    %cst_69 = arith.constant 1.000000e+00 : f32
    %243 = vector.broadcast %cst_69 : f32 to vector<2x32xf32>
    %244 = arith.addf %243, %242 : vector<2x32xf32>
    %245 = arith.divf %243, %244 : vector<2x32xf32>
    %246 = vector.extract_strided_slice %208 {offsets = [0, 64], sizes = [2, 32], strides = [1, 1]} : vector<2x128xf32> to vector<2x32xf32>
    %247 = math.tanh %246 : vector<2x32xf32>
    %248 = vector.extract_strided_slice %208 {offsets = [0, 96], sizes = [2, 32], strides = [1, 1]} : vector<2x128xf32> to vector<2x32xf32>
    %249 = arith.negf %248 : vector<2x32xf32>
    %250 = math.exp %249 : vector<2x32xf32>
    %cst_70 = arith.constant 1.000000e+00 : f32
    %251 = vector.broadcast %cst_70 : f32 to vector<2x32xf32>
    %252 = arith.addf %251, %250 : vector<2x32xf32>
    %253 = arith.divf %251, %252 : vector<2x32xf32>
    %254 = arith.mulf %245, %181 : vector<2x32xf32>
    %255 = arith.mulf %239, %247 : vector<2x32xf32>
    %256 = arith.addf %254, %255 : vector<2x32xf32>
    %257 = math.tanh %256 : vector<2x32xf32>
    %258 = arith.mulf %253, %257 : vector<2x32xf32>
    %259 = vector.broadcast %197 : i32 to vector<2x1xi32>
    %260 = arith.cmpi slt, %259, %3 : vector<2x1xi32>
    %261 = vector.broadcast %198 : i32 to vector<2x1xi32>
    %262 = arith.cmpi slt, %261, %3 : vector<2x1xi32>
    %263 = vector.shape_cast %260 : vector<2x1xi1> to vector<2x1xi1>
    %264 = vector.broadcast %263 : vector<2x1xi1> to vector<2x32xi1>
    %265 = arith.select %264, %233, %172 : vector<2x32xi1>, vector<2x32xf32>
    %266 = vector.shape_cast %260 : vector<2x1xi1> to vector<2x1xi1>
    %267 = vector.broadcast %266 : vector<2x1xi1> to vector<2x32xi1>
    %268 = arith.select %267, %231, %175 : vector<2x32xi1>, vector<2x32xf32>
    %269 = vector.shape_cast %262 : vector<2x1xi1> to vector<2x1xi1>
    %270 = vector.broadcast %269 : vector<2x1xi1> to vector<2x32xi1>
    %271 = arith.select %270, %258, %178 : vector<2x32xi1>, vector<2x32xf32>
    %272 = vector.shape_cast %262 : vector<2x1xi1> to vector<2x1xi1>
    %273 = vector.broadcast %272 : vector<2x1xi1> to vector<2x32xi1>
    %274 = arith.select %273, %256, %181 : vector<2x32xi1>, vector<2x32xf32>
    %cst_71 = arith.constant 0.000000e+00 : f32
    %275 = vector.shape_cast %260 : vector<2x1xi1> to vector<2x1xi1>
    %276 = vector.broadcast %275 : vector<2x1xi1> to vector<2x32xi1>
    %277 = vector.broadcast %cst_71 : f32 to vector<2x32xf32>
    %278 = arith.select %276, %233, %277 : vector<2x32xi1>, vector<2x32xf32>
    %c2_72 = arith.constant 2 : index
    %c0_73 = arith.constant 0 : index
    %c0_74 = arith.constant 0 : index
    %279 = vector.load %arg6[%c2_72, %c0_73, %c0_74] : memref<8x2x32xf32, #tpu.memory_space<vmem>>, vector<1x2x32xf32>
    %280 = vector.shape_cast %279 : vector<1x2x32xf32> to vector<2x32xf32>
    %281 = vector.shape_cast %278 : vector<2x32xf32> to vector<1x2x32xf32>
    tpu.vector_store %arg6[%c2_72, %c0_73, %c0_74], %281 {strides = array<i32>} : memref<8x2x32xf32, #tpu.memory_space<vmem>>, vector<1x2x32xf32>,
    %cst_75 = arith.constant 0.000000e+00 : f32
    %282 = vector.shape_cast %262 : vector<2x1xi1> to vector<2x1xi1>
    %283 = vector.broadcast %282 : vector<2x1xi1> to vector<2x32xi1>
    %284 = vector.broadcast %cst_75 : f32 to vector<2x32xf32>
    %285 = arith.select %283, %258, %284 : vector<2x32xi1>, vector<2x32xf32>
    %c5_76 = arith.constant 5 : index
    %c0_77 = arith.constant 0 : index
    %c0_78 = arith.constant 0 : index
    %286 = vector.load %arg7[%c5_76, %c0_77, %c0_78] : memref<8x2x32xf32, #tpu.memory_space<vmem>>, vector<1x2x32xf32>
    %287 = vector.shape_cast %286 : vector<1x2x32xf32> to vector<2x32xf32>
    %288 = vector.shape_cast %285 : vector<2x32xf32> to vector<1x2x32xf32>
    tpu.vector_store %arg7[%c5_76, %c0_77, %c0_78], %288 {strides = array<i32>} : memref<8x2x32xf32, #tpu.memory_space<vmem>>, vector<1x2x32xf32>,
    %c8_i32_79 = arith.constant 8 : i32
    %289 = arith.muli %arg0, %c8_i32_79 : i32
    %c3_i32 = arith.constant 3 : i32
    %290 = arith.addi %289, %c3_i32 : i32
    %c7_i32_80 = arith.constant 7 : i32
    %291 = arith.subi %c7_i32_80, %290 : i32
    %292 = arith.truncf %265 : vector<2x32xf32> to vector<2x32xbf16>
    %cst_81 = arith.constant dense<0.000000e+00> : vector<2x128xf32>
    %293 = tpu.matmul %292, %4, %cst_81 {dimension_numbers = #tpu.dot_dimension_numbers<[1], [0], [0], [1], [0, 0, 1, 1], [], []>} : vector<2x32xbf16>, vector<32x128xbf16>, vector<2x128xf32> -> vector<2x128xf32>
    %294 = arith.truncf %271 : vector<2x32xf32> to vector<2x32xbf16>
    %cst_82 = arith.constant dense<0.000000e+00> : vector<2x128xf32>
    %295 = tpu.matmul %294, %5, %cst_82 {dimension_numbers = #tpu.dot_dimension_numbers<[1], [0], [0], [1], [0, 0, 1, 1], [], []>} : vector<2x32xbf16>, vector<32x128xbf16>, vector<2x128xf32> -> vector<2x128xf32>
    %c3 = arith.constant 3 : index
    %c0_83 = arith.constant 0 : index
    %c0_84 = arith.constant 0 : index
    %296 = vector.load %arg2[%c3, %c0_83, %c0_84] : memref<8x2x128xf32, #tpu.memory_space<vmem>>, vector<1x2x128xf32>
    %297 = vector.shape_cast %296 : vector<1x2x128xf32> to vector<2x128xf32>
    %298 = arith.addf %297, %293 : vector<2x128xf32>
    %c4 = arith.constant 4 : index
    %c0_85 = arith.constant 0 : index
    %c0_86 = arith.constant 0 : index
    %299 = vector.load %arg3[%c4, %c0_85, %c0_86] : memref<8x2x128xf32, #tpu.memory_space<vmem>>, vector<1x2x128xf32>
    %300 = vector.shape_cast %299 : vector<1x2x128xf32> to vector<2x128xf32>
    %301 = arith.addf %300, %295 : vector<2x128xf32>
    %302 = vector.extract_strided_slice %298 {offsets = [0, 0], sizes = [2, 32], strides = [1, 1]} : vector<2x128xf32> to vector<2x32xf32>
    %303 = arith.negf %302 : vector<2x32xf32>
    %304 = math.exp %303 : vector<2x32xf32>
    %cst_87 = arith.constant 1.000000e+00 : f32
    %305 = vector.broadcast %cst_87 : f32 to vector<2x32xf32>
    %306 = arith.addf %305, %304 : vector<2x32xf32>
    %307 = arith.divf %305, %306 : vector<2x32xf32>
    %308 = vector.extract_strided_slice %298 {offsets = [0, 32], sizes = [2, 32], strides = [1, 1]} : vector<2x128xf32> to vector<2x32xf32>
    %309 = arith.negf %308 : vector<2x32xf32>
    %310 = math.exp %309 : vector<2x32xf32>
    %cst_88 = arith.constant 1.000000e+00 : f32
    %311 = vector.broadcast %cst_88 : f32 to vector<2x32xf32>
    %312 = arith.addf %311, %310 : vector<2x32xf32>
    %313 = arith.divf %311, %312 : vector<2x32xf32>
    %314 = vector.extract_strided_slice %298 {offsets = [0, 64], sizes = [2, 32], strides = [1, 1]} : vector<2x128xf32> to vector<2x32xf32>
    %315 = math.tanh %314 : vector<2x32xf32>
    %316 = vector.extract_strided_slice %298 {offsets = [0, 96], sizes = [2, 32], strides = [1, 1]} : vector<2x128xf32> to vector<2x32xf32>
    %317 = arith.negf %316 : vector<2x32xf32>
    %318 = math.exp %317 : vector<2x32xf32>
    %cst_89 = arith.constant 1.000000e+00 : f32
    %319 = vector.broadcast %cst_89 : f32 to vector<2x32xf32>
    %320 = arith.addf %319, %318 : vector<2x32xf32>
    %321 = arith.divf %319, %320 : vector<2x32xf32>
    %322 = arith.mulf %313, %268 : vector<2x32xf32>
    %323 = arith.mulf %307, %315 : vector<2x32xf32>
    %324 = arith.addf %322, %323 : vector<2x32xf32>
    %325 = math.tanh %324 : vector<2x32xf32>
    %326 = arith.mulf %321, %325 : vector<2x32xf32>
    %327 = vector.extract_strided_slice %301 {offsets = [0, 0], sizes = [2, 32], strides = [1, 1]} : vector<2x128xf32> to vector<2x32xf32>
    %328 = arith.negf %327 : vector<2x32xf32>
    %329 = math.exp %328 : vector<2x32xf32>
    %cst_90 = arith.constant 1.000000e+00 : f32
    %330 = vector.broadcast %cst_90 : f32 to vector<2x32xf32>
    %331 = arith.addf %330, %329 : vector<2x32xf32>
    %332 = arith.divf %330, %331 : vector<2x32xf32>
    %333 = vector.extract_strided_slice %301 {offsets = [0, 32], sizes = [2, 32], strides = [1, 1]} : vector<2x128xf32> to vector<2x32xf32>
    %334 = arith.negf %333 : vector<2x32xf32>
    %335 = math.exp %334 : vector<2x32xf32>
    %cst_91 = arith.constant 1.000000e+00 : f32
    %336 = vector.broadcast %cst_91 : f32 to vector<2x32xf32>
    %337 = arith.addf %336, %335 : vector<2x32xf32>
    %338 = arith.divf %336, %337 : vector<2x32xf32>
    %339 = vector.extract_strided_slice %301 {offsets = [0, 64], sizes = [2, 32], strides = [1, 1]} : vector<2x128xf32> to vector<2x32xf32>
    %340 = math.tanh %339 : vector<2x32xf32>
    %341 = vector.extract_strided_slice %301 {offsets = [0, 96], sizes = [2, 32], strides = [1, 1]} : vector<2x128xf32> to vector<2x32xf32>
    %342 = arith.negf %341 : vector<2x32xf32>
    %343 = math.exp %342 : vector<2x32xf32>
    %cst_92 = arith.constant 1.000000e+00 : f32
    %344 = vector.broadcast %cst_92 : f32 to vector<2x32xf32>
    %345 = arith.addf %344, %343 : vector<2x32xf32>
    %346 = arith.divf %344, %345 : vector<2x32xf32>
    %347 = arith.mulf %338, %274 : vector<2x32xf32>
    %348 = arith.mulf %332, %340 : vector<2x32xf32>
    %349 = arith.addf %347, %348 : vector<2x32xf32>
    %350 = math.tanh %349 : vector<2x32xf32>
    %351 = arith.mulf %346, %350 : vector<2x32xf32>
    %352 = vector.broadcast %290 : i32 to vector<2x1xi32>
    %353 = arith.cmpi slt, %352, %3 : vector<2x1xi32>
    %354 = vector.broadcast %291 : i32 to vector<2x1xi32>
    %355 = arith.cmpi slt, %354, %3 : vector<2x1xi32>
    %356 = vector.shape_cast %353 : vector<2x1xi1> to vector<2x1xi1>
    %357 = vector.broadcast %356 : vector<2x1xi1> to vector<2x32xi1>
    %358 = arith.select %357, %326, %265 : vector<2x32xi1>, vector<2x32xf32>
    %359 = vector.shape_cast %353 : vector<2x1xi1> to vector<2x1xi1>
    %360 = vector.broadcast %359 : vector<2x1xi1> to vector<2x32xi1>
    %361 = arith.select %360, %324, %268 : vector<2x32xi1>, vector<2x32xf32>
    %362 = vector.shape_cast %355 : vector<2x1xi1> to vector<2x1xi1>
    %363 = vector.broadcast %362 : vector<2x1xi1> to vector<2x32xi1>
    %364 = arith.select %363, %351, %271 : vector<2x32xi1>, vector<2x32xf32>
    %365 = vector.shape_cast %355 : vector<2x1xi1> to vector<2x1xi1>
    %366 = vector.broadcast %365 : vector<2x1xi1> to vector<2x32xi1>
    %367 = arith.select %366, %349, %274 : vector<2x32xi1>, vector<2x32xf32>
    %cst_93 = arith.constant 0.000000e+00 : f32
    %368 = vector.shape_cast %353 : vector<2x1xi1> to vector<2x1xi1>
    %369 = vector.broadcast %368 : vector<2x1xi1> to vector<2x32xi1>
    %370 = vector.broadcast %cst_93 : f32 to vector<2x32xf32>
    %371 = arith.select %369, %326, %370 : vector<2x32xi1>, vector<2x32xf32>
    %c3_94 = arith.constant 3 : index
    %c0_95 = arith.constant 0 : index
    %c0_96 = arith.constant 0 : index
    %372 = vector.load %arg6[%c3_94, %c0_95, %c0_96] : memref<8x2x32xf32, #tpu.memory_space<vmem>>, vector<1x2x32xf32>
    %373 = vector.shape_cast %372 : vector<1x2x32xf32> to vector<2x32xf32>
    %374 = vector.shape_cast %371 : vector<2x32xf32> to vector<1x2x32xf32>
    tpu.vector_store %arg6[%c3_94, %c0_95, %c0_96], %374 {strides = array<i32>} : memref<8x2x32xf32, #tpu.memory_space<vmem>>, vector<1x2x32xf32>,
    %cst_97 = arith.constant 0.000000e+00 : f32
    %375 = vector.shape_cast %355 : vector<2x1xi1> to vector<2x1xi1>
    %376 = vector.broadcast %375 : vector<2x1xi1> to vector<2x32xi1>
    %377 = vector.broadcast %cst_97 : f32 to vector<2x32xf32>
    %378 = arith.select %376, %351, %377 : vector<2x32xi1>, vector<2x32xf32>
    %c4_98 = arith.constant 4 : index
    %c0_99 = arith.constant 0 : index
    %c0_100 = arith.constant 0 : index
    %379 = vector.load %arg7[%c4_98, %c0_99, %c0_100] : memref<8x2x32xf32, #tpu.memory_space<vmem>>, vector<1x2x32xf32>
    %380 = vector.shape_cast %379 : vector<1x2x32xf32> to vector<2x32xf32>
    %381 = vector.shape_cast %378 : vector<2x32xf32> to vector<1x2x32xf32>
    tpu.vector_store %arg7[%c4_98, %c0_99, %c0_100], %381 {strides = array<i32>} : memref<8x2x32xf32, #tpu.memory_space<vmem>>, vector<1x2x32xf32>,
    %c8_i32_101 = arith.constant 8 : i32
    %382 = arith.muli %arg0, %c8_i32_101 : i32
    %c4_i32 = arith.constant 4 : i32
    %383 = arith.addi %382, %c4_i32 : i32
    %c7_i32_102 = arith.constant 7 : i32
    %384 = arith.subi %c7_i32_102, %383 : i32
    %385 = arith.truncf %358 : vector<2x32xf32> to vector<2x32xbf16>
    %cst_103 = arith.constant dense<0.000000e+00> : vector<2x128xf32>
    %386 = tpu.matmul %385, %4, %cst_103 {dimension_numbers = #tpu.dot_dimension_numbers<[1], [0], [0], [1], [0, 0, 1, 1], [], []>} : vector<2x32xbf16>, vector<32x128xbf16>, vector<2x128xf32> -> vector<2x128xf32>
    %387 = arith.truncf %364 : vector<2x32xf32> to vector<2x32xbf16>
    %cst_104 = arith.constant dense<0.000000e+00> : vector<2x128xf32>
    %388 = tpu.matmul %387, %5, %cst_104 {dimension_numbers = #tpu.dot_dimension_numbers<[1], [0], [0], [1], [0, 0, 1, 1], [], []>} : vector<2x32xbf16>, vector<32x128xbf16>, vector<2x128xf32> -> vector<2x128xf32>
    %c4_105 = arith.constant 4 : index
    %c0_106 = arith.constant 0 : index
    %c0_107 = arith.constant 0 : index
    %389 = vector.load %arg2[%c4_105, %c0_106, %c0_107] : memref<8x2x128xf32, #tpu.memory_space<vmem>>, vector<1x2x128xf32>
    %390 = vector.shape_cast %389 : vector<1x2x128xf32> to vector<2x128xf32>
    %391 = arith.addf %390, %386 : vector<2x128xf32>
    %c3_108 = arith.constant 3 : index
    %c0_109 = arith.constant 0 : index
    %c0_110 = arith.constant 0 : index
    %392 = vector.load %arg3[%c3_108, %c0_109, %c0_110] : memref<8x2x128xf32, #tpu.memory_space<vmem>>, vector<1x2x128xf32>
    %393 = vector.shape_cast %392 : vector<1x2x128xf32> to vector<2x128xf32>
    %394 = arith.addf %393, %388 : vector<2x128xf32>
    %395 = vector.extract_strided_slice %391 {offsets = [0, 0], sizes = [2, 32], strides = [1, 1]} : vector<2x128xf32> to vector<2x32xf32>
    %396 = arith.negf %395 : vector<2x32xf32>
    %397 = math.exp %396 : vector<2x32xf32>
    %cst_111 = arith.constant 1.000000e+00 : f32
    %398 = vector.broadcast %cst_111 : f32 to vector<2x32xf32>
    %399 = arith.addf %398, %397 : vector<2x32xf32>
    %400 = arith.divf %398, %399 : vector<2x32xf32>
    %401 = vector.extract_strided_slice %391 {offsets = [0, 32], sizes = [2, 32], strides = [1, 1]} : vector<2x128xf32> to vector<2x32xf32>
    %402 = arith.negf %401 : vector<2x32xf32>
    %403 = math.exp %402 : vector<2x32xf32>
    %cst_112 = arith.constant 1.000000e+00 : f32
    %404 = vector.broadcast %cst_112 : f32 to vector<2x32xf32>
    %405 = arith.addf %404, %403 : vector<2x32xf32>
    %406 = arith.divf %404, %405 : vector<2x32xf32>
    %407 = vector.extract_strided_slice %391 {offsets = [0, 64], sizes = [2, 32], strides = [1, 1]} : vector<2x128xf32> to vector<2x32xf32>
    %408 = math.tanh %407 : vector<2x32xf32>
    %409 = vector.extract_strided_slice %391 {offsets = [0, 96], sizes = [2, 32], strides = [1, 1]} : vector<2x128xf32> to vector<2x32xf32>
    %410 = arith.negf %409 : vector<2x32xf32>
    %411 = math.exp %410 : vector<2x32xf32>
    %cst_113 = arith.constant 1.000000e+00 : f32
    %412 = vector.broadcast %cst_113 : f32 to vector<2x32xf32>
    %413 = arith.addf %412, %411 : vector<2x32xf32>
    %414 = arith.divf %412, %413 : vector<2x32xf32>
    %415 = arith.mulf %406, %361 : vector<2x32xf32>
    %416 = arith.mulf %400, %408 : vector<2x32xf32>
    %417 = arith.addf %415, %416 : vector<2x32xf32>
    %418 = math.tanh %417 : vector<2x32xf32>
    %419 = arith.mulf %414, %418 : vector<2x32xf32>
    %420 = vector.extract_strided_slice %394 {offsets = [0, 0], sizes = [2, 32], strides = [1, 1]} : vector<2x128xf32> to vector<2x32xf32>
    %421 = arith.negf %420 : vector<2x32xf32>
    %422 = math.exp %421 : vector<2x32xf32>
    %cst_114 = arith.constant 1.000000e+00 : f32
    %423 = vector.broadcast %cst_114 : f32 to vector<2x32xf32>
    %424 = arith.addf %423, %422 : vector<2x32xf32>
    %425 = arith.divf %423, %424 : vector<2x32xf32>
    %426 = vector.extract_strided_slice %394 {offsets = [0, 32], sizes = [2, 32], strides = [1, 1]} : vector<2x128xf32> to vector<2x32xf32>
    %427 = arith.negf %426 : vector<2x32xf32>
    %428 = math.exp %427 : vector<2x32xf32>
    %cst_115 = arith.constant 1.000000e+00 : f32
    %429 = vector.broadcast %cst_115 : f32 to vector<2x32xf32>
    %430 = arith.addf %429, %428 : vector<2x32xf32>
    %431 = arith.divf %429, %430 : vector<2x32xf32>
    %432 = vector.extract_strided_slice %394 {offsets = [0, 64], sizes = [2, 32], strides = [1, 1]} : vector<2x128xf32> to vector<2x32xf32>
    %433 = math.tanh %432 : vector<2x32xf32>
    %434 = vector.extract_strided_slice %394 {offsets = [0, 96], sizes = [2, 32], strides = [1, 1]} : vector<2x128xf32> to vector<2x32xf32>
    %435 = arith.negf %434 : vector<2x32xf32>
    %436 = math.exp %435 : vector<2x32xf32>
    %cst_116 = arith.constant 1.000000e+00 : f32
    %437 = vector.broadcast %cst_116 : f32 to vector<2x32xf32>
    %438 = arith.addf %437, %436 : vector<2x32xf32>
    %439 = arith.divf %437, %438 : vector<2x32xf32>
    %440 = arith.mulf %431, %367 : vector<2x32xf32>
    %441 = arith.mulf %425, %433 : vector<2x32xf32>
    %442 = arith.addf %440, %441 : vector<2x32xf32>
    %443 = math.tanh %442 : vector<2x32xf32>
    %444 = arith.mulf %439, %443 : vector<2x32xf32>
    %445 = vector.broadcast %383 : i32 to vector<2x1xi32>
    %446 = arith.cmpi slt, %445, %3 : vector<2x1xi32>
    %447 = vector.broadcast %384 : i32 to vector<2x1xi32>
    %448 = arith.cmpi slt, %447, %3 : vector<2x1xi32>
    %449 = vector.shape_cast %446 : vector<2x1xi1> to vector<2x1xi1>
    %450 = vector.broadcast %449 : vector<2x1xi1> to vector<2x32xi1>
    %451 = arith.select %450, %419, %358 : vector<2x32xi1>, vector<2x32xf32>
    %452 = vector.shape_cast %446 : vector<2x1xi1> to vector<2x1xi1>
    %453 = vector.broadcast %452 : vector<2x1xi1> to vector<2x32xi1>
    %454 = arith.select %453, %417, %361 : vector<2x32xi1>, vector<2x32xf32>
    %455 = vector.shape_cast %448 : vector<2x1xi1> to vector<2x1xi1>
    %456 = vector.broadcast %455 : vector<2x1xi1> to vector<2x32xi1>
    %457 = arith.select %456, %444, %364 : vector<2x32xi1>, vector<2x32xf32>
    %458 = vector.shape_cast %448 : vector<2x1xi1> to vector<2x1xi1>
    %459 = vector.broadcast %458 : vector<2x1xi1> to vector<2x32xi1>
    %460 = arith.select %459, %442, %367 : vector<2x32xi1>, vector<2x32xf32>
    %cst_117 = arith.constant 0.000000e+00 : f32
    %461 = vector.shape_cast %446 : vector<2x1xi1> to vector<2x1xi1>
    %462 = vector.broadcast %461 : vector<2x1xi1> to vector<2x32xi1>
    %463 = vector.broadcast %cst_117 : f32 to vector<2x32xf32>
    %464 = arith.select %462, %419, %463 : vector<2x32xi1>, vector<2x32xf32>
    %c4_118 = arith.constant 4 : index
    %c0_119 = arith.constant 0 : index
    %c0_120 = arith.constant 0 : index
    %465 = vector.load %arg6[%c4_118, %c0_119, %c0_120] : memref<8x2x32xf32, #tpu.memory_space<vmem>>, vector<1x2x32xf32>
    %466 = vector.shape_cast %465 : vector<1x2x32xf32> to vector<2x32xf32>
    %467 = vector.shape_cast %464 : vector<2x32xf32> to vector<1x2x32xf32>
    tpu.vector_store %arg6[%c4_118, %c0_119, %c0_120], %467 {strides = array<i32>} : memref<8x2x32xf32, #tpu.memory_space<vmem>>, vector<1x2x32xf32>,
    %cst_121 = arith.constant 0.000000e+00 : f32
    %468 = vector.shape_cast %448 : vector<2x1xi1> to vector<2x1xi1>
    %469 = vector.broadcast %468 : vector<2x1xi1> to vector<2x32xi1>
    %470 = vector.broadcast %cst_121 : f32 to vector<2x32xf32>
    %471 = arith.select %469, %444, %470 : vector<2x32xi1>, vector<2x32xf32>
    %c3_122 = arith.constant 3 : index
    %c0_123 = arith.constant 0 : index
    %c0_124 = arith.constant 0 : index
    %472 = vector.load %arg7[%c3_122, %c0_123, %c0_124] : memref<8x2x32xf32, #tpu.memory_space<vmem>>, vector<1x2x32xf32>
    %473 = vector.shape_cast %472 : vector<1x2x32xf32> to vector<2x32xf32>
    %474 = vector.shape_cast %471 : vector<2x32xf32> to vector<1x2x32xf32>
    tpu.vector_store %arg7[%c3_122, %c0_123, %c0_124], %474 {strides = array<i32>} : memref<8x2x32xf32, #tpu.memory_space<vmem>>, vector<1x2x32xf32>,
    %c8_i32_125 = arith.constant 8 : i32
    %475 = arith.muli %arg0, %c8_i32_125 : i32
    %c5_i32 = arith.constant 5 : i32
    %476 = arith.addi %475, %c5_i32 : i32
    %c7_i32_126 = arith.constant 7 : i32
    %477 = arith.subi %c7_i32_126, %476 : i32
    %478 = arith.truncf %451 : vector<2x32xf32> to vector<2x32xbf16>
    %cst_127 = arith.constant dense<0.000000e+00> : vector<2x128xf32>
    %479 = tpu.matmul %478, %4, %cst_127 {dimension_numbers = #tpu.dot_dimension_numbers<[1], [0], [0], [1], [0, 0, 1, 1], [], []>} : vector<2x32xbf16>, vector<32x128xbf16>, vector<2x128xf32> -> vector<2x128xf32>
    %480 = arith.truncf %457 : vector<2x32xf32> to vector<2x32xbf16>
    %cst_128 = arith.constant dense<0.000000e+00> : vector<2x128xf32>
    %481 = tpu.matmul %480, %5, %cst_128 {dimension_numbers = #tpu.dot_dimension_numbers<[1], [0], [0], [1], [0, 0, 1, 1], [], []>} : vector<2x32xbf16>, vector<32x128xbf16>, vector<2x128xf32> -> vector<2x128xf32>
    %c5_129 = arith.constant 5 : index
    %c0_130 = arith.constant 0 : index
    %c0_131 = arith.constant 0 : index
    %482 = vector.load %arg2[%c5_129, %c0_130, %c0_131] : memref<8x2x128xf32, #tpu.memory_space<vmem>>, vector<1x2x128xf32>
    %483 = vector.shape_cast %482 : vector<1x2x128xf32> to vector<2x128xf32>
    %484 = arith.addf %483, %479 : vector<2x128xf32>
    %c2_132 = arith.constant 2 : index
    %c0_133 = arith.constant 0 : index
    %c0_134 = arith.constant 0 : index
    %485 = vector.load %arg3[%c2_132, %c0_133, %c0_134] : memref<8x2x128xf32, #tpu.memory_space<vmem>>, vector<1x2x128xf32>
    %486 = vector.shape_cast %485 : vector<1x2x128xf32> to vector<2x128xf32>
    %487 = arith.addf %486, %481 : vector<2x128xf32>
    %488 = vector.extract_strided_slice %484 {offsets = [0, 0], sizes = [2, 32], strides = [1, 1]} : vector<2x128xf32> to vector<2x32xf32>
    %489 = arith.negf %488 : vector<2x32xf32>
    %490 = math.exp %489 : vector<2x32xf32>
    %cst_135 = arith.constant 1.000000e+00 : f32
    %491 = vector.broadcast %cst_135 : f32 to vector<2x32xf32>
    %492 = arith.addf %491, %490 : vector<2x32xf32>
    %493 = arith.divf %491, %492 : vector<2x32xf32>
    %494 = vector.extract_strided_slice %484 {offsets = [0, 32], sizes = [2, 32], strides = [1, 1]} : vector<2x128xf32> to vector<2x32xf32>
    %495 = arith.negf %494 : vector<2x32xf32>
    %496 = math.exp %495 : vector<2x32xf32>
    %cst_136 = arith.constant 1.000000e+00 : f32
    %497 = vector.broadcast %cst_136 : f32 to vector<2x32xf32>
    %498 = arith.addf %497, %496 : vector<2x32xf32>
    %499 = arith.divf %497, %498 : vector<2x32xf32>
    %500 = vector.extract_strided_slice %484 {offsets = [0, 64], sizes = [2, 32], strides = [1, 1]} : vector<2x128xf32> to vector<2x32xf32>
    %501 = math.tanh %500 : vector<2x32xf32>
    %502 = vector.extract_strided_slice %484 {offsets = [0, 96], sizes = [2, 32], strides = [1, 1]} : vector<2x128xf32> to vector<2x32xf32>
    %503 = arith.negf %502 : vector<2x32xf32>
    %504 = math.exp %503 : vector<2x32xf32>
    %cst_137 = arith.constant 1.000000e+00 : f32
    %505 = vector.broadcast %cst_137 : f32 to vector<2x32xf32>
    %506 = arith.addf %505, %504 : vector<2x32xf32>
    %507 = arith.divf %505, %506 : vector<2x32xf32>
    %508 = arith.mulf %499, %454 : vector<2x32xf32>
    %509 = arith.mulf %493, %501 : vector<2x32xf32>
    %510 = arith.addf %508, %509 : vector<2x32xf32>
    %511 = math.tanh %510 : vector<2x32xf32>
    %512 = arith.mulf %507, %511 : vector<2x32xf32>
    %513 = vector.extract_strided_slice %487 {offsets = [0, 0], sizes = [2, 32], strides = [1, 1]} : vector<2x128xf32> to vector<2x32xf32>
    %514 = arith.negf %513 : vector<2x32xf32>
    %515 = math.exp %514 : vector<2x32xf32>
    %cst_138 = arith.constant 1.000000e+00 : f32
    %516 = vector.broadcast %cst_138 : f32 to vector<2x32xf32>
    %517 = arith.addf %516, %515 : vector<2x32xf32>
    %518 = arith.divf %516, %517 : vector<2x32xf32>
    %519 = vector.extract_strided_slice %487 {offsets = [0, 32], sizes = [2, 32], strides = [1, 1]} : vector<2x128xf32> to vector<2x32xf32>
    %520 = arith.negf %519 : vector<2x32xf32>
    %521 = math.exp %520 : vector<2x32xf32>
    %cst_139 = arith.constant 1.000000e+00 : f32
    %522 = vector.broadcast %cst_139 : f32 to vector<2x32xf32>
    %523 = arith.addf %522, %521 : vector<2x32xf32>
    %524 = arith.divf %522, %523 : vector<2x32xf32>
    %525 = vector.extract_strided_slice %487 {offsets = [0, 64], sizes = [2, 32], strides = [1, 1]} : vector<2x128xf32> to vector<2x32xf32>
    %526 = math.tanh %525 : vector<2x32xf32>
    %527 = vector.extract_strided_slice %487 {offsets = [0, 96], sizes = [2, 32], strides = [1, 1]} : vector<2x128xf32> to vector<2x32xf32>
    %528 = arith.negf %527 : vector<2x32xf32>
    %529 = math.exp %528 : vector<2x32xf32>
    %cst_140 = arith.constant 1.000000e+00 : f32
    %530 = vector.broadcast %cst_140 : f32 to vector<2x32xf32>
    %531 = arith.addf %530, %529 : vector<2x32xf32>
    %532 = arith.divf %530, %531 : vector<2x32xf32>
    %533 = arith.mulf %524, %460 : vector<2x32xf32>
    %534 = arith.mulf %518, %526 : vector<2x32xf32>
    %535 = arith.addf %533, %534 : vector<2x32xf32>
    %536 = math.tanh %535 : vector<2x32xf32>
    %537 = arith.mulf %532, %536 : vector<2x32xf32>
    %538 = vector.broadcast %476 : i32 to vector<2x1xi32>
    %539 = arith.cmpi slt, %538, %3 : vector<2x1xi32>
    %540 = vector.broadcast %477 : i32 to vector<2x1xi32>
    %541 = arith.cmpi slt, %540, %3 : vector<2x1xi32>
    %542 = vector.shape_cast %539 : vector<2x1xi1> to vector<2x1xi1>
    %543 = vector.broadcast %542 : vector<2x1xi1> to vector<2x32xi1>
    %544 = arith.select %543, %512, %451 : vector<2x32xi1>, vector<2x32xf32>
    %545 = vector.shape_cast %539 : vector<2x1xi1> to vector<2x1xi1>
    %546 = vector.broadcast %545 : vector<2x1xi1> to vector<2x32xi1>
    %547 = arith.select %546, %510, %454 : vector<2x32xi1>, vector<2x32xf32>
    %548 = vector.shape_cast %541 : vector<2x1xi1> to vector<2x1xi1>
    %549 = vector.broadcast %548 : vector<2x1xi1> to vector<2x32xi1>
    %550 = arith.select %549, %537, %457 : vector<2x32xi1>, vector<2x32xf32>
    %551 = vector.shape_cast %541 : vector<2x1xi1> to vector<2x1xi1>
    %552 = vector.broadcast %551 : vector<2x1xi1> to vector<2x32xi1>
    %553 = arith.select %552, %535, %460 : vector<2x32xi1>, vector<2x32xf32>
    %cst_141 = arith.constant 0.000000e+00 : f32
    %554 = vector.shape_cast %539 : vector<2x1xi1> to vector<2x1xi1>
    %555 = vector.broadcast %554 : vector<2x1xi1> to vector<2x32xi1>
    %556 = vector.broadcast %cst_141 : f32 to vector<2x32xf32>
    %557 = arith.select %555, %512, %556 : vector<2x32xi1>, vector<2x32xf32>
    %c5_142 = arith.constant 5 : index
    %c0_143 = arith.constant 0 : index
    %c0_144 = arith.constant 0 : index
    %558 = vector.load %arg6[%c5_142, %c0_143, %c0_144] : memref<8x2x32xf32, #tpu.memory_space<vmem>>, vector<1x2x32xf32>
    %559 = vector.shape_cast %558 : vector<1x2x32xf32> to vector<2x32xf32>
    %560 = vector.shape_cast %557 : vector<2x32xf32> to vector<1x2x32xf32>
    tpu.vector_store %arg6[%c5_142, %c0_143, %c0_144], %560 {strides = array<i32>} : memref<8x2x32xf32, #tpu.memory_space<vmem>>, vector<1x2x32xf32>,
    %cst_145 = arith.constant 0.000000e+00 : f32
    %561 = vector.shape_cast %541 : vector<2x1xi1> to vector<2x1xi1>
    %562 = vector.broadcast %561 : vector<2x1xi1> to vector<2x32xi1>
    %563 = vector.broadcast %cst_145 : f32 to vector<2x32xf32>
    %564 = arith.select %562, %537, %563 : vector<2x32xi1>, vector<2x32xf32>
    %c2_146 = arith.constant 2 : index
    %c0_147 = arith.constant 0 : index
    %c0_148 = arith.constant 0 : index
    %565 = vector.load %arg7[%c2_146, %c0_147, %c0_148] : memref<8x2x32xf32, #tpu.memory_space<vmem>>, vector<1x2x32xf32>
    %566 = vector.shape_cast %565 : vector<1x2x32xf32> to vector<2x32xf32>
    %567 = vector.shape_cast %564 : vector<2x32xf32> to vector<1x2x32xf32>
    tpu.vector_store %arg7[%c2_146, %c0_147, %c0_148], %567 {strides = array<i32>} : memref<8x2x32xf32, #tpu.memory_space<vmem>>, vector<1x2x32xf32>,
    %c8_i32_149 = arith.constant 8 : i32
    %568 = arith.muli %arg0, %c8_i32_149 : i32
    %c6_i32 = arith.constant 6 : i32
    %569 = arith.addi %568, %c6_i32 : i32
    %c7_i32_150 = arith.constant 7 : i32
    %570 = arith.subi %c7_i32_150, %569 : i32
    %571 = arith.truncf %544 : vector<2x32xf32> to vector<2x32xbf16>
    %cst_151 = arith.constant dense<0.000000e+00> : vector<2x128xf32>
    %572 = tpu.matmul %571, %4, %cst_151 {dimension_numbers = #tpu.dot_dimension_numbers<[1], [0], [0], [1], [0, 0, 1, 1], [], []>} : vector<2x32xbf16>, vector<32x128xbf16>, vector<2x128xf32> -> vector<2x128xf32>
    %573 = arith.truncf %550 : vector<2x32xf32> to vector<2x32xbf16>
    %cst_152 = arith.constant dense<0.000000e+00> : vector<2x128xf32>
    %574 = tpu.matmul %573, %5, %cst_152 {dimension_numbers = #tpu.dot_dimension_numbers<[1], [0], [0], [1], [0, 0, 1, 1], [], []>} : vector<2x32xbf16>, vector<32x128xbf16>, vector<2x128xf32> -> vector<2x128xf32>
    %c6_153 = arith.constant 6 : index
    %c0_154 = arith.constant 0 : index
    %c0_155 = arith.constant 0 : index
    %575 = vector.load %arg2[%c6_153, %c0_154, %c0_155] : memref<8x2x128xf32, #tpu.memory_space<vmem>>, vector<1x2x128xf32>
    %576 = vector.shape_cast %575 : vector<1x2x128xf32> to vector<2x128xf32>
    %577 = arith.addf %576, %572 : vector<2x128xf32>
    %c1_156 = arith.constant 1 : index
    %c0_157 = arith.constant 0 : index
    %c0_158 = arith.constant 0 : index
    %578 = vector.load %arg3[%c1_156, %c0_157, %c0_158] : memref<8x2x128xf32, #tpu.memory_space<vmem>>, vector<1x2x128xf32>
    %579 = vector.shape_cast %578 : vector<1x2x128xf32> to vector<2x128xf32>
    %580 = arith.addf %579, %574 : vector<2x128xf32>
    %581 = vector.extract_strided_slice %577 {offsets = [0, 0], sizes = [2, 32], strides = [1, 1]} : vector<2x128xf32> to vector<2x32xf32>
    %582 = arith.negf %581 : vector<2x32xf32>
    %583 = math.exp %582 : vector<2x32xf32>
    %cst_159 = arith.constant 1.000000e+00 : f32
    %584 = vector.broadcast %cst_159 : f32 to vector<2x32xf32>
    %585 = arith.addf %584, %583 : vector<2x32xf32>
    %586 = arith.divf %584, %585 : vector<2x32xf32>
    %587 = vector.extract_strided_slice %577 {offsets = [0, 32], sizes = [2, 32], strides = [1, 1]} : vector<2x128xf32> to vector<2x32xf32>
    %588 = arith.negf %587 : vector<2x32xf32>
    %589 = math.exp %588 : vector<2x32xf32>
    %cst_160 = arith.constant 1.000000e+00 : f32
    %590 = vector.broadcast %cst_160 : f32 to vector<2x32xf32>
    %591 = arith.addf %590, %589 : vector<2x32xf32>
    %592 = arith.divf %590, %591 : vector<2x32xf32>
    %593 = vector.extract_strided_slice %577 {offsets = [0, 64], sizes = [2, 32], strides = [1, 1]} : vector<2x128xf32> to vector<2x32xf32>
    %594 = math.tanh %593 : vector<2x32xf32>
    %595 = vector.extract_strided_slice %577 {offsets = [0, 96], sizes = [2, 32], strides = [1, 1]} : vector<2x128xf32> to vector<2x32xf32>
    %596 = arith.negf %595 : vector<2x32xf32>
    %597 = math.exp %596 : vector<2x32xf32>
    %cst_161 = arith.constant 1.000000e+00 : f32
    %598 = vector.broadcast %cst_161 : f32 to vector<2x32xf32>
    %599 = arith.addf %598, %597 : vector<2x32xf32>
    %600 = arith.divf %598, %599 : vector<2x32xf32>
    %601 = arith.mulf %592, %547 : vector<2x32xf32>
    %602 = arith.mulf %586, %594 : vector<2x32xf32>
    %603 = arith.addf %601, %602 : vector<2x32xf32>
    %604 = math.tanh %603 : vector<2x32xf32>
    %605 = arith.mulf %600, %604 : vector<2x32xf32>
    %606 = vector.extract_strided_slice %580 {offsets = [0, 0], sizes = [2, 32], strides = [1, 1]} : vector<2x128xf32> to vector<2x32xf32>
    %607 = arith.negf %606 : vector<2x32xf32>
    %608 = math.exp %607 : vector<2x32xf32>
    %cst_162 = arith.constant 1.000000e+00 : f32
    %609 = vector.broadcast %cst_162 : f32 to vector<2x32xf32>
    %610 = arith.addf %609, %608 : vector<2x32xf32>
    %611 = arith.divf %609, %610 : vector<2x32xf32>
    %612 = vector.extract_strided_slice %580 {offsets = [0, 32], sizes = [2, 32], strides = [1, 1]} : vector<2x128xf32> to vector<2x32xf32>
    %613 = arith.negf %612 : vector<2x32xf32>
    %614 = math.exp %613 : vector<2x32xf32>
    %cst_163 = arith.constant 1.000000e+00 : f32
    %615 = vector.broadcast %cst_163 : f32 to vector<2x32xf32>
    %616 = arith.addf %615, %614 : vector<2x32xf32>
    %617 = arith.divf %615, %616 : vector<2x32xf32>
    %618 = vector.extract_strided_slice %580 {offsets = [0, 64], sizes = [2, 32], strides = [1, 1]} : vector<2x128xf32> to vector<2x32xf32>
    %619 = math.tanh %618 : vector<2x32xf32>
    %620 = vector.extract_strided_slice %580 {offsets = [0, 96], sizes = [2, 32], strides = [1, 1]} : vector<2x128xf32> to vector<2x32xf32>
    %621 = arith.negf %620 : vector<2x32xf32>
    %622 = math.exp %621 : vector<2x32xf32>
    %cst_164 = arith.constant 1.000000e+00 : f32
    %623 = vector.broadcast %cst_164 : f32 to vector<2x32xf32>
    %624 = arith.addf %623, %622 : vector<2x32xf32>
    %625 = arith.divf %623, %624 : vector<2x32xf32>
    %626 = arith.mulf %617, %553 : vector<2x32xf32>
    %627 = arith.mulf %611, %619 : vector<2x32xf32>
    %628 = arith.addf %626, %627 : vector<2x32xf32>
    %629 = math.tanh %628 : vector<2x32xf32>
    %630 = arith.mulf %625, %629 : vector<2x32xf32>
    %631 = vector.broadcast %569 : i32 to vector<2x1xi32>
    %632 = arith.cmpi slt, %631, %3 : vector<2x1xi32>
    %633 = vector.broadcast %570 : i32 to vector<2x1xi32>
    %634 = arith.cmpi slt, %633, %3 : vector<2x1xi32>
    %635 = vector.shape_cast %632 : vector<2x1xi1> to vector<2x1xi1>
    %636 = vector.broadcast %635 : vector<2x1xi1> to vector<2x32xi1>
    %637 = arith.select %636, %605, %544 : vector<2x32xi1>, vector<2x32xf32>
    %638 = vector.shape_cast %632 : vector<2x1xi1> to vector<2x1xi1>
    %639 = vector.broadcast %638 : vector<2x1xi1> to vector<2x32xi1>
    %640 = arith.select %639, %603, %547 : vector<2x32xi1>, vector<2x32xf32>
    %641 = vector.shape_cast %634 : vector<2x1xi1> to vector<2x1xi1>
    %642 = vector.broadcast %641 : vector<2x1xi1> to vector<2x32xi1>
    %643 = arith.select %642, %630, %550 : vector<2x32xi1>, vector<2x32xf32>
    %644 = vector.shape_cast %634 : vector<2x1xi1> to vector<2x1xi1>
    %645 = vector.broadcast %644 : vector<2x1xi1> to vector<2x32xi1>
    %646 = arith.select %645, %628, %553 : vector<2x32xi1>, vector<2x32xf32>
    %cst_165 = arith.constant 0.000000e+00 : f32
    %647 = vector.shape_cast %632 : vector<2x1xi1> to vector<2x1xi1>
    %648 = vector.broadcast %647 : vector<2x1xi1> to vector<2x32xi1>
    %649 = vector.broadcast %cst_165 : f32 to vector<2x32xf32>
    %650 = arith.select %648, %605, %649 : vector<2x32xi1>, vector<2x32xf32>
    %c6_166 = arith.constant 6 : index
    %c0_167 = arith.constant 0 : index
    %c0_168 = arith.constant 0 : index
    %651 = vector.load %arg6[%c6_166, %c0_167, %c0_168] : memref<8x2x32xf32, #tpu.memory_space<vmem>>, vector<1x2x32xf32>
    %652 = vector.shape_cast %651 : vector<1x2x32xf32> to vector<2x32xf32>
    %653 = vector.shape_cast %650 : vector<2x32xf32> to vector<1x2x32xf32>
    tpu.vector_store %arg6[%c6_166, %c0_167, %c0_168], %653 {strides = array<i32>} : memref<8x2x32xf32, #tpu.memory_space<vmem>>, vector<1x2x32xf32>,
    %cst_169 = arith.constant 0.000000e+00 : f32
    %654 = vector.shape_cast %634 : vector<2x1xi1> to vector<2x1xi1>
    %655 = vector.broadcast %654 : vector<2x1xi1> to vector<2x32xi1>
    %656 = vector.broadcast %cst_169 : f32 to vector<2x32xf32>
    %657 = arith.select %655, %630, %656 : vector<2x32xi1>, vector<2x32xf32>
    %c1_170 = arith.constant 1 : index
    %c0_171 = arith.constant 0 : index
    %c0_172 = arith.constant 0 : index
    %658 = vector.load %arg7[%c1_170, %c0_171, %c0_172] : memref<8x2x32xf32, #tpu.memory_space<vmem>>, vector<1x2x32xf32>
    %659 = vector.shape_cast %658 : vector<1x2x32xf32> to vector<2x32xf32>
    %660 = vector.shape_cast %657 : vector<2x32xf32> to vector<1x2x32xf32>
    tpu.vector_store %arg7[%c1_170, %c0_171, %c0_172], %660 {strides = array<i32>} : memref<8x2x32xf32, #tpu.memory_space<vmem>>, vector<1x2x32xf32>,
    %c8_i32_173 = arith.constant 8 : i32
    %661 = arith.muli %arg0, %c8_i32_173 : i32
    %c7_i32_174 = arith.constant 7 : i32
    %662 = arith.addi %661, %c7_i32_174 : i32
    %c7_i32_175 = arith.constant 7 : i32
    %663 = arith.subi %c7_i32_175, %662 : i32
    %664 = arith.truncf %637 : vector<2x32xf32> to vector<2x32xbf16>
    %cst_176 = arith.constant dense<0.000000e+00> : vector<2x128xf32>
    %665 = tpu.matmul %664, %4, %cst_176 {dimension_numbers = #tpu.dot_dimension_numbers<[1], [0], [0], [1], [0, 0, 1, 1], [], []>} : vector<2x32xbf16>, vector<32x128xbf16>, vector<2x128xf32> -> vector<2x128xf32>
    %666 = arith.truncf %643 : vector<2x32xf32> to vector<2x32xbf16>
    %cst_177 = arith.constant dense<0.000000e+00> : vector<2x128xf32>
    %667 = tpu.matmul %666, %5, %cst_177 {dimension_numbers = #tpu.dot_dimension_numbers<[1], [0], [0], [1], [0, 0, 1, 1], [], []>} : vector<2x32xbf16>, vector<32x128xbf16>, vector<2x128xf32> -> vector<2x128xf32>
    %c7_178 = arith.constant 7 : index
    %c0_179 = arith.constant 0 : index
    %c0_180 = arith.constant 0 : index
    %668 = vector.load %arg2[%c7_178, %c0_179, %c0_180] : memref<8x2x128xf32, #tpu.memory_space<vmem>>, vector<1x2x128xf32>
    %669 = vector.shape_cast %668 : vector<1x2x128xf32> to vector<2x128xf32>
    %670 = arith.addf %669, %665 : vector<2x128xf32>
    %c0_181 = arith.constant 0 : index
    %c0_182 = arith.constant 0 : index
    %c0_183 = arith.constant 0 : index
    %671 = vector.load %arg3[%c0_181, %c0_182, %c0_183] : memref<8x2x128xf32, #tpu.memory_space<vmem>>, vector<1x2x128xf32>
    %672 = vector.shape_cast %671 : vector<1x2x128xf32> to vector<2x128xf32>
    %673 = arith.addf %672, %667 : vector<2x128xf32>
    %674 = vector.extract_strided_slice %670 {offsets = [0, 0], sizes = [2, 32], strides = [1, 1]} : vector<2x128xf32> to vector<2x32xf32>
    %675 = arith.negf %674 : vector<2x32xf32>
    %676 = math.exp %675 : vector<2x32xf32>
    %cst_184 = arith.constant 1.000000e+00 : f32
    %677 = vector.broadcast %cst_184 : f32 to vector<2x32xf32>
    %678 = arith.addf %677, %676 : vector<2x32xf32>
    %679 = arith.divf %677, %678 : vector<2x32xf32>
    %680 = vector.extract_strided_slice %670 {offsets = [0, 32], sizes = [2, 32], strides = [1, 1]} : vector<2x128xf32> to vector<2x32xf32>
    %681 = arith.negf %680 : vector<2x32xf32>
    %682 = math.exp %681 : vector<2x32xf32>
    %cst_185 = arith.constant 1.000000e+00 : f32
    %683 = vector.broadcast %cst_185 : f32 to vector<2x32xf32>
    %684 = arith.addf %683, %682 : vector<2x32xf32>
    %685 = arith.divf %683, %684 : vector<2x32xf32>
    %686 = vector.extract_strided_slice %670 {offsets = [0, 64], sizes = [2, 32], strides = [1, 1]} : vector<2x128xf32> to vector<2x32xf32>
    %687 = math.tanh %686 : vector<2x32xf32>
    %688 = vector.extract_strided_slice %670 {offsets = [0, 96], sizes = [2, 32], strides = [1, 1]} : vector<2x128xf32> to vector<2x32xf32>
    %689 = arith.negf %688 : vector<2x32xf32>
    %690 = math.exp %689 : vector<2x32xf32>
    %cst_186 = arith.constant 1.000000e+00 : f32
    %691 = vector.broadcast %cst_186 : f32 to vector<2x32xf32>
    %692 = arith.addf %691, %690 : vector<2x32xf32>
    %693 = arith.divf %691, %692 : vector<2x32xf32>
    %694 = arith.mulf %685, %640 : vector<2x32xf32>
    %695 = arith.mulf %679, %687 : vector<2x32xf32>
    %696 = arith.addf %694, %695 : vector<2x32xf32>
    %697 = math.tanh %696 : vector<2x32xf32>
    %698 = arith.mulf %693, %697 : vector<2x32xf32>
    %699 = vector.extract_strided_slice %673 {offsets = [0, 0], sizes = [2, 32], strides = [1, 1]} : vector<2x128xf32> to vector<2x32xf32>
    %700 = arith.negf %699 : vector<2x32xf32>
    %701 = math.exp %700 : vector<2x32xf32>
    %cst_187 = arith.constant 1.000000e+00 : f32
    %702 = vector.broadcast %cst_187 : f32 to vector<2x32xf32>
    %703 = arith.addf %702, %701 : vector<2x32xf32>
    %704 = arith.divf %702, %703 : vector<2x32xf32>
    %705 = vector.extract_strided_slice %673 {offsets = [0, 32], sizes = [2, 32], strides = [1, 1]} : vector<2x128xf32> to vector<2x32xf32>
    %706 = arith.negf %705 : vector<2x32xf32>
    %707 = math.exp %706 : vector<2x32xf32>
    %cst_188 = arith.constant 1.000000e+00 : f32
    %708 = vector.broadcast %cst_188 : f32 to vector<2x32xf32>
    %709 = arith.addf %708, %707 : vector<2x32xf32>
    %710 = arith.divf %708, %709 : vector<2x32xf32>
    %711 = vector.extract_strided_slice %673 {offsets = [0, 64], sizes = [2, 32], strides = [1, 1]} : vector<2x128xf32> to vector<2x32xf32>
    %712 = math.tanh %711 : vector<2x32xf32>
    %713 = vector.extract_strided_slice %673 {offsets = [0, 96], sizes = [2, 32], strides = [1, 1]} : vector<2x128xf32> to vector<2x32xf32>
    %714 = arith.negf %713 : vector<2x32xf32>
    %715 = math.exp %714 : vector<2x32xf32>
    %cst_189 = arith.constant 1.000000e+00 : f32
    %716 = vector.broadcast %cst_189 : f32 to vector<2x32xf32>
    %717 = arith.addf %716, %715 : vector<2x32xf32>
    %718 = arith.divf %716, %717 : vector<2x32xf32>
    %719 = arith.mulf %710, %646 : vector<2x32xf32>
    %720 = arith.mulf %704, %712 : vector<2x32xf32>
    %721 = arith.addf %719, %720 : vector<2x32xf32>
    %722 = math.tanh %721 : vector<2x32xf32>
    %723 = arith.mulf %718, %722 : vector<2x32xf32>
    %724 = vector.broadcast %662 : i32 to vector<2x1xi32>
    %725 = arith.cmpi slt, %724, %3 : vector<2x1xi32>
    %726 = vector.broadcast %663 : i32 to vector<2x1xi32>
    %727 = arith.cmpi slt, %726, %3 : vector<2x1xi32>
    %728 = vector.shape_cast %725 : vector<2x1xi1> to vector<2x1xi1>
    %729 = vector.broadcast %728 : vector<2x1xi1> to vector<2x32xi1>
    %730 = arith.select %729, %698, %637 : vector<2x32xi1>, vector<2x32xf32>
    %731 = vector.shape_cast %725 : vector<2x1xi1> to vector<2x1xi1>
    %732 = vector.broadcast %731 : vector<2x1xi1> to vector<2x32xi1>
    %733 = arith.select %732, %696, %640 : vector<2x32xi1>, vector<2x32xf32>
    %734 = vector.shape_cast %727 : vector<2x1xi1> to vector<2x1xi1>
    %735 = vector.broadcast %734 : vector<2x1xi1> to vector<2x32xi1>
    %736 = arith.select %735, %723, %643 : vector<2x32xi1>, vector<2x32xf32>
    %737 = vector.shape_cast %727 : vector<2x1xi1> to vector<2x1xi1>
    %738 = vector.broadcast %737 : vector<2x1xi1> to vector<2x32xi1>
    %739 = arith.select %738, %721, %646 : vector<2x32xi1>, vector<2x32xf32>
    %cst_190 = arith.constant 0.000000e+00 : f32
    %740 = vector.shape_cast %725 : vector<2x1xi1> to vector<2x1xi1>
    %741 = vector.broadcast %740 : vector<2x1xi1> to vector<2x32xi1>
    %742 = vector.broadcast %cst_190 : f32 to vector<2x32xf32>
    %743 = arith.select %741, %698, %742 : vector<2x32xi1>, vector<2x32xf32>
    %c7_191 = arith.constant 7 : index
    %c0_192 = arith.constant 0 : index
    %c0_193 = arith.constant 0 : index
    %744 = vector.load %arg6[%c7_191, %c0_192, %c0_193] : memref<8x2x32xf32, #tpu.memory_space<vmem>>, vector<1x2x32xf32>
    %745 = vector.shape_cast %744 : vector<1x2x32xf32> to vector<2x32xf32>
    %746 = vector.shape_cast %743 : vector<2x32xf32> to vector<1x2x32xf32>
    tpu.vector_store %arg6[%c7_191, %c0_192, %c0_193], %746 {strides = array<i32>} : memref<8x2x32xf32, #tpu.memory_space<vmem>>, vector<1x2x32xf32>,
    %cst_194 = arith.constant 0.000000e+00 : f32
    %747 = vector.shape_cast %727 : vector<2x1xi1> to vector<2x1xi1>
    %748 = vector.broadcast %747 : vector<2x1xi1> to vector<2x32xi1>
    %749 = vector.broadcast %cst_194 : f32 to vector<2x32xf32>
    %750 = arith.select %748, %723, %749 : vector<2x32xi1>, vector<2x32xf32>
    %c0_195 = arith.constant 0 : index
    %c0_196 = arith.constant 0 : index
    %c0_197 = arith.constant 0 : index
    %751 = vector.load %arg7[%c0_195, %c0_196, %c0_197] : memref<8x2x32xf32, #tpu.memory_space<vmem>>, vector<1x2x32xf32>
    %752 = vector.shape_cast %751 : vector<1x2x32xf32> to vector<2x32xf32>
    %753 = vector.shape_cast %750 : vector<2x32xf32> to vector<1x2x32xf32>
    tpu.vector_store %arg7[%c0_195, %c0_196, %c0_197], %753 {strides = array<i32>} : memref<8x2x32xf32, #tpu.memory_space<vmem>>, vector<1x2x32xf32>,
    %c0_198 = arith.constant 0 : index
    %c0_199 = arith.constant 0 : index
    %754 = vector.load %arg8[%c0_198, %c0_199] : memref<2x32xf32, #tpu.memory_space<vmem>>, vector<2x32xf32>
    tpu.vector_store %arg8[%c0_198, %c0_199], %730 {strides = array<i32>} : memref<2x32xf32, #tpu.memory_space<vmem>>, vector<2x32xf32>,
    %c0_200 = arith.constant 0 : index
    %c0_201 = arith.constant 0 : index
    %755 = vector.load %arg9[%c0_200, %c0_201] : memref<2x32xf32, #tpu.memory_space<vmem>>, vector<2x32xf32>
    tpu.vector_store %arg9[%c0_200, %c0_201], %733 {strides = array<i32>} : memref<2x32xf32, #tpu.memory_space<vmem>>, vector<2x32xf32>,
    %c0_202 = arith.constant 0 : index
    %c0_203 = arith.constant 0 : index
    %756 = vector.load %arg10[%c0_202, %c0_203] : memref<2x32xf32, #tpu.memory_space<vmem>>, vector<2x32xf32>
    tpu.vector_store %arg10[%c0_202, %c0_203], %736 {strides = array<i32>} : memref<2x32xf32, #tpu.memory_space<vmem>>, vector<2x32xf32>,
    %c0_204 = arith.constant 0 : index
    %c0_205 = arith.constant 0 : index
    %757 = vector.load %arg11[%c0_204, %c0_205] : memref<2x32xf32, #tpu.memory_space<vmem>>, vector<2x32xf32>
    tpu.vector_store %arg11[%c0_204, %c0_205], %739 {strides = array<i32>} : memref<2x32xf32, #tpu.memory_space<vmem>>, vector<2x32xf32>,
    return
  }
  func.func @transform_0(%arg0: i32) -> (i32, i32) {
    %c0_i32 = arith.constant 0 : i32
    %c0_i32_0 = arith.constant 0 : i32
    %c0_i32_1 = arith.constant 0 : i32
    return %c0_i32, %c0_i32_0 : i32, i32
  }
  func.func @transform_1(%arg0: i32) -> (i32, i32, i32) {
    %c0_i32 = arith.constant 0 : i32
    %c0_i32_0 = arith.constant 0 : i32
    %c0_i32_1 = arith.constant 0 : i32
    return %arg0, %c0_i32, %c0_i32_0 : i32, i32, i32
  }
  func.func @transform_2(%arg0: i32) -> (i32, i32, i32) {
    %c0_i32 = arith.constant 0 : i32
    %0 = arith.subi %c0_i32, %arg0 : i32
    %c0_i32_0 = arith.constant 0 : i32
    %c1_i32 = arith.constant 1 : i32
    %c0_i32_1 = arith.constant 0 : i32
    return %0, %c0_i32_0, %c1_i32 : i32, i32, i32
  }
  func.func @transform_3(%arg0: i32) -> (i32, i32) {
    %c0_i32 = arith.constant 0 : i32
    %c0_i32_0 = arith.constant 0 : i32
    %c0_i32_1 = arith.constant 0 : i32
    return %c0_i32, %c0_i32_0 : i32, i32
  }
  func.func @transform_4(%arg0: i32) -> (i32, i32) {
    %c0_i32 = arith.constant 0 : i32
    %c0_i32_0 = arith.constant 0 : i32
    %c0_i32_1 = arith.constant 0 : i32
    return %c0_i32, %c0_i32_0 : i32, i32
  }
  func.func @transform_5(%arg0: i32) -> (i32, i32, i32) {
    %c0_i32 = arith.constant 0 : i32
    %c0_i32_0 = arith.constant 0 : i32
    %c0_i32_1 = arith.constant 0 : i32
    return %arg0, %c0_i32, %c0_i32_0 : i32, i32, i32
  }
  func.func @transform_6(%arg0: i32) -> (i32, i32, i32) {
    %c0_i32 = arith.constant 0 : i32
    %0 = arith.subi %c0_i32, %arg0 : i32
    %c0_i32_0 = arith.constant 0 : i32
    %c0_i32_1 = arith.constant 0 : i32
    %c0_i32_2 = arith.constant 0 : i32
    return %0, %c0_i32_0, %c0_i32_1 : i32, i32, i32
  }
}

</mosaic_0001>

<llo_original>
// kernel: _rnn_core.2
$region0: #{_rnn_core.2}
  #allocation0 [shape = 'u32[]', space=smem, size = 0x4, offset = 0x4, fixed_abs, tag = 'smem constant byte address 0x4 - core index']
  #allocation1 [shape = 'u32[144,128]{1,0:T(1,128)}', space=vmem, size = 0x12000, scoped, tag = 'internal scratch']
  #allocation2 [shape = 'f32[2,32]{1,0:T(2,128)}', space=vmem, size = 0x400, scoped, tag = 'scratch operand']
  #allocation3 [shape = 'f32[2,32]{1,0:T(2,128)}', space=vmem, size = 0x400, scoped, tag = 'scratch operand']
  #allocation4 [shape = 'f32[2,32]{1,0:T(2,128)}', space=vmem, size = 0x400, scoped, tag = 'scratch operand']
  #allocation5 [shape = 'f32[2,32]{1,0:T(2,128)}', space=vmem, size = 0x400, scoped, tag = 'scratch operand']
  %s0 = inlined_call_operand.vmem [shape: s32[2,1], index: 0, kind: input, shape index: {}]
  %s1 = inlined_call_operand.vmem [shape: f32[8,2,256], index: 1, kind: input, shape index: {}, may-alias: {1,2}]
  %s2 = inlined_call_operand.vmem [shape: f32[8,2,256], index: 2, kind: input, shape index: {}, may-alias: {1,2}]
  %s3 = inlined_call_operand.vmem [shape: bf16[32,128], index: 3, kind: input, shape index: {}]
  %s4 = inlined_call_operand.vmem [shape: bf16[32,128], index: 4, kind: input, shape index: {}]
  %s5 = inlined_call_operand.vmem [shape: f32[8,2,32], index: 5, kind: output, shape index: {0}]
  %s6 = inlined_call_operand.vmem [shape: f32[8,2,32], index: 6, kind: output, shape index: {1}]
  %7 = xla_tuple %s5, %s6
  %s8 = sld [smem:[#allocation0]]
  $region124: #{_rnn_core.2} parent=0
    _
  %s10 = ssub.s32 1, %s8
  %s11 = scalar_select 0, %s10, %s8
  $region1: #{_rnn_core.2} parent=0
    #allocation6 [shape = 'u8[8192]{0}', space=vmem, size = 0x2000, scoped, tag = 'input window, operand 1, single buffered']
    #allocation7 [shape = 'u8[8192]{0}', space=vmem, size = 0x2000, scoped, tag = 'input window, operand 2, single buffered']
    // Predicated region
    $region2: #{_rnn_core.2} parent=1 // pred_check
      _
    $region3: #{_rnn_core.2} parent=1 // pred_check_branch
      %13 = sbr.rel (0) target = $region5
    $region4: #{_rnn_core.2} parent=1 // pred_region
      _
    $region5: #{_rnn_core.2} parent=1 // pred_fallthru
      _
    // Predicated region
    $region6: #{_rnn_core.2} parent=1 // pred_check
      _
    $region7: #{_rnn_core.2} parent=1 // pred_check_branch
      %15 = sbr.rel (0) target = $region9
    $region8: #{_rnn_core.2} parent=1 // pred_region
      // Predicated region
      $region10: #{_rnn_core.2} parent=8 // pred_check
        _
      $region11: #{_rnn_core.2} parent=8 // pred_check_branch
        %17 = sbr.rel (0) target = $region13
      $region12: #{_rnn_core.2} parent=8 // pred_region
        // Predicated region
        $region14: #{_rnn_core.2} parent=12 // pred_check
          _
        $region15: #{_rnn_core.2} parent=12 // pred_check_branch
          %19 = sbr.rel target = $region17
        $region16: #{_rnn_core.2} parent=12 // pred_region
          // Predicated region
          $region29: #{_rnn_core.2} parent=16 // pred_check
            _
          $region30: #{_rnn_core.2} parent=16 // pred_check_branch
            %48 = sbr.rel (0) target = $region32
          $region31: #{_rnn_core.2} parent=16 // pred_region
            loop: start=0, step=1, limit=1
            $region33: #{_rnn_core.2} parent=31 // loop_pre_header
              _
            $region34: #{_rnn_core.2} parent=31 // loop_header
              %s50 = sphi 0, %s54
              %p51 = scmp.ge.s32.totalorder %s50, 1
              %s55 = sphi %s1, %s1
              %s56 = sphi [#allocation6], [#allocation6]
            $region35: #{_rnn_core.2} parent=31 // loop_header_branch
              %53 = sbr.rel (%p51) target = $region39
            $region36: #{_rnn_core.2} parent=31 // loop_body
              _
            $region37: #{_rnn_core.2} parent=31 // loop_footer
              %s54 = sadd.s32 1, %s50
            $region38: #{_rnn_core.2} parent=31 // loop_footer_branch
              %49 = sbr.rel target = $region34
            $region39: #{_rnn_core.2} parent=31 // loop_exit
              _
            loop: start=0, step=1, limit=1
            $region40: #{_rnn_core.2} parent=31 // loop_pre_header
              _
            $region41: #{_rnn_core.2} parent=31 // loop_header
              %s59 = sphi 0, %s63
              %p60 = scmp.ge.s32.totalorder %s59, 1
              %s64 = sphi %s1, %s1
              %s65 = sphi [#allocation6], [#allocation6]
            $region42: #{_rnn_core.2} parent=31 // loop_header_branch
              %62 = sbr.rel (%p60) target = $region46
            $region43: #{_rnn_core.2} parent=31 // loop_body
              %v66 = vld [vmem:[%s64] sm:$0x3]
              %67 = vst [vmem:[%s65] sm:$0x3] %v66
              %v68 = vld [vmem:[%s64 + $0x4] sm:$0x3]
              %69 = vst [vmem:[%s65 + $0x2] sm:$0x3] %v68
              %v70 = vld [vmem:[%s64 + $0x8] sm:$0x3]
              %71 = vst [vmem:[%s65 + $0x4] sm:$0x3] %v70
              %v72 = vld [vmem:[%s64 + $0xc] sm:$0x3]
              %73 = vst [vmem:[%s65 + $0x6] sm:$0x3] %v72
              %v74 = vld [vmem:[%s64 + $0x10] sm:$0x3]
              %75 = vst [vmem:[%s65 + $0x8] sm:$0x3] %v74
              %v76 = vld [vmem:[%s64 + $0x14] sm:$0x3]
              %77 = vst [vmem:[%s65 + $0xa] sm:$0x3] %v76
              %v78 = vld [vmem:[%s64 + $0x18] sm:$0x3]
              %79 = vst [vmem:[%s65 + $0xc] sm:$0x3] %v78
              %v80 = vld [vmem:[%s64 + $0x1c] sm:$0x3]
              %81 = vst [vmem:[%s65 + $0xe] sm:$0x3] %v80
            $region44: #{_rnn_core.2} parent=31 // loop_footer
              %s63 = sadd.s32 1, %s59
            $region45: #{_rnn_core.2} parent=31 // loop_footer_branch
              %58 = sbr.rel target = $region41
            $region46: #{_rnn_core.2} parent=31 // loop_exit
              _
          $region32: #{_rnn_core.2} parent=16 // pred_fallthru
            _
        $region17: #{_rnn_core.2} parent=12 // pred_fallthru
          _
        // Predicated region
        $region18: #{_rnn_core.2} parent=12 // pred_check
          _
        $region19: #{_rnn_core.2} parent=12 // pred_check_branch
          %21 = sbr.rel (0) target = $region21
        $region20: #{_rnn_core.2} parent=12 // pred_region
          loop: start=0, step=1, limit=1
          $region22: #{_rnn_core.2} parent=20 // loop_pre_header
            _
          $region23: #{_rnn_core.2} parent=20 // loop_header
            %s24 = sphi 0, %s28
            %p25 = scmp.ge.s32.totalorder %s24, 1
            %s29 = sphi %s1, %s1
            %s30 = sphi [#allocation6], [#allocation6]
          $region24: #{_rnn_core.2} parent=20 // loop_header_branch
            %27 = sbr.rel (%p25) target = $region28
          $region25: #{_rnn_core.2} parent=20 // loop_body
            %v31 = vld [vmem:[%s29] sm:$0x3]
            %32 = vst [vmem:[%s30] sm:$0x3] %v31
            %v33 = vld [vmem:[%s29 + $0x4] sm:$0x3]
            %34 = vst [vmem:[%s30 + $0x2] sm:$0x3] %v33
            %v35 = vld [vmem:[%s29 + $0x8] sm:$0x3]
            %36 = vst [vmem:[%s30 + $0x4] sm:$0x3] %v35
            %v37 = vld [vmem:[%s29 + $0xc] sm:$0x3]
            %38 = vst [vmem:[%s30 + $0x6] sm:$0x3] %v37
            %v39 = vld [vmem:[%s29 + $0x10] sm:$0x3]
            %40 = vst [vmem:[%s30 + $0x8] sm:$0x3] %v39
            %v41 = vld [vmem:[%s29 + $0x14] sm:$0x3]
            %42 = vst [vmem:[%s30 + $0xa] sm:$0x3] %v41
            %v43 = vld [vmem:[%s29 + $0x18] sm:$0x3]
            %44 = vst [vmem:[%s30 + $0xc] sm:$0x3] %v43
            %v45 = vld [vmem:[%s29 + $0x1c] sm:$0x3]
            %46 = vst [vmem:[%s30 + $0xe] sm:$0x3] %v45
          $region26: #{_rnn_core.2} parent=20 // loop_footer
            %s28 = sadd.s32 1, %s24
          $region27: #{_rnn_core.2} parent=20 // loop_footer_branch
            %23 = sbr.rel target = $region23
          $region28: #{_rnn_core.2} parent=20 // loop_exit
            _
        $region21: #{_rnn_core.2} parent=12 // pred_fallthru
          _
      $region13: #{_rnn_core.2} parent=8 // pred_fallthru
        _
      %82 = vnop
    $region9: #{_rnn_core.2} parent=1 // pred_fallthru
      _
    // Predicated region
    $region47: #{_rnn_core.2} parent=1 // pred_check
      _
    $region48: #{_rnn_core.2} parent=1 // pred_check_branch
      %84 = sbr.rel (0) target = $region50
    $region49: #{_rnn_core.2} parent=1 // pred_region
      %s85 = ssub.s32 0, 0
      %s86 = smul.u32 8, %s85
      %s87 = smul.addr %s86, 2
      %s88 = sadd.s32 1, %s87
      %s89 = smul.addr %s88, 2
      %s90 = scalar_lea.vmem %s2, %s89
      // Predicated region
      $region51: #{_rnn_core.2} parent=49 // pred_check
        _
      $region52: #{_rnn_core.2} parent=49 // pred_check_branch
        %92 = sbr.rel (0) target = $region54
      $region53: #{_rnn_core.2} parent=49 // pred_region
        // Predicated region
        $region55: #{_rnn_core.2} parent=53 // pred_check
          _
        $region56: #{_rnn_core.2} parent=53 // pred_check_branch
          %94 = sbr.rel target = $region58
        $region57: #{_rnn_core.2} parent=53 // pred_region
          // Predicated region
          $region70: #{_rnn_core.2} parent=57 // pred_check
            _
          $region71: #{_rnn_core.2} parent=57 // pred_check_branch
            %123 = sbr.rel (0) target = $region73
          $region72: #{_rnn_core.2} parent=57 // pred_region
            loop: start=0, step=1, limit=1
            $region74: #{_rnn_core.2} parent=72 // loop_pre_header
              _
            $region75: #{_rnn_core.2} parent=72 // loop_header
              %s125 = sphi 0, %s129
              %p126 = scmp.ge.s32.totalorder %s125, 1
              %s130 = sphi %s90, %s90
              %s131 = sphi [#allocation7], [#allocation7]
            $region76: #{_rnn_core.2} parent=72 // loop_header_branch
              %128 = sbr.rel (%p126) target = $region80
            $region77: #{_rnn_core.2} parent=72 // loop_body
              _
            $region78: #{_rnn_core.2} parent=72 // loop_footer
              %s129 = sadd.s32 1, %s125
            $region79: #{_rnn_core.2} parent=72 // loop_footer_branch
              %124 = sbr.rel target = $region75
            $region80: #{_rnn_core.2} parent=72 // loop_exit
              _
            loop: start=0, step=1, limit=1
            $region81: #{_rnn_core.2} parent=72 // loop_pre_header
              _
            $region82: #{_rnn_core.2} parent=72 // loop_header
              %s134 = sphi 0, %s138
              %p135 = scmp.ge.s32.totalorder %s134, 1
              %s139 = sphi %s90, %s90
              %s140 = sphi [#allocation7], [#allocation7]
            $region83: #{_rnn_core.2} parent=72 // loop_header_branch
              %137 = sbr.rel (%p135) target = $region87
            $region84: #{_rnn_core.2} parent=72 // loop_body
              %v141 = vld [vmem:[%s139] sm:$0x3]
              %142 = vst [vmem:[%s140] sm:$0x3] %v141
              %v143 = vld [vmem:[%s139 + $0x4] sm:$0x3]
              %144 = vst [vmem:[%s140 + $0x2] sm:$0x3] %v143
              %v145 = vld [vmem:[%s139 + $0x8] sm:$0x3]
              %146 = vst [vmem:[%s140 + $0x4] sm:$0x3] %v145
              %v147 = vld [vmem:[%s139 + $0xc] sm:$0x3]
              %148 = vst [vmem:[%s140 + $0x6] sm:$0x3] %v147
              %v149 = vld [vmem:[%s139 + $0x10] sm:$0x3]
              %150 = vst [vmem:[%s140 + $0x8] sm:$0x3] %v149
              %v151 = vld [vmem:[%s139 + $0x14] sm:$0x3]
              %152 = vst [vmem:[%s140 + $0xa] sm:$0x3] %v151
              %v153 = vld [vmem:[%s139 + $0x18] sm:$0x3]
              %154 = vst [vmem:[%s140 + $0xc] sm:$0x3] %v153
              %v155 = vld [vmem:[%s139 + $0x1c] sm:$0x3]
              %156 = vst [vmem:[%s140 + $0xe] sm:$0x3] %v155
            $region85: #{_rnn_core.2} parent=72 // loop_footer
              %s138 = sadd.s32 1, %s134
            $region86: #{_rnn_core.2} parent=72 // loop_footer_branch
              %133 = sbr.rel target = $region82
            $region87: #{_rnn_core.2} parent=72 // loop_exit
              _
          $region73: #{_rnn_core.2} parent=57 // pred_fallthru
            _
        $region58: #{_rnn_core.2} parent=53 // pred_fallthru
          _
        // Predicated region
        $region59: #{_rnn_core.2} parent=53 // pred_check
          _
        $region60: #{_rnn_core.2} parent=53 // pred_check_branch
          %96 = sbr.rel (0) target = $region62
        $region61: #{_rnn_core.2} parent=53 // pred_region
          loop: start=0, step=1, limit=1
          $region63: #{_rnn_core.2} parent=61 // loop_pre_header
            _
          $region64: #{_rnn_core.2} parent=61 // loop_header
            %s99 = sphi 0, %s103
            %p100 = scmp.ge.s32.totalorder %s99, 1
            %s104 = sphi %s90, %s90
            %s105 = sphi [#allocation7], [#allocation7]
          $region65: #{_rnn_core.2} parent=61 // loop_header_branch
            %102 = sbr.rel (%p100) target = $region69
          $region66: #{_rnn_core.2} parent=61 // loop_body
            %v106 = vld [vmem:[%s104] sm:$0x3]
            %107 = vst [vmem:[%s105] sm:$0x3] %v106
            %v108 = vld [vmem:[%s104 + $0x4] sm:$0x3]
            %109 = vst [vmem:[%s105 + $0x2] sm:$0x3] %v108
            %v110 = vld [vmem:[%s104 + $0x8] sm:$0x3]
            %111 = vst [vmem:[%s105 + $0x4] sm:$0x3] %v110
            %v112 = vld [vmem:[%s104 + $0xc] sm:$0x3]
            %113 = vst [vmem:[%s105 + $0x6] sm:$0x3] %v112
            %v114 = vld [vmem:[%s104 + $0x10] sm:$0x3]
            %115 = vst [vmem:[%s105 + $0x8] sm:$0x3] %v114
            %v116 = vld [vmem:[%s104 + $0x14] sm:$0x3]
            %117 = vst [vmem:[%s105 + $0xa] sm:$0x3] %v116
            %v118 = vld [vmem:[%s104 + $0x18] sm:$0x3]
            %119 = vst [vmem:[%s105 + $0xc] sm:$0x3] %v118
            %v120 = vld [vmem:[%s104 + $0x1c] sm:$0x3]
            %121 = vst [vmem:[%s105 + $0xe] sm:$0x3] %v120
          $region67: #{_rnn_core.2} parent=61 // loop_footer
            %s103 = sadd.s32 1, %s99
          $region68: #{_rnn_core.2} parent=61 // loop_footer_branch
            %98 = sbr.rel target = $region64
          $region69: #{_rnn_core.2} parent=61 // loop_exit
            _
        $region62: #{_rnn_core.2} parent=53 // pred_fallthru
          _
      $region54: #{_rnn_core.2} parent=49 // pred_fallthru
        _
      %157 = vnop
    $region50: #{_rnn_core.2} parent=1 // pred_fallthru
      _
    // Predicated region
    $region88: #{_rnn_core.2} parent=1 // pred_check
      _
    $region89: #{_rnn_core.2} parent=1 // pred_check_branch
      %159 = sbr.rel (0) target = $region91
    $region90: #{_rnn_core.2} parent=1 // pred_region
      _
    $region91: #{_rnn_core.2} parent=1 // pred_fallthru
      _
    // Predicated region
    $region92: #{_rnn_core.2} parent=1 // pred_check
      _
    $region93: #{_rnn_core.2} parent=1 // pred_check_branch
      %161 = sbr.rel (0) target = $region95
    $region94: #{_rnn_core.2} parent=1 // pred_region
      _
    $region95: #{_rnn_core.2} parent=1 // pred_fallthru
      _
    // Predicated region
    $region96: #{_rnn_core.2} parent=1 // pred_check
      _
    $region97: #{_rnn_core.2} parent=1 // pred_check_branch
      %163 = sbr.rel (0) target = $region99
    $region98: #{_rnn_core.2} parent=1 // pred_region
      _
    $region99: #{_rnn_core.2} parent=1 // pred_fallthru
      _
    // Predicated region
    $region100: #{_rnn_core.2} parent=1 // pred_check
      _
    $region101: #{_rnn_core.2} parent=1 // pred_check_branch
      %165 = sbr.rel (0) target = $region103
    $region102: #{_rnn_core.2} parent=1 // pred_region
      _
    $region103: #{_rnn_core.2} parent=1 // pred_fallthru
      _
    %s166 = ssub.s32 0, 0
    %s167 = smul.u32 8, %s166
    %p168 = scmp.lt.s32.totalorder %s167, 7
    %s169 = scalar_select %p168, %s167, 7
    %s170 = smul.addr %s169, 2
    %s171 = scalar_lea.vmem %s6, %s170
    %s172 = ssub.s32 0, 0
    %s173 = smul.u32 8, %s172
    %s174 = ssub.s32 0, 0
    %s175 = smul.u32 8, %s174
    %p176 = scmp.lt.s32.totalorder %s175, 7
    %s177 = scalar_select %p176, %s175, 7
    %s178 = smul.addr %s177, 2
    %s179 = scalar_lea.vmem %s6, %s178
    %s180 = ssub.s32 0, 0
    %s181 = smul.u32 8, %s180
    %p183 = scmp.eq.s32.totalorder 0, 0
    // Predicated region
    $region104: #{_rnn_core.2} parent=1 // pred_check
      %p184 = pneg %p183
    $region105: #{_rnn_core.2} parent=1 // pred_check_branch
      %186 = sbr.rel (%p184) target = $region107
    $region106: #{_rnn_core.2} parent=1 // pred_region
      %vm187 = vcmask 254976
      %188 = vst.msk [vmem:[#allocation2] sm:$0x3] %vm187, 0.0
      %189 = vst.msk [vmem:[#allocation3] sm:$0x3] %vm187, 0.0
      %190 = vst.msk [vmem:[#allocation4] sm:$0x3] %vm187, 0.0
      %191 = vst.msk [vmem:[#allocation5] sm:$0x3] %vm187, 0.0
    $region107: #{_rnn_core.2} parent=1 // pred_fallthru
      _
    %v192 = vld [vmem:[%s0] sm:$0x3]
    %v193 = vld [vmem:[%s3] sm:$0xf]
    %v194 = vld [vmem:[%s3 + $0x4] sm:$0xf]
    %v195 = vld [vmem:[%s3 + $0x8] sm:$0xf]
    %v196 = vld [vmem:[%s3 + $0xc] sm:$0xf]
    %v197 = vld [vmem:[%s4] sm:$0xf]
    %v198 = vld [vmem:[%s4 + $0x4] sm:$0xf]
    %v199 = vld [vmem:[%s4 + $0x8] sm:$0xf]
    %v200 = vld [vmem:[%s4 + $0xc] sm:$0xf]
    %v201 = vld [vmem:[#allocation2] sm:$0x3]
    %v202 = vld [vmem:[#allocation3] sm:$0x3]
    %v203 = vld [vmem:[#allocation4] sm:$0x3]
    %v204 = vld [vmem:[#allocation5] sm:$0x3]
    %s205 = smul.u32 0, 8
    %s206 = ssub.s32 7, %s205
    %v207 = vpack.c.bf16 %v201, %v201
    %v212 = vunpack.c.l.b16 %v193
    %v213 = vunpack.c.l.b16 %v194
    %v214 = vunpack.c.l.b16 %v195
    %v215 = vunpack.c.l.b16 %v196
    %v216 = vpack.c.b16 %v213, %v212
    %v217 = vpack.c.b16 %v215, %v214
    %vm220 = vcmask 261120
    %v222 = vsel %vm220, %v207, 0
    %224 = vmatprep.subr.bf16.mxu0 0
    %225 = vmatpush1.bf16.msra.mxu0 %v216
    %226 = vmatprep.subr.bf16.mxu0 0
    %227 = vmatpush1.bf16.msra.mxu0 %v217
    %228 = vmatprep.subr.bf16.mxu0 0
    %229 = vmatpush1.bf16.msra.mxu0 0
    %230 = vmatprep.subr.bf16.mxu0 0
    %231 = vmatpush1.bf16.msra.mxu0 0
    %232 = vmatprep.subr.bf16.mxu0 0
    %233 = vmatpush1.bf16.msra.mxu0 0
    %234 = vmatprep.subr.bf16.mxu0 0
    %235 = vmatpush1.bf16.msra.mxu0 0
    %236 = vmatprep.subr.bf16.mxu0 0
    %237 = vmatpush1.bf16.msra.mxu0 0
    %238 = vmatprep.subr.bf16.mxu0 0
    %239 = vmatpush1.bf16.msra.mxu0 0
    %240 = vmatprep.subr.bf16.mxu0 0
    %241 = vmatpush1.bf16.msra.mxu0 0
    %242 = vmatprep.subr.bf16.mxu0 0
    %243 = vmatpush1.bf16.msra.mxu0 0
    %244 = vmatprep.subr.bf16.mxu0 0
    %245 = vmatpush1.bf16.msra.mxu0 0
    %246 = vmatprep.subr.bf16.mxu0 0
    %247 = vmatpush1.bf16.msra.mxu0 0
    %248 = vmatprep.subr.bf16.mxu0 0
    %249 = vmatpush1.bf16.msra.mxu0 0
    %250 = vmatprep.subr.bf16.mxu0 0
    %251 = vmatpush1.bf16.msra.mxu0 0
    %252 = vmatprep.subr.bf16.mxu0 0
    %253 = vmatpush1.bf16.msra.mxu0 0
    %254 = vmatprep.subr.bf16.mxu0 0
    %255 = vmatpush1.bf16.msra.mxu0 0
    %256 = vmatprep.mubr.bf16.mxu0 0
    %257 = vmatmul.mubr.bf16.gmra.mrb[0].mxu0 %v222
    %v258 = vpop.f32.mrb[0].mxu0
    %v259 = vadd.f32 0.0, %v258
    %v260 = vpop.f32.mrb[0].mxu0
    %v261 = vpop.f32.mrb[0].mxu0
    %v262 = vpop.f32.mrb[0].mxu0
    %263 = vdwg.mxu0
    %v264 = vpack.c.bf16 %v203, %v203
    %v269 = vunpack.c.l.b16 %v197
    %v270 = vunpack.c.l.b16 %v198
    %v271 = vunpack.c.l.b16 %v199
    %v272 = vunpack.c.l.b16 %v200
    %v273 = vpack.c.b16 %v270, %v269
    %v274 = vpack.c.b16 %v272, %v271
    %v278 = vsel %vm220, %v264, 0
    %280 = vmatprep.subr.bf16.mxu0 0
    %281 = vmatpush1.bf16.msra.mxu0 %v273
    %282 = vmatprep.subr.bf16.mxu0 0
    %283 = vmatpush1.bf16.msra.mxu0 %v274
    %284 = vmatprep.subr.bf16.mxu0 0
    %285 = vmatpush1.bf16.msra.mxu0 0
    %286 = vmatprep.subr.bf16.mxu0 0
    %287 = vmatpush1.bf16.msra.mxu0 0
    %288 = vmatprep.subr.bf16.mxu0 0
    %289 = vmatpush1.bf16.msra.mxu0 0
    %290 = vmatprep.subr.bf16.mxu0 0
    %291 = vmatpush1.bf16.msra.mxu0 0
    %292 = vmatprep.subr.bf16.mxu0 0
    %293 = vmatpush1.bf16.msra.mxu0 0
    %294 = vmatprep.subr.bf16.mxu0 0
    %295 = vmatpush1.bf16.msra.mxu0 0
    %296 = vmatprep.subr.bf16.mxu0 0
    %297 = vmatpush1.bf16.msra.mxu0 0
    %298 = vmatprep.subr.bf16.mxu0 0
    %299 = vmatpush1.bf16.msra.mxu0 0
    %300 = vmatprep.subr.bf16.mxu0 0
    %301 = vmatpush1.bf16.msra.mxu0 0
    %302 = vmatprep.subr.bf16.mxu0 0
    %303 = vmatpush1.bf16.msra.mxu0 0
    %304 = vmatprep.subr.bf16.mxu0 0
    %305 = vmatpush1.bf16.msra.mxu0 0
    %306 = vmatprep.subr.bf16.mxu0 0
    %307 = vmatpush1.bf16.msra.mxu0 0
    %308 = vmatprep.subr.bf16.mxu0 0
    %309 = vmatpush1.bf16.msra.mxu0 0
    %310 = vmatprep.subr.bf16.mxu0 0
    %311 = vmatpush1.bf16.msra.mxu0 0
    %312 = vmatprep.mubr.bf16.mxu0 0
    %313 = vmatmul.mubr.bf16.gmra.mrb[0].mxu0 %v278
    %v314 = vpop.f32.mrb[0].mxu0
    %v315 = vadd.f32 0.0, %v314
    %v316 = vpop.f32.mrb[0].mxu0
    %v317 = vpop.f32.mrb[0].mxu0
    %v318 = vpop.f32.mrb[0].mxu0
    %319 = vdwg.mxu0
    %v320 = vld [vmem:[#allocation6] sm:$0x3]
    %v321 = vadd.f32 %v320, %v259
    %s322 = scalar_lea.vmem [#allocation7], 14
    %v323 = vld [vmem:[%s322] sm:$0x3]
    %v324 = vadd.f32 %v323, %v315
    %v325 = vxor.u32 %v321, 2147483648
    %v326 = vmul.f32 %v325, 1.442695
    %v327 = vpow.pop %v326
    %v328 = vadd.f32 %v327, 1.0
    %v329 = vrcp.pop %v328
    %v330 = vmul.f32 1.0, %v329
    %v331 = vtanh.pop %v321
    %333 = vrot.lane.b32.xlu0 %v202, 32
    %v334 = vpop.permute.xlu0 %333
    %v336 = vmul.f32 %v330, %v334
    %338 = vrot.lane.b32.xlu0 %v331, 64
    %v339 = vpop.permute.xlu0 %338
    %v341 = vmul.f32 %v330, %v339
    %343 = vrot.lane.b32.xlu0 %v341, 32
    %v344 = vpop.permute.xlu0 %343
    %v346 = vadd.f32 %v336, %v344
    %v347 = vtanh.pop %v346
    %349 = vrot.lane.b32.xlu0 %v347, 64
    %v350 = vpop.permute.xlu0 %349
    %v352 = vmul.f32 %v330, %v350
    %v353 = vxor.u32 %v324, 2147483648
    %v354 = vmul.f32 %v353, 1.442695
    %v355 = vpow.pop %v354
    %v356 = vadd.f32 %v355, 1.0
    %v357 = vrcp.pop %v356
    %v358 = vmul.f32 1.0, %v357
    %v359 = vtanh.pop %v324
    %361 = vrot.lane.b32.xlu0 %v204, 32
    %v362 = vpop.permute.xlu0 %361
    %v364 = vmul.f32 %v358, %v362
    %366 = vrot.lane.b32.xlu0 %v359, 64
    %v367 = vpop.permute.xlu0 %366
    %v369 = vmul.f32 %v358, %v367
    %371 = vrot.lane.b32.xlu0 %v369, 32
    %v372 = vpop.permute.xlu0 %371
    %v374 = vadd.f32 %v364, %v372
    %v375 = vtanh.pop %v374
    %377 = vrot.lane.b32.xlu0 %v375, 64
    %v378 = vpop.permute.xlu0 %377
    %v380 = vmul.f32 %v358, %v378
    %v381 = vstv %s205
    %vm382 = vcmp.lt.s32.totalorder %v381, %v192
    %v383 = vstv %s206
    %vm384 = vcmp.lt.s32.totalorder %v383, %v192
    %v385 = vsel %vm382, 1, 0
    %386 = vset.pattern.permute.xlu0 0
    %387 = vperm.xlu0 %386, %v385
    %v388 = vpop.permute.xlu0 %387
    %vm389 = vcmp.eq.s32.totalorder %v388, 1
    %391 = vrot.lane.b32.xlu0 %v201, 96
    %v392 = vpop.permute.xlu0 %391
    %v394 = vsel %vm389, %v352, %v392
    %v395 = vsel %vm389, %v346, %v334
    %v396 = vsel %vm384, 1, 0
    %397 = vset.pattern.permute.xlu0 0
    %398 = vperm.xlu0 %397, %v396
    %v399 = vpop.permute.xlu0 %398
    %vm400 = vcmp.eq.s32.totalorder %v399, 1
    %402 = vrot.lane.b32.xlu0 %v203, 96
    %v403 = vpop.permute.xlu0 %402
    %v405 = vsel %vm400, %v380, %v403
    %v406 = vsel %vm400, %v374, %v362
    %v407 = vsel %vm389, %v352, 0.0
    %409 = vrot.lane.b32.xlu0 %v407, 32
    %v410 = vpop.permute.xlu0 %409
    %vm412 = vcmask 254976
    %413 = vst.msk [vmem:[%s5] sm:$0x3] %vm412, %v410
    %v414 = vsel %vm400, %v380, 0.0
    %416 = vrot.lane.b32.xlu0 %v414, 32
    %v417 = vpop.permute.xlu0 %416
    %s419 = scalar_lea.vmem %s179, 14
    %420 = vst.msk [vmem:[%s419] sm:$0x3] %vm412, %v417
    %s421 = sadd.s32 %s205, 1
    %s422 = ssub.s32 6, %s205
    %v423 = vpack.c.bf16 %v394, %v394
    %425 = vrot.lane.b32.xlu0 %v423, 32
    %v426 = vpop.permute.xlu0 %425
    %v428 = vsel %vm220, %v426, 0
    %430 = vmatprep.subr.bf16.mxu0 0
    %431 = vmatpush1.bf16.msra.mxu0 %v216
    %432 = vmatprep.subr.bf16.mxu0 0
    %433 = vmatpush1.bf16.msra.mxu0 %v217
    %434 = vmatprep.subr.bf16.mxu0 0
    %435 = vmatpush1.bf16.msra.mxu0 0
    %436 = vmatprep.subr.bf16.mxu0 0
    %437 = vmatpush1.bf16.msra.mxu0 0
    %438 = vmatprep.subr.bf16.mxu0 0
    %439 = vmatpush1.bf16.msra.mxu0 0
    %440 = vmatprep.subr.bf16.mxu0 0
    %441 = vmatpush1.bf16.msra.mxu0 0
    %442 = vmatprep.subr.bf16.mxu0 0
    %443 = vmatpush1.bf16.msra.mxu0 0
    %444 = vmatprep.subr.bf16.mxu0 0
    %445 = vmatpush1.bf16.msra.mxu0 0
    %446 = vmatprep.subr.bf16.mxu0 0
    %447 = vmatpush1.bf16.msra.mxu0 0
    %448 = vmatprep.subr.bf16.mxu0 0
    %449 = vmatpush1.bf16.msra.mxu0 0
    %450 = vmatprep.subr.bf16.mxu0 0
    %451 = vmatpush1.bf16.msra.mxu0 0
    %452 = vmatprep.subr.bf16.mxu0 0
    %453 = vmatpush1.bf16.msra.mxu0 0
    %454 = vmatprep.subr.bf16.mxu0 0
    %455 = vmatpush1.bf16.msra.mxu0 0
    %456 = vmatprep.subr.bf16.mxu0 0
    %457 = vmatpush1.bf16.msra.mxu0 0
    %458 = vmatprep.subr.bf16.mxu0 0
    %459 = vmatpush1.bf16.msra.mxu0 0
    %460 = vmatprep.subr.bf16.mxu0 0
    %461 = vmatpush1.bf16.msra.mxu0 0
    %462 = vmatprep.mubr.bf16.mxu0 0
    %463 = vmatmul.mubr.bf16.gmra.mrb[0].mxu0 %v428
    %v464 = vpop.f32.mrb[0].mxu0
    %v465 = vadd.f32 0.0, %v464
    %v466 = vpop.f32.mrb[0].mxu0
    %v467 = vpop.f32.mrb[0].mxu0
    %v468 = vpop.f32.mrb[0].mxu0
    %469 = vdwg.mxu0
    %v470 = vpack.c.bf16 %v405, %v405
    %472 = vrot.lane.b32.xlu0 %v470, 32
    %v473 = vpop.permute.xlu0 %472
    %v475 = vsel %vm220, %v473, 0
    %477 = vmatprep.subr.bf16.mxu0 0
    %478 = vmatpush1.bf16.msra.mxu0 %v273
    %479 = vmatprep.subr.bf16.mxu0 0
    %480 = vmatpush1.bf16.msra.mxu0 %v274
    %481 = vmatprep.subr.bf16.mxu0 0
    %482 = vmatpush1.bf16.msra.mxu0 0
    %483 = vmatprep.subr.bf16.mxu0 0
    %484 = vmatpush1.bf16.msra.mxu0 0
    %485 = vmatprep.subr.bf16.mxu0 0
    %486 = vmatpush1.bf16.msra.mxu0 0
    %487 = vmatprep.subr.bf16.mxu0 0
    %488 = vmatpush1.bf16.msra.mxu0 0
    %489 = vmatprep.subr.bf16.mxu0 0
    %490 = vmatpush1.bf16.msra.mxu0 0
    %491 = vmatprep.subr.bf16.mxu0 0
    %492 = vmatpush1.bf16.msra.mxu0 0
    %493 = vmatprep.subr.bf16.mxu0 0
    %494 = vmatpush1.bf16.msra.mxu0 0
    %495 = vmatprep.subr.bf16.mxu0 0
    %496 = vmatpush1.bf16.msra.mxu0 0
    %497 = vmatprep.subr.bf16.mxu0 0
    %498 = vmatpush1.bf16.msra.mxu0 0
    %499 = vmatprep.subr.bf16.mxu0 0
    %500 = vmatpush1.bf16.msra.mxu0 0
    %501 = vmatprep.subr.bf16.mxu0 0
    %502 = vmatpush1.bf16.msra.mxu0 0
    %503 = vmatprep.subr.bf16.mxu0 0
    %504 = vmatpush1.bf16.msra.mxu0 0
    %505 = vmatprep.subr.bf16.mxu0 0
    %506 = vmatpush1.bf16.msra.mxu0 0
    %507 = vmatprep.subr.bf16.mxu0 0
    %508 = vmatpush1.bf16.msra.mxu0 0
    %509 = vmatprep.mubr.bf16.mxu0 0
    %510 = vmatmul.mubr.bf16.gmra.mrb[0].mxu0 %v475
    %v511 = vpop.f32.mrb[0].mxu0
    %v512 = vadd.f32 0.0, %v511
    %v513 = vpop.f32.mrb[0].mxu0
    %v514 = vpop.f32.mrb[0].mxu0
    %v515 = vpop.f32.mrb[0].mxu0
    %516 = vdwg.mxu0
    %s517 = scalar_lea.vmem [#allocation6], 2
    %v518 = vld [vmem:[%s517] sm:$0x3]
    %v519 = vadd.f32 %v518, %v465
    %s520 = scalar_lea.vmem [#allocation7], 12
    %v521 = vld [vmem:[%s520] sm:$0x3]
    %v522 = vadd.f32 %v521, %v512
    %v523 = vxor.u32 %v519, 2147483648
    %v524 = vmul.f32 %v523, 1.442695
    %v525 = vpow.pop %v524
    %v526 = vadd.f32 %v525, 1.0
    %v527 = vrcp.pop %v526
    %v528 = vmul.f32 1.0, %v527
    %v529 = vtanh.pop %v519
    %v530 = vmul.f32 %v528, %v395
    %532 = vrot.lane.b32.xlu0 %v529, 64
    %v533 = vpop.permute.xlu0 %532
    %v535 = vmul.f32 %v528, %v533
    %537 = vrot.lane.b32.xlu0 %v535, 32
    %v538 = vpop.permute.xlu0 %537
    %v540 = vadd.f32 %v530, %v538
    %v541 = vtanh.pop %v540
    %543 = vrot.lane.b32.xlu0 %v541, 64
    %v544 = vpop.permute.xlu0 %543
    %v546 = vmul.f32 %v528, %v544
    %v547 = vxor.u32 %v522, 2147483648
    %v548 = vmul.f32 %v547, 1.442695
    %v549 = vpow.pop %v548
    %v550 = vadd.f32 %v549, 1.0
    %v551 = vrcp.pop %v550
    %v552 = vmul.f32 1.0, %v551
    %v553 = vtanh.pop %v522
    %v554 = vmul.f32 %v552, %v406
    %556 = vrot.lane.b32.xlu0 %v553, 64
    %v557 = vpop.permute.xlu0 %556
    %v559 = vmul.f32 %v552, %v557
    %561 = vrot.lane.b32.xlu0 %v559, 32
    %v562 = vpop.permute.xlu0 %561
    %v564 = vadd.f32 %v554, %v562
    %v565 = vtanh.pop %v564
    %567 = vrot.lane.b32.xlu0 %v565, 64
    %v568 = vpop.permute.xlu0 %567
    %v570 = vmul.f32 %v552, %v568
    %v571 = vstv %s421
    %vm572 = vcmp.lt.s32.totalorder %v571, %v192
    %v573 = vstv %s422
    %vm574 = vcmp.lt.s32.totalorder %v573, %v192
    %v575 = vsel %vm572, 1, 0
    %576 = vset.pattern.permute.xlu0 0
    %577 = vperm.xlu0 %576, %v575
    %v578 = vpop.permute.xlu0 %577
    %vm579 = vcmp.eq.s32.totalorder %v578, 1
    %v580 = vsel %vm579, %v546, %v394
    %v581 = vsel %vm579, %v540, %v395
    %v582 = vsel %vm574, 1, 0
    %583 = vset.pattern.permute.xlu0 0
    %584 = vperm.xlu0 %583, %v582
    %v585 = vpop.permute.xlu0 %584
    %vm586 = vcmp.eq.s32.totalorder %v585, 1
    %v587 = vsel %vm586, %v570, %v405
    %v588 = vsel %vm586, %v564, %v406
    %v589 = vsel %vm579, %v546, 0.0
    %591 = vrot.lane.b32.xlu0 %v589, 32
    %v592 = vpop.permute.xlu0 %591
    %s594 = scalar_lea.vmem %s5, 2
    %595 = vst.msk [vmem:[%s594] sm:$0x3] %vm412, %v592
    %v596 = vsel %vm586, %v570, 0.0
    %598 = vrot.lane.b32.xlu0 %v596, 32
    %v599 = vpop.permute.xlu0 %598
    %s601 = scalar_lea.vmem %s179, 12
    %602 = vst.msk [vmem:[%s601] sm:$0x3] %vm412, %v599
    %s603 = sadd.s32 %s205, 2
    %s604 = ssub.s32 5, %s205
    %v605 = vpack.c.bf16 %v580, %v580
    %607 = vrot.lane.b32.xlu0 %v605, 32
    %v608 = vpop.permute.xlu0 %607
    %v610 = vsel %vm220, %v608, 0
    %612 = vmatprep.subr.bf16.mxu0 0
    %613 = vmatpush1.bf16.msra.mxu0 %v216
    %614 = vmatprep.subr.bf16.mxu0 0
    %615 = vmatpush1.bf16.msra.mxu0 %v217
    %616 = vmatprep.subr.bf16.mxu0 0
    %617 = vmatpush1.bf16.msra.mxu0 0
    %618 = vmatprep.subr.bf16.mxu0 0
    %619 = vmatpush1.bf16.msra.mxu0 0
    %620 = vmatprep.subr.bf16.mxu0 0
    %621 = vmatpush1.bf16.msra.mxu0 0
    %622 = vmatprep.subr.bf16.mxu0 0
    %623 = vmatpush1.bf16.msra.mxu0 0
    %624 = vmatprep.subr.bf16.mxu0 0
    %625 = vmatpush1.bf16.msra.mxu0 0
    %626 = vmatprep.subr.bf16.mxu0 0
    %627 = vmatpush1.bf16.msra.mxu0 0
    %628 = vmatprep.subr.bf16.mxu0 0
    %629 = vmatpush1.bf16.msra.mxu0 0
    %630 = vmatprep.subr.bf16.mxu0 0
    %631 = vmatpush1.bf16.msra.mxu0 0
    %632 = vmatprep.subr.bf16.mxu0 0
    %633 = vmatpush1.bf16.msra.mxu0 0
    %634 = vmatprep.subr.bf16.mxu0 0
    %635 = vmatpush1.bf16.msra.mxu0 0
    %636 = vmatprep.subr.bf16.mxu0 0
    %637 = vmatpush1.bf16.msra.mxu0 0
    %638 = vmatprep.subr.bf16.mxu0 0
    %639 = vmatpush1.bf16.msra.mxu0 0
    %640 = vmatprep.subr.bf16.mxu0 0
    %641 = vmatpush1.bf16.msra.mxu0 0
    %642 = vmatprep.subr.bf16.mxu0 0
    %643 = vmatpush1.bf16.msra.mxu0 0
    %644 = vmatprep.mubr.bf16.mxu0 0
    %645 = vmatmul.mubr.bf16.gmra.mrb[0].mxu0 %v610
    %v646 = vpop.f32.mrb[0].mxu0
    %v647 = vadd.f32 0.0, %v646
    %v648 = vpop.f32.mrb[0].mxu0
    %v649 = vpop.f32.mrb[0].mxu0
    %v650 = vpop.f32.mrb[0].mxu0
    %651 = vdwg.mxu0
    %v652 = vpack.c.bf16 %v587, %v587
    %654 = vrot.lane.b32.xlu0 %v652, 32
    %v655 = vpop.permute.xlu0 %654
    %v657 = vsel %vm220, %v655, 0
    %659 = vmatprep.subr.bf16.mxu0 0
    %660 = vmatpush1.bf16.msra.mxu0 %v273
    %661 = vmatprep.subr.bf16.mxu0 0
    %662 = vmatpush1.bf16.msra.mxu0 %v274
    %663 = vmatprep.subr.bf16.mxu0 0
    %664 = vmatpush1.bf16.msra.mxu0 0
    %665 = vmatprep.subr.bf16.mxu0 0
    %666 = vmatpush1.bf16.msra.mxu0 0
    %667 = vmatprep.subr.bf16.mxu0 0
    %668 = vmatpush1.bf16.msra.mxu0 0
    %669 = vmatprep.subr.bf16.mxu0 0
    %670 = vmatpush1.bf16.msra.mxu0 0
    %671 = vmatprep.subr.bf16.mxu0 0
    %672 = vmatpush1.bf16.msra.mxu0 0
    %673 = vmatprep.subr.bf16.mxu0 0
    %674 = vmatpush1.bf16.msra.mxu0 0
    %675 = vmatprep.subr.bf16.mxu0 0
    %676 = vmatpush1.bf16.msra.mxu0 0
    %677 = vmatprep.subr.bf16.mxu0 0
    %678 = vmatpush1.bf16.msra.mxu0 0
    %679 = vmatprep.subr.bf16.mxu0 0
    %680 = vmatpush1.bf16.msra.mxu0 0
    %681 = vmatprep.subr.bf16.mxu0 0
    %682 = vmatpush1.bf16.msra.mxu0 0
    %683 = vmatprep.subr.bf16.mxu0 0
    %684 = vmatpush1.bf16.msra.mxu0 0
    %685 = vmatprep.subr.bf16.mxu0 0
    %686 = vmatpush1.bf16.msra.mxu0 0
    %687 = vmatprep.subr.bf16.mxu0 0
    %688 = vmatpush1.bf16.msra.mxu0 0
    %689 = vmatprep.subr.bf16.mxu0 0
    %690 = vmatpush1.bf16.msra.mxu0 0
    %691 = vmatprep.mubr.bf16.mxu0 0
    %692 = vmatmul.mubr.bf16.gmra.mrb[0].mxu0 %v657
    %v693 = vpop.f32.mrb[0].mxu0
    %v694 = vadd.f32 0.0, %v693
    %v695 = vpop.f32.mrb[0].mxu0
    %v696 = vpop.f32.mrb[0].mxu0
    %v697 = vpop.f32.mrb[0].mxu0
    %698 = vdwg.mxu0
    %s699 = scalar_lea.vmem [#allocation6], 4
    %v700 = vld [vmem:[%s699] sm:$0x3]
    %v701 = vadd.f32 %v700, %v647
    %s702 = scalar_lea.vmem [#allocation7], 10
    %v703 = vld [vmem:[%s702] sm:$0x3]
    %v704 = vadd.f32 %v703, %v694
    %v705 = vxor.u32 %v701, 2147483648
    %v706 = vmul.f32 %v705, 1.442695
    %v707 = vpow.pop %v706
    %v708 = vadd.f32 %v707, 1.0
    %v709 = vrcp.pop %v708
    %v710 = vmul.f32 1.0, %v709
    %v711 = vtanh.pop %v701
    %v712 = vmul.f32 %v710, %v581
    %714 = vrot.lane.b32.xlu0 %v711, 64
    %v715 = vpop.permute.xlu0 %714
    %v717 = vmul.f32 %v710, %v715
    %719 = vrot.lane.b32.xlu0 %v717, 32
    %v720 = vpop.permute.xlu0 %719
    %v722 = vadd.f32 %v712, %v720
    %v723 = vtanh.pop %v722
    %725 = vrot.lane.b32.xlu0 %v723, 64
    %v726 = vpop.permute.xlu0 %725
    %v728 = vmul.f32 %v710, %v726
    %v729 = vxor.u32 %v704, 2147483648
    %v730 = vmul.f32 %v729, 1.442695
    %v731 = vpow.pop %v730
    %v732 = vadd.f32 %v731, 1.0
    %v733 = vrcp.pop %v732
    %v734 = vmul.f32 1.0, %v733
    %v735 = vtanh.pop %v704
    %v736 = vmul.f32 %v734, %v588
    %738 = vrot.lane.b32.xlu0 %v735, 64
    %v739 = vpop.permute.xlu0 %738
    %v741 = vmul.f32 %v734, %v739
    %743 = vrot.lane.b32.xlu0 %v741, 32
    %v744 = vpop.permute.xlu0 %743
    %v746 = vadd.f32 %v736, %v744
    %v747 = vtanh.pop %v746
    %749 = vrot.lane.b32.xlu0 %v747, 64
    %v750 = vpop.permute.xlu0 %749
    %v752 = vmul.f32 %v734, %v750
    %v753 = vstv %s603
    %vm754 = vcmp.lt.s32.totalorder %v753, %v192
    %v755 = vstv %s604
    %vm756 = vcmp.lt.s32.totalorder %v755, %v192
    %v757 = vsel %vm754, 1, 0
    %758 = vset.pattern.permute.xlu0 0
    %759 = vperm.xlu0 %758, %v757
    %v760 = vpop.permute.xlu0 %759
    %vm761 = vcmp.eq.s32.totalorder %v760, 1
    %v762 = vsel %vm761, %v728, %v580
    %v763 = vsel %vm761, %v722, %v581
    %v764 = vsel %vm756, 1, 0
    %765 = vset.pattern.permute.xlu0 0
    %766 = vperm.xlu0 %765, %v764
    %v767 = vpop.permute.xlu0 %766
    %vm768 = vcmp.eq.s32.totalorder %v767, 1
    %v769 = vsel %vm768, %v752, %v587
    %v770 = vsel %vm768, %v746, %v588
    %v771 = vsel %vm761, %v728, 0.0
    %773 = vrot.lane.b32.xlu0 %v771, 32
    %v774 = vpop.permute.xlu0 %773
    %s776 = scalar_lea.vmem %s5, 4
    %777 = vst.msk [vmem:[%s776] sm:$0x3] %vm412, %v774
    %v778 = vsel %vm768, %v752, 0.0
    %780 = vrot.lane.b32.xlu0 %v778, 32
    %v781 = vpop.permute.xlu0 %780
    %s783 = scalar_lea.vmem %s179, 10
    %784 = vst.msk [vmem:[%s783] sm:$0x3] %vm412, %v781
    %s785 = sadd.s32 %s205, 3
    %s786 = ssub.s32 4, %s205
    %v787 = vpack.c.bf16 %v762, %v762
    %789 = vrot.lane.b32.xlu0 %v787, 32
    %v790 = vpop.permute.xlu0 %789
    %v792 = vsel %vm220, %v790, 0
    %794 = vmatprep.subr.bf16.mxu0 0
    %795 = vmatpush1.bf16.msra.mxu0 %v216
    %796 = vmatprep.subr.bf16.mxu0 0
    %797 = vmatpush1.bf16.msra.mxu0 %v217
    %798 = vmatprep.subr.bf16.mxu0 0
    %799 = vmatpush1.bf16.msra.mxu0 0
    %800 = vmatprep.subr.bf16.mxu0 0
    %801 = vmatpush1.bf16.msra.mxu0 0
    %802 = vmatprep.subr.bf16.mxu0 0
    %803 = vmatpush1.bf16.msra.mxu0 0
    %804 = vmatprep.subr.bf16.mxu0 0
    %805 = vmatpush1.bf16.msra.mxu0 0
    %806 = vmatprep.subr.bf16.mxu0 0
    %807 = vmatpush1.bf16.msra.mxu0 0
    %808 = vmatprep.subr.bf16.mxu0 0
    %809 = vmatpush1.bf16.msra.mxu0 0
    %810 = vmatprep.subr.bf16.mxu0 0
    %811 = vmatpush1.bf16.msra.mxu0 0
    %812 = vmatprep.subr.bf16.mxu0 0
    %813 = vmatpush1.bf16.msra.mxu0 0
    %814 = vmatprep.subr.bf16.mxu0 0
    %815 = vmatpush1.bf16.msra.mxu0 0
    %816 = vmatprep.subr.bf16.mxu0 0
    %817 = vmatpush1.bf16.msra.mxu0 0
    %818 = vmatprep.subr.bf16.mxu0 0
    %819 = vmatpush1.bf16.msra.mxu0 0
    %820 = vmatprep.subr.bf16.mxu0 0
    %821 = vmatpush1.bf16.msra.mxu0 0
    %822 = vmatprep.subr.bf16.mxu0 0
    %823 = vmatpush1.bf16.msra.mxu0 0
    %824 = vmatprep.subr.bf16.mxu0 0
    %825 = vmatpush1.bf16.msra.mxu0 0
    %826 = vmatprep.mubr.bf16.mxu0 0
    %827 = vmatmul.mubr.bf16.gmra.mrb[0].mxu0 %v792
    %v828 = vpop.f32.mrb[0].mxu0
    %v829 = vadd.f32 0.0, %v828
    %v830 = vpop.f32.mrb[0].mxu0
    %v831 = vpop.f32.mrb[0].mxu0
    %v832 = vpop.f32.mrb[0].mxu0
    %833 = vdwg.mxu0
    %v834 = vpack.c.bf16 %v769, %v769
    %836 = vrot.lane.b32.xlu0 %v834, 32
    %v837 = vpop.permute.xlu0 %836
    %v839 = vsel %vm220, %v837, 0
    %841 = vmatprep.subr.bf16.mxu0 0
    %842 = vmatpush1.bf16.msra.mxu0 %v273
    %843 = vmatprep.subr.bf16.mxu0 0
    %844 = vmatpush1.bf16.msra.mxu0 %v274
    %845 = vmatprep.subr.bf16.mxu0 0
    %846 = vmatpush1.bf16.msra.mxu0 0
    %847 = vmatprep.subr.bf16.mxu0 0
    %848 = vmatpush1.bf16.msra.mxu0 0
    %849 = vmatprep.subr.bf16.mxu0 0
    %850 = vmatpush1.bf16.msra.mxu0 0
    %851 = vmatprep.subr.bf16.mxu0 0
    %852 = vmatpush1.bf16.msra.mxu0 0
    %853 = vmatprep.subr.bf16.mxu0 0
    %854 = vmatpush1.bf16.msra.mxu0 0
    %855 = vmatprep.subr.bf16.mxu0 0
    %856 = vmatpush1.bf16.msra.mxu0 0
    %857 = vmatprep.subr.bf16.mxu0 0
    %858 = vmatpush1.bf16.msra.mxu0 0
    %859 = vmatprep.subr.bf16.mxu0 0
    %860 = vmatpush1.bf16.msra.mxu0 0
    %861 = vmatprep.subr.bf16.mxu0 0
    %862 = vmatpush1.bf16.msra.mxu0 0
    %863 = vmatprep.subr.bf16.mxu0 0
    %864 = vmatpush1.bf16.msra.mxu0 0
    %865 = vmatprep.subr.bf16.mxu0 0
    %866 = vmatpush1.bf16.msra.mxu0 0
    %867 = vmatprep.subr.bf16.mxu0 0
    %868 = vmatpush1.bf16.msra.mxu0 0
    %869 = vmatprep.subr.bf16.mxu0 0
    %870 = vmatpush1.bf16.msra.mxu0 0
    %871 = vmatprep.subr.bf16.mxu0 0
    %872 = vmatpush1.bf16.msra.mxu0 0
    %873 = vmatprep.mubr.bf16.mxu0 0
    %874 = vmatmul.mubr.bf16.gmra.mrb[0].mxu0 %v839
    %v875 = vpop.f32.mrb[0].mxu0
    %v876 = vadd.f32 0.0, %v875
    %v877 = vpop.f32.mrb[0].mxu0
    %v878 = vpop.f32.mrb[0].mxu0
    %v879 = vpop.f32.mrb[0].mxu0
    %880 = vdwg.mxu0
    %s881 = scalar_lea.vmem [#allocation6], 6
    %v882 = vld [vmem:[%s881] sm:$0x3]
    %v883 = vadd.f32 %v882, %v829
    %s884 = scalar_lea.vmem [#allocation7], 8
    %v885 = vld [vmem:[%s884] sm:$0x3]
    %v886 = vadd.f32 %v885, %v876
    %v887 = vxor.u32 %v883, 2147483648
    %v888 = vmul.f32 %v887, 1.442695
    %v889 = vpow.pop %v888
    %v890 = vadd.f32 %v889, 1.0
    %v891 = vrcp.pop %v890
    %v892 = vmul.f32 1.0, %v891
    %v893 = vtanh.pop %v883
    %v894 = vmul.f32 %v892, %v763
    %896 = vrot.lane.b32.xlu0 %v893, 64
    %v897 = vpop.permute.xlu0 %896
    %v899 = vmul.f32 %v892, %v897
    %901 = vrot.lane.b32.xlu0 %v899, 32
    %v902 = vpop.permute.xlu0 %901
    %v904 = vadd.f32 %v894, %v902
    %v905 = vtanh.pop %v904
    %907 = vrot.lane.b32.xlu0 %v905, 64
    %v908 = vpop.permute.xlu0 %907
    %v910 = vmul.f32 %v892, %v908
    %v911 = vxor.u32 %v886, 2147483648
    %v912 = vmul.f32 %v911, 1.442695
    %v913 = vpow.pop %v912
    %v914 = vadd.f32 %v913, 1.0
    %v915 = vrcp.pop %v914
    %v916 = vmul.f32 1.0, %v915
    %v917 = vtanh.pop %v886
    %v918 = vmul.f32 %v916, %v770
    %920 = vrot.lane.b32.xlu0 %v917, 64
    %v921 = vpop.permute.xlu0 %920
    %v923 = vmul.f32 %v916, %v921
    %925 = vrot.lane.b32.xlu0 %v923, 32
    %v926 = vpop.permute.xlu0 %925
    %v928 = vadd.f32 %v918, %v926
    %v929 = vtanh.pop %v928
    %931 = vrot.lane.b32.xlu0 %v929, 64
    %v932 = vpop.permute.xlu0 %931
    %v934 = vmul.f32 %v916, %v932
    %v935 = vstv %s785
    %vm936 = vcmp.lt.s32.totalorder %v935, %v192
    %v937 = vstv %s786
    %vm938 = vcmp.lt.s32.totalorder %v937, %v192
    %v939 = vsel %vm936, 1, 0
    %940 = vset.pattern.permute.xlu0 0
    %941 = vperm.xlu0 %940, %v939
    %v942 = vpop.permute.xlu0 %941
    %vm943 = vcmp.eq.s32.totalorder %v942, 1
    %v944 = vsel %vm943, %v910, %v762
    %v945 = vsel %vm943, %v904, %v763
    %v946 = vsel %vm938, 1, 0
    %947 = vset.pattern.permute.xlu0 0
    %948 = vperm.xlu0 %947, %v946
    %v949 = vpop.permute.xlu0 %948
    %vm950 = vcmp.eq.s32.totalorder %v949, 1
    %v951 = vsel %vm950, %v934, %v769
    %v952 = vsel %vm950, %v928, %v770
    %v953 = vsel %vm943, %v910, 0.0
    %955 = vrot.lane.b32.xlu0 %v953, 32
    %v956 = vpop.permute.xlu0 %955
    %s958 = scalar_lea.vmem %s5, 6
    %959 = vst.msk [vmem:[%s958] sm:$0x3] %vm412, %v956
    %v960 = vsel %vm950, %v934, 0.0
    %962 = vrot.lane.b32.xlu0 %v960, 32
    %v963 = vpop.permute.xlu0 %962
    %s965 = scalar_lea.vmem %s179, 8
    %966 = vst.msk [vmem:[%s965] sm:$0x3] %vm412, %v963
    %s967 = sadd.s32 %s205, 4
    %s968 = ssub.s32 3, %s205
    %v969 = vpack.c.bf16 %v944, %v944
    %971 = vrot.lane.b32.xlu0 %v969, 32
    %v972 = vpop.permute.xlu0 %971
    %v974 = vsel %vm220, %v972, 0
    %976 = vmatprep.subr.bf16.mxu0 0
    %977 = vmatpush1.bf16.msra.mxu0 %v216
    %978 = vmatprep.subr.bf16.mxu0 0
    %979 = vmatpush1.bf16.msra.mxu0 %v217
    %980 = vmatprep.subr.bf16.mxu0 0
    %981 = vmatpush1.bf16.msra.mxu0 0
    %982 = vmatprep.subr.bf16.mxu0 0
    %983 = vmatpush1.bf16.msra.mxu0 0
    %984 = vmatprep.subr.bf16.mxu0 0
    %985 = vmatpush1.bf16.msra.mxu0 0
    %986 = vmatprep.subr.bf16.mxu0 0
    %987 = vmatpush1.bf16.msra.mxu0 0
    %988 = vmatprep.subr.bf16.mxu0 0
    %989 = vmatpush1.bf16.msra.mxu0 0
    %990 = vmatprep.subr.bf16.mxu0 0
    %991 = vmatpush1.bf16.msra.mxu0 0
    %992 = vmatprep.subr.bf16.mxu0 0
    %993 = vmatpush1.bf16.msra.mxu0 0
    %994 = vmatprep.subr.bf16.mxu0 0
    %995 = vmatpush1.bf16.msra.mxu0 0
    %996 = vmatprep.subr.bf16.mxu0 0
    %997 = vmatpush1.bf16.msra.mxu0 0
    %998 = vmatprep.subr.bf16.mxu0 0
    %999 = vmatpush1.bf16.msra.mxu0 0
    %1000 = vmatprep.subr.bf16.mxu0 0
    %1001 = vmatpush1.bf16.msra.mxu0 0
    %1002 = vmatprep.subr.bf16.mxu0 0
    %1003 = vmatpush1.bf16.msra.mxu0 0
    %1004 = vmatprep.subr.bf16.mxu0 0
    %1005 = vmatpush1.bf16.msra.mxu0 0
    %1006 = vmatprep.subr.bf16.mxu0 0
    %1007 = vmatpush1.bf16.msra.mxu0 0
    %1008 = vmatprep.mubr.bf16.mxu0 0
    %1009 = vmatmul.mubr.bf16.gmra.mrb[0].mxu0 %v974
    %v1010 = vpop.f32.mrb[0].mxu0
    %v1011 = vadd.f32 0.0, %v1010
    %v1012 = vpop.f32.mrb[0].mxu0
    %v1013 = vpop.f32.mrb[0].mxu0
    %v1014 = vpop.f32.mrb[0].mxu0
    %1015 = vdwg.mxu0
    %v1016 = vpack.c.bf16 %v951, %v951
    %1018 = vrot.lane.b32.xlu0 %v1016, 32
    %v1019 = vpop.permute.xlu0 %1018
    %v1021 = vsel %vm220, %v1019, 0
    %1023 = vmatprep.subr.bf16.mxu0 0
    %1024 = vmatpush1.bf16.msra.mxu0 %v273
    %1025 = vmatprep.subr.bf16.mxu0 0
    %1026 = vmatpush1.bf16.msra.mxu0 %v274
    %1027 = vmatprep.subr.bf16.mxu0 0
    %1028 = vmatpush1.bf16.msra.mxu0 0
    %1029 = vmatprep.subr.bf16.mxu0 0
    %1030 = vmatpush1.bf16.msra.mxu0 0
    %1031 = vmatprep.subr.bf16.mxu0 0
    %1032 = vmatpush1.bf16.msra.mxu0 0
    %1033 = vmatprep.subr.bf16.mxu0 0
    %1034 = vmatpush1.bf16.msra.mxu0 0
    %1035 = vmatprep.subr.bf16.mxu0 0
    %1036 = vmatpush1.bf16.msra.mxu0 0
    %1037 = vmatprep.subr.bf16.mxu0 0
    %1038 = vmatpush1.bf16.msra.mxu0 0
    %1039 = vmatprep.subr.bf16.mxu0 0
    %1040 = vmatpush1.bf16.msra.mxu0 0
    %1041 = vmatprep.subr.bf16.mxu0 0
    %1042 = vmatpush1.bf16.msra.mxu0 0
    %1043 = vmatprep.subr.bf16.mxu0 0
    %1044 = vmatpush1.bf16.msra.mxu0 0
    %1045 = vmatprep.subr.bf16.mxu0 0
    %1046 = vmatpush1.bf16.msra.mxu0 0
    %1047 = vmatprep.subr.bf16.mxu0 0
    %1048 = vmatpush1.bf16.msra.mxu0 0
    %1049 = vmatprep.subr.bf16.mxu0 0
    %1050 = vmatpush1.bf16.msra.mxu0 0
    %1051 = vmatprep.subr.bf16.mxu0 0
    %1052 = vmatpush1.bf16.msra.mxu0 0
    %1053 = vmatprep.subr.bf16.mxu0 0
    %1054 = vmatpush1.bf16.msra.mxu0 0
    %1055 = vmatprep.mubr.bf16.mxu0 0
    %1056 = vmatmul.mubr.bf16.gmra.mrb[0].mxu0 %v1021
    %v1057 = vpop.f32.mrb[0].mxu0
    %v1058 = vadd.f32 0.0, %v1057
    %v1059 = vpop.f32.mrb[0].mxu0
    %v1060 = vpop.f32.mrb[0].mxu0
    %v1061 = vpop.f32.mrb[0].mxu0
    %1062 = vdwg.mxu0
    %s1063 = scalar_lea.vmem [#allocation6], 8
    %v1064 = vld [vmem:[%s1063] sm:$0x3]
    %v1065 = vadd.f32 %v1064, %v1011
    %s1066 = scalar_lea.vmem [#allocation7], 6
    %v1067 = vld [vmem:[%s1066] sm:$0x3]
    %v1068 = vadd.f32 %v1067, %v1058
    %v1069 = vxor.u32 %v1065, 2147483648
    %v1070 = vmul.f32 %v1069, 1.442695
    %v1071 = vpow.pop %v1070
    %v1072 = vadd.f32 %v1071, 1.0
    %v1073 = vrcp.pop %v1072
    %v1074 = vmul.f32 1.0, %v1073
    %v1075 = vtanh.pop %v1065
    %v1076 = vmul.f32 %v1074, %v945
    %1078 = vrot.lane.b32.xlu0 %v1075, 64
    %v1079 = vpop.permute.xlu0 %1078
    %v1081 = vmul.f32 %v1074, %v1079
    %1083 = vrot.lane.b32.xlu0 %v1081, 32
    %v1084 = vpop.permute.xlu0 %1083
    %v1086 = vadd.f32 %v1076, %v1084
    %v1087 = vtanh.pop %v1086
    %1089 = vrot.lane.b32.xlu0 %v1087, 64
    %v1090 = vpop.permute.xlu0 %1089
    %v1092 = vmul.f32 %v1074, %v1090
    %v1093 = vxor.u32 %v1068, 2147483648
    %v1094 = vmul.f32 %v1093, 1.442695
    %v1095 = vpow.pop %v1094
    %v1096 = vadd.f32 %v1095, 1.0
    %v1097 = vrcp.pop %v1096
    %v1098 = vmul.f32 1.0, %v1097
    %v1099 = vtanh.pop %v1068
    %v1100 = vmul.f32 %v1098, %v952
    %1102 = vrot.lane.b32.xlu0 %v1099, 64
    %v1103 = vpop.permute.xlu0 %1102
    %v1105 = vmul.f32 %v1098, %v1103
    %1107 = vrot.lane.b32.xlu0 %v1105, 32
    %v1108 = vpop.permute.xlu0 %1107
    %v1110 = vadd.f32 %v1100, %v1108
    %v1111 = vtanh.pop %v1110
    %1113 = vrot.lane.b32.xlu0 %v1111, 64
    %v1114 = vpop.permute.xlu0 %1113
    %v1116 = vmul.f32 %v1098, %v1114
    %v1117 = vstv %s967
    %vm1118 = vcmp.lt.s32.totalorder %v1117, %v192
    %v1119 = vstv %s968
    %vm1120 = vcmp.lt.s32.totalorder %v1119, %v192
    %v1121 = vsel %vm1118, 1, 0
    %1122 = vset.pattern.permute.xlu0 0
    %1123 = vperm.xlu0 %1122, %v1121
    %v1124 = vpop.permute.xlu0 %1123
    %vm1125 = vcmp.eq.s32.totalorder %v1124, 1
    %v1126 = vsel %vm1125, %v1092, %v944
    %v1127 = vsel %vm1125, %v1086, %v945
    %v1128 = vsel %vm1120, 1, 0
    %1129 = vset.pattern.permute.xlu0 0
    %1130 = vperm.xlu0 %1129, %v1128
    %v1131 = vpop.permute.xlu0 %1130
    %vm1132 = vcmp.eq.s32.totalorder %v1131, 1
    %v1133 = vsel %vm1132, %v1116, %v951
    %v1134 = vsel %vm1132, %v1110, %v952
    %v1135 = vsel %vm1125, %v1092, 0.0
    %1137 = vrot.lane.b32.xlu0 %v1135, 32
    %v1138 = vpop.permute.xlu0 %1137
    %s1140 = scalar_lea.vmem %s5, 8
    %1141 = vst.msk [vmem:[%s1140] sm:$0x3] %vm412, %v1138
    %v1142 = vsel %vm1132, %v1116, 0.0
    %1144 = vrot.lane.b32.xlu0 %v1142, 32
    %v1145 = vpop.permute.xlu0 %1144
    %s1147 = scalar_lea.vmem %s179, 6
    %1148 = vst.msk [vmem:[%s1147] sm:$0x3] %vm412, %v1145
    %s1149 = sadd.s32 %s205, 5
    %s1150 = ssub.s32 2, %s205
    %v1151 = vpack.c.bf16 %v1126, %v1126
    %1153 = vrot.lane.b32.xlu0 %v1151, 32
    %v1154 = vpop.permute.xlu0 %1153
    %v1156 = vsel %vm220, %v1154, 0
    %1158 = vmatprep.subr.bf16.mxu0 0
    %1159 = vmatpush1.bf16.msra.mxu0 %v216
    %1160 = vmatprep.subr.bf16.mxu0 0
    %1161 = vmatpush1.bf16.msra.mxu0 %v217
    %1162 = vmatprep.subr.bf16.mxu0 0
    %1163 = vmatpush1.bf16.msra.mxu0 0
    %1164 = vmatprep.subr.bf16.mxu0 0
    %1165 = vmatpush1.bf16.msra.mxu0 0
    %1166 = vmatprep.subr.bf16.mxu0 0
    %1167 = vmatpush1.bf16.msra.mxu0 0
    %1168 = vmatprep.subr.bf16.mxu0 0
    %1169 = vmatpush1.bf16.msra.mxu0 0
    %1170 = vmatprep.subr.bf16.mxu0 0
    %1171 = vmatpush1.bf16.msra.mxu0 0
    %1172 = vmatprep.subr.bf16.mxu0 0
    %1173 = vmatpush1.bf16.msra.mxu0 0
    %1174 = vmatprep.subr.bf16.mxu0 0
    %1175 = vmatpush1.bf16.msra.mxu0 0
    %1176 = vmatprep.subr.bf16.mxu0 0
    %1177 = vmatpush1.bf16.msra.mxu0 0
    %1178 = vmatprep.subr.bf16.mxu0 0
    %1179 = vmatpush1.bf16.msra.mxu0 0
    %1180 = vmatprep.subr.bf16.mxu0 0
    %1181 = vmatpush1.bf16.msra.mxu0 0
    %1182 = vmatprep.subr.bf16.mxu0 0
    %1183 = vmatpush1.bf16.msra.mxu0 0
    %1184 = vmatprep.subr.bf16.mxu0 0
    %1185 = vmatpush1.bf16.msra.mxu0 0
    %1186 = vmatprep.subr.bf16.mxu0 0
    %1187 = vmatpush1.bf16.msra.mxu0 0
    %1188 = vmatprep.subr.bf16.mxu0 0
    %1189 = vmatpush1.bf16.msra.mxu0 0
    %1190 = vmatprep.mubr.bf16.mxu0 0
    %1191 = vmatmul.mubr.bf16.gmra.mrb[0].mxu0 %v1156
    %v1192 = vpop.f32.mrb[0].mxu0
    %v1193 = vadd.f32 0.0, %v1192
    %v1194 = vpop.f32.mrb[0].mxu0
    %v1195 = vpop.f32.mrb[0].mxu0
    %v1196 = vpop.f32.mrb[0].mxu0
    %1197 = vdwg.mxu0
    %v1198 = vpack.c.bf16 %v1133, %v1133
    %1200 = vrot.lane.b32.xlu0 %v1198, 32
    %v1201 = vpop.permute.xlu0 %1200
    %v1203 = vsel %vm220, %v1201, 0
    %1205 = vmatprep.subr.bf16.mxu0 0
    %1206 = vmatpush1.bf16.msra.mxu0 %v273
    %1207 = vmatprep.subr.bf16.mxu0 0
    %1208 = vmatpush1.bf16.msra.mxu0 %v274
    %1209 = vmatprep.subr.bf16.mxu0 0
    %1210 = vmatpush1.bf16.msra.mxu0 0
    %1211 = vmatprep.subr.bf16.mxu0 0
    %1212 = vmatpush1.bf16.msra.mxu0 0
    %1213 = vmatprep.subr.bf16.mxu0 0
    %1214 = vmatpush1.bf16.msra.mxu0 0
    %1215 = vmatprep.subr.bf16.mxu0 0
    %1216 = vmatpush1.bf16.msra.mxu0 0
    %1217 = vmatprep.subr.bf16.mxu0 0
    %1218 = vmatpush1.bf16.msra.mxu0 0
    %1219 = vmatprep.subr.bf16.mxu0 0
    %1220 = vmatpush1.bf16.msra.mxu0 0
    %1221 = vmatprep.subr.bf16.mxu0 0
    %1222 = vmatpush1.bf16.msra.mxu0 0
    %1223 = vmatprep.subr.bf16.mxu0 0
    %1224 = vmatpush1.bf16.msra.mxu0 0
    %1225 = vmatprep.subr.bf16.mxu0 0
    %1226 = vmatpush1.bf16.msra.mxu0 0
    %1227 = vmatprep.subr.bf16.mxu0 0
    %1228 = vmatpush1.bf16.msra.mxu0 0
    %1229 = vmatprep.subr.bf16.mxu0 0
    %1230 = vmatpush1.bf16.msra.mxu0 0
    %1231 = vmatprep.subr.bf16.mxu0 0
    %1232 = vmatpush1.bf16.msra.mxu0 0
    %1233 = vmatprep.subr.bf16.mxu0 0
    %1234 = vmatpush1.bf16.msra.mxu0 0
    %1235 = vmatprep.subr.bf16.mxu0 0
    %1236 = vmatpush1.bf16.msra.mxu0 0
    %1237 = vmatprep.mubr.bf16.mxu0 0
    %1238 = vmatmul.mubr.bf16.gmra.mrb[0].mxu0 %v1203
    %v1239 = vpop.f32.mrb[0].mxu0
    %v1240 = vadd.f32 0.0, %v1239
    %v1241 = vpop.f32.mrb[0].mxu0
    %v1242 = vpop.f32.mrb[0].mxu0
    %v1243 = vpop.f32.mrb[0].mxu0
    %1244 = vdwg.mxu0
    %s1245 = scalar_lea.vmem [#allocation6], 10
    %v1246 = vld [vmem:[%s1245] sm:$0x3]
    %v1247 = vadd.f32 %v1246, %v1193
    %s1248 = scalar_lea.vmem [#allocation7], 4
    %v1249 = vld [vmem:[%s1248] sm:$0x3]
    %v1250 = vadd.f32 %v1249, %v1240
    %v1251 = vxor.u32 %v1247, 2147483648
    %v1252 = vmul.f32 %v1251, 1.442695
    %v1253 = vpow.pop %v1252
    %v1254 = vadd.f32 %v1253, 1.0
    %v1255 = vrcp.pop %v1254
    %v1256 = vmul.f32 1.0, %v1255
    %v1257 = vtanh.pop %v1247
    %v1258 = vmul.f32 %v1256, %v1127
    %1260 = vrot.lane.b32.xlu0 %v1257, 64
    %v1261 = vpop.permute.xlu0 %1260
    %v1263 = vmul.f32 %v1256, %v1261
    %1265 = vrot.lane.b32.xlu0 %v1263, 32
    %v1266 = vpop.permute.xlu0 %1265
    %v1268 = vadd.f32 %v1258, %v1266
    %v1269 = vtanh.pop %v1268
    %1271 = vrot.lane.b32.xlu0 %v1269, 64
    %v1272 = vpop.permute.xlu0 %1271
    %v1274 = vmul.f32 %v1256, %v1272
    %v1275 = vxor.u32 %v1250, 2147483648
    %v1276 = vmul.f32 %v1275, 1.442695
    %v1277 = vpow.pop %v1276
    %v1278 = vadd.f32 %v1277, 1.0
    %v1279 = vrcp.pop %v1278
    %v1280 = vmul.f32 1.0, %v1279
    %v1281 = vtanh.pop %v1250
    %v1282 = vmul.f32 %v1280, %v1134
    %1284 = vrot.lane.b32.xlu0 %v1281, 64
    %v1285 = vpop.permute.xlu0 %1284
    %v1287 = vmul.f32 %v1280, %v1285
    %1289 = vrot.lane.b32.xlu0 %v1287, 32
    %v1290 = vpop.permute.xlu0 %1289
    %v1292 = vadd.f32 %v1282, %v1290
    %v1293 = vtanh.pop %v1292
    %1295 = vrot.lane.b32.xlu0 %v1293, 64
    %v1296 = vpop.permute.xlu0 %1295
    %v1298 = vmul.f32 %v1280, %v1296
    %v1299 = vstv %s1149
    %vm1300 = vcmp.lt.s32.totalorder %v1299, %v192
    %v1301 = vstv %s1150
    %vm1302 = vcmp.lt.s32.totalorder %v1301, %v192
    %v1303 = vsel %vm1300, 1, 0
    %1304 = vset.pattern.permute.xlu0 0
    %1305 = vperm.xlu0 %1304, %v1303
    %v1306 = vpop.permute.xlu0 %1305
    %vm1307 = vcmp.eq.s32.totalorder %v1306, 1
    %v1308 = vsel %vm1307, %v1274, %v1126
    %v1309 = vsel %vm1307, %v1268, %v1127
    %v1310 = vsel %vm1302, 1, 0
    %1311 = vset.pattern.permute.xlu0 0
    %1312 = vperm.xlu0 %1311, %v1310
    %v1313 = vpop.permute.xlu0 %1312
    %vm1314 = vcmp.eq.s32.totalorder %v1313, 1
    %v1315 = vsel %vm1314, %v1298, %v1133
    %v1316 = vsel %vm1314, %v1292, %v1134
    %v1317 = vsel %vm1307, %v1274, 0.0
    %1319 = vrot.lane.b32.xlu0 %v1317, 32
    %v1320 = vpop.permute.xlu0 %1319
    %s1322 = scalar_lea.vmem %s5, 10
    %1323 = vst.msk [vmem:[%s1322] sm:$0x3] %vm412, %v1320
    %v1324 = vsel %vm1314, %v1298, 0.0
    %1326 = vrot.lane.b32.xlu0 %v1324, 32
    %v1327 = vpop.permute.xlu0 %1326
    %s1329 = scalar_lea.vmem %s179, 4
    %1330 = vst.msk [vmem:[%s1329] sm:$0x3] %vm412, %v1327
    %s1331 = sadd.s32 %s205, 6
    %s1332 = ssub.s32 1, %s205
    %v1333 = vpack.c.bf16 %v1308, %v1308
    %1335 = vrot.lane.b32.xlu0 %v1333, 32
    %v1336 = vpop.permute.xlu0 %1335
    %v1338 = vsel %vm220, %v1336, 0
    %1340 = vmatprep.subr.bf16.mxu0 0
    %1341 = vmatpush1.bf16.msra.mxu0 %v216
    %1342 = vmatprep.subr.bf16.mxu0 0
    %1343 = vmatpush1.bf16.msra.mxu0 %v217
    %1344 = vmatprep.subr.bf16.mxu0 0
    %1345 = vmatpush1.bf16.msra.mxu0 0
    %1346 = vmatprep.subr.bf16.mxu0 0
    %1347 = vmatpush1.bf16.msra.mxu0 0
    %1348 = vmatprep.subr.bf16.mxu0 0
    %1349 = vmatpush1.bf16.msra.mxu0 0
    %1350 = vmatprep.subr.bf16.mxu0 0
    %1351 = vmatpush1.bf16.msra.mxu0 0
    %1352 = vmatprep.subr.bf16.mxu0 0
    %1353 = vmatpush1.bf16.msra.mxu0 0
    %1354 = vmatprep.subr.bf16.mxu0 0
    %1355 = vmatpush1.bf16.msra.mxu0 0
    %1356 = vmatprep.subr.bf16.mxu0 0
    %1357 = vmatpush1.bf16.msra.mxu0 0
    %1358 = vmatprep.subr.bf16.mxu0 0
    %1359 = vmatpush1.bf16.msra.mxu0 0
    %1360 = vmatprep.subr.bf16.mxu0 0
    %1361 = vmatpush1.bf16.msra.mxu0 0
    %1362 = vmatprep.subr.bf16.mxu0 0
    %1363 = vmatpush1.bf16.msra.mxu0 0
    %1364 = vmatprep.subr.bf16.mxu0 0
    %1365 = vmatpush1.bf16.msra.mxu0 0
    %1366 = vmatprep.subr.bf16.mxu0 0
    %1367 = vmatpush1.bf16.msra.mxu0 0
    %1368 = vmatprep.subr.bf16.mxu0 0
    %1369 = vmatpush1.bf16.msra.mxu0 0
    %1370 = vmatprep.subr.bf16.mxu0 0
    %1371 = vmatpush1.bf16.msra.mxu0 0
    %1372 = vmatprep.mubr.bf16.mxu0 0
    %1373 = vmatmul.mubr.bf16.gmra.mrb[0].mxu0 %v1338
    %v1374 = vpop.f32.mrb[0].mxu0
    %v1375 = vadd.f32 0.0, %v1374
    %v1376 = vpop.f32.mrb[0].mxu0
    %v1377 = vpop.f32.mrb[0].mxu0
    %v1378 = vpop.f32.mrb[0].mxu0
    %1379 = vdwg.mxu0
    %v1380 = vpack.c.bf16 %v1315, %v1315
    %1382 = vrot.lane.b32.xlu0 %v1380, 32
    %v1383 = vpop.permute.xlu0 %1382
    %v1385 = vsel %vm220, %v1383, 0
    %1387 = vmatprep.subr.bf16.mxu0 0
    %1388 = vmatpush1.bf16.msra.mxu0 %v273
    %1389 = vmatprep.subr.bf16.mxu0 0
    %1390 = vmatpush1.bf16.msra.mxu0 %v274
    %1391 = vmatprep.subr.bf16.mxu0 0
    %1392 = vmatpush1.bf16.msra.mxu0 0
    %1393 = vmatprep.subr.bf16.mxu0 0
    %1394 = vmatpush1.bf16.msra.mxu0 0
    %1395 = vmatprep.subr.bf16.mxu0 0
    %1396 = vmatpush1.bf16.msra.mxu0 0
    %1397 = vmatprep.subr.bf16.mxu0 0
    %1398 = vmatpush1.bf16.msra.mxu0 0
    %1399 = vmatprep.subr.bf16.mxu0 0
    %1400 = vmatpush1.bf16.msra.mxu0 0
    %1401 = vmatprep.subr.bf16.mxu0 0
    %1402 = vmatpush1.bf16.msra.mxu0 0
    %1403 = vmatprep.subr.bf16.mxu0 0
    %1404 = vmatpush1.bf16.msra.mxu0 0
    %1405 = vmatprep.subr.bf16.mxu0 0
    %1406 = vmatpush1.bf16.msra.mxu0 0
    %1407 = vmatprep.subr.bf16.mxu0 0
    %1408 = vmatpush1.bf16.msra.mxu0 0
    %1409 = vmatprep.subr.bf16.mxu0 0
    %1410 = vmatpush1.bf16.msra.mxu0 0
    %1411 = vmatprep.subr.bf16.mxu0 0
    %1412 = vmatpush1.bf16.msra.mxu0 0
    %1413 = vmatprep.subr.bf16.mxu0 0
    %1414 = vmatpush1.bf16.msra.mxu0 0
    %1415 = vmatprep.subr.bf16.mxu0 0
    %1416 = vmatpush1.bf16.msra.mxu0 0
    %1417 = vmatprep.subr.bf16.mxu0 0
    %1418 = vmatpush1.bf16.msra.mxu0 0
    %1419 = vmatprep.mubr.bf16.mxu0 0
    %1420 = vmatmul.mubr.bf16.gmra.mrb[0].mxu0 %v1385
    %v1421 = vpop.f32.mrb[0].mxu0
    %v1422 = vadd.f32 0.0, %v1421
    %v1423 = vpop.f32.mrb[0].mxu0
    %v1424 = vpop.f32.mrb[0].mxu0
    %v1425 = vpop.f32.mrb[0].mxu0
    %1426 = vdwg.mxu0
    %s1427 = scalar_lea.vmem [#allocation6], 12
    %v1428 = vld [vmem:[%s1427] sm:$0x3]
    %v1429 = vadd.f32 %v1428, %v1375
    %s1430 = scalar_lea.vmem [#allocation7], 2
    %v1431 = vld [vmem:[%s1430] sm:$0x3]
    %v1432 = vadd.f32 %v1431, %v1422
    %v1433 = vxor.u32 %v1429, 2147483648
    %v1434 = vmul.f32 %v1433, 1.442695
    %v1435 = vpow.pop %v1434
    %v1436 = vadd.f32 %v1435, 1.0
    %v1437 = vrcp.pop %v1436
    %v1438 = vmul.f32 1.0, %v1437
    %v1439 = vtanh.pop %v1429
    %v1440 = vmul.f32 %v1438, %v1309
    %1442 = vrot.lane.b32.xlu0 %v1439, 64
    %v1443 = vpop.permute.xlu0 %1442
    %v1445 = vmul.f32 %v1438, %v1443
    %1447 = vrot.lane.b32.xlu0 %v1445, 32
    %v1448 = vpop.permute.xlu0 %1447
    %v1450 = vadd.f32 %v1440, %v1448
    %v1451 = vtanh.pop %v1450
    %1453 = vrot.lane.b32.xlu0 %v1451, 64
    %v1454 = vpop.permute.xlu0 %1453
    %v1456 = vmul.f32 %v1438, %v1454
    %v1457 = vxor.u32 %v1432, 2147483648
    %v1458 = vmul.f32 %v1457, 1.442695
    %v1459 = vpow.pop %v1458
    %v1460 = vadd.f32 %v1459, 1.0
    %v1461 = vrcp.pop %v1460
    %v1462 = vmul.f32 1.0, %v1461
    %v1463 = vtanh.pop %v1432
    %v1464 = vmul.f32 %v1462, %v1316
    %1466 = vrot.lane.b32.xlu0 %v1463, 64
    %v1467 = vpop.permute.xlu0 %1466
    %v1469 = vmul.f32 %v1462, %v1467
    %1471 = vrot.lane.b32.xlu0 %v1469, 32
    %v1472 = vpop.permute.xlu0 %1471
    %v1474 = vadd.f32 %v1464, %v1472
    %v1475 = vtanh.pop %v1474
    %1477 = vrot.lane.b32.xlu0 %v1475, 64
    %v1478 = vpop.permute.xlu0 %1477
    %v1480 = vmul.f32 %v1462, %v1478
    %v1481 = vstv %s1331
    %vm1482 = vcmp.lt.s32.totalorder %v1481, %v192
    %v1483 = vstv %s1332
    %vm1484 = vcmp.lt.s32.totalorder %v1483, %v192
    %v1485 = vsel %vm1482, 1, 0
    %1486 = vset.pattern.permute.xlu0 0
    %1487 = vperm.xlu0 %1486, %v1485
    %v1488 = vpop.permute.xlu0 %1487
    %vm1489 = vcmp.eq.s32.totalorder %v1488, 1
    %v1490 = vsel %vm1489, %v1456, %v1308
    %v1491 = vsel %vm1489, %v1450, %v1309
    %v1492 = vsel %vm1484, 1, 0
    %1493 = vset.pattern.permute.xlu0 0
    %1494 = vperm.xlu0 %1493, %v1492
    %v1495 = vpop.permute.xlu0 %1494
    %vm1496 = vcmp.eq.s32.totalorder %v1495, 1
    %v1497 = vsel %vm1496, %v1480, %v1315
    %v1498 = vsel %vm1496, %v1474, %v1316
    %v1499 = vsel %vm1489, %v1456, 0.0
    %1501 = vrot.lane.b32.xlu0 %v1499, 32
    %v1502 = vpop.permute.xlu0 %1501
    %s1504 = scalar_lea.vmem %s5, 12
    %1505 = vst.msk [vmem:[%s1504] sm:$0x3] %vm412, %v1502
    %v1506 = vsel %vm1496, %v1480, 0.0
    %1508 = vrot.lane.b32.xlu0 %v1506, 32
    %v1509 = vpop.permute.xlu0 %1508
    %s1511 = scalar_lea.vmem %s179, 2
    %1512 = vst.msk [vmem:[%s1511] sm:$0x3] %vm412, %v1509
    %s1513 = sadd.s32 %s205, 7
    %s1514 = ssub.s32 0, %s205
    %v1515 = vpack.c.bf16 %v1490, %v1490
    %1517 = vrot.lane.b32.xlu0 %v1515, 32
    %v1518 = vpop.permute.xlu0 %1517
    %v1520 = vsel %vm220, %v1518, 0
    %1522 = vmatprep.subr.bf16.mxu0 0
    %1523 = vmatpush1.bf16.msra.mxu0 %v216
    %1524 = vmatprep.subr.bf16.mxu0 0
    %1525 = vmatpush1.bf16.msra.mxu0 %v217
    %1526 = vmatprep.subr.bf16.mxu0 0
    %1527 = vmatpush1.bf16.msra.mxu0 0
    %1528 = vmatprep.subr.bf16.mxu0 0
    %1529 = vmatpush1.bf16.msra.mxu0 0
    %1530 = vmatprep.subr.bf16.mxu0 0
    %1531 = vmatpush1.bf16.msra.mxu0 0
    %1532 = vmatprep.subr.bf16.mxu0 0
    %1533 = vmatpush1.bf16.msra.mxu0 0
    %1534 = vmatprep.subr.bf16.mxu0 0
    %1535 = vmatpush1.bf16.msra.mxu0 0
    %1536 = vmatprep.subr.bf16.mxu0 0
    %1537 = vmatpush1.bf16.msra.mxu0 0
    %1538 = vmatprep.subr.bf16.mxu0 0
    %1539 = vmatpush1.bf16.msra.mxu0 0
    %1540 = vmatprep.subr.bf16.mxu0 0
    %1541 = vmatpush1.bf16.msra.mxu0 0
    %1542 = vmatprep.subr.bf16.mxu0 0
    %1543 = vmatpush1.bf16.msra.mxu0 0
    %1544 = vmatprep.subr.bf16.mxu0 0
    %1545 = vmatpush1.bf16.msra.mxu0 0
    %1546 = vmatprep.subr.bf16.mxu0 0
    %1547 = vmatpush1.bf16.msra.mxu0 0
    %1548 = vmatprep.subr.bf16.mxu0 0
    %1549 = vmatpush1.bf16.msra.mxu0 0
    %1550 = vmatprep.subr.bf16.mxu0 0
    %1551 = vmatpush1.bf16.msra.mxu0 0
    %1552 = vmatprep.subr.bf16.mxu0 0
    %1553 = vmatpush1.bf16.msra.mxu0 0
    %1554 = vmatprep.mubr.bf16.mxu0 0
    %1555 = vmatmul.mubr.bf16.gmra.mrb[0].mxu0 %v1520
    %v1556 = vpop.f32.mrb[0].mxu0
    %v1557 = vadd.f32 0.0, %v1556
    %v1558 = vpop.f32.mrb[0].mxu0
    %v1559 = vpop.f32.mrb[0].mxu0
    %v1560 = vpop.f32.mrb[0].mxu0
    %1561 = vdwg.mxu0
    %v1562 = vpack.c.bf16 %v1497, %v1497
    %1564 = vrot.lane.b32.xlu0 %v1562, 32
    %v1565 = vpop.permute.xlu0 %1564
    %v1567 = vsel %vm220, %v1565, 0
    %1569 = vmatprep.subr.bf16.mxu0 0
    %1570 = vmatpush1.bf16.msra.mxu0 %v273
    %1571 = vmatprep.subr.bf16.mxu0 0
    %1572 = vmatpush1.bf16.msra.mxu0 %v274
    %1573 = vmatprep.subr.bf16.mxu0 0
    %1574 = vmatpush1.bf16.msra.mxu0 0
    %1575 = vmatprep.subr.bf16.mxu0 0
    %1576 = vmatpush1.bf16.msra.mxu0 0
    %1577 = vmatprep.subr.bf16.mxu0 0
    %1578 = vmatpush1.bf16.msra.mxu0 0
    %1579 = vmatprep.subr.bf16.mxu0 0
    %1580 = vmatpush1.bf16.msra.mxu0 0
    %1581 = vmatprep.subr.bf16.mxu0 0
    %1582 = vmatpush1.bf16.msra.mxu0 0
    %1583 = vmatprep.subr.bf16.mxu0 0
    %1584 = vmatpush1.bf16.msra.mxu0 0
    %1585 = vmatprep.subr.bf16.mxu0 0
    %1586 = vmatpush1.bf16.msra.mxu0 0
    %1587 = vmatprep.subr.bf16.mxu0 0
    %1588 = vmatpush1.bf16.msra.mxu0 0
    %1589 = vmatprep.subr.bf16.mxu0 0
    %1590 = vmatpush1.bf16.msra.mxu0 0
    %1591 = vmatprep.subr.bf16.mxu0 0
    %1592 = vmatpush1.bf16.msra.mxu0 0
    %1593 = vmatprep.subr.bf16.mxu0 0
    %1594 = vmatpush1.bf16.msra.mxu0 0
    %1595 = vmatprep.subr.bf16.mxu0 0
    %1596 = vmatpush1.bf16.msra.mxu0 0
    %1597 = vmatprep.subr.bf16.mxu0 0
    %1598 = vmatpush1.bf16.msra.mxu0 0
    %1599 = vmatprep.subr.bf16.mxu0 0
    %1600 = vmatpush1.bf16.msra.mxu0 0
    %1601 = vmatprep.mubr.bf16.mxu0 0
    %1602 = vmatmul.mubr.bf16.gmra.mrb[0].mxu0 %v1567
    %v1603 = vpop.f32.mrb[0].mxu0
    %v1604 = vadd.f32 0.0, %v1603
    %v1605 = vpop.f32.mrb[0].mxu0
    %v1606 = vpop.f32.mrb[0].mxu0
    %v1607 = vpop.f32.mrb[0].mxu0
    %1608 = vdwg.mxu0
    %s1609 = scalar_lea.vmem [#allocation6], 14
    %v1610 = vld [vmem:[%s1609] sm:$0x3]
    %v1611 = vadd.f32 %v1610, %v1557
    %v1612 = vld [vmem:[#allocation7] sm:$0x3]
    %v1613 = vadd.f32 %v1612, %v1604
    %v1614 = vxor.u32 %v1611, 2147483648
    %v1615 = vmul.f32 %v1614, 1.442695
    %v1616 = vpow.pop %v1615
    %v1617 = vadd.f32 %v1616, 1.0
    %v1618 = vrcp.pop %v1617
    %v1619 = vmul.f32 1.0, %v1618
    %v1620 = vtanh.pop %v1611
    %v1621 = vmul.f32 %v1619, %v1491
    %1623 = vrot.lane.b32.xlu0 %v1620, 64
    %v1624 = vpop.permute.xlu0 %1623
    %v1626 = vmul.f32 %v1619, %v1624
    %1628 = vrot.lane.b32.xlu0 %v1626, 32
    %v1629 = vpop.permute.xlu0 %1628
    %v1631 = vadd.f32 %v1621, %v1629
    %v1632 = vtanh.pop %v1631
    %1634 = vrot.lane.b32.xlu0 %v1632, 64
    %v1635 = vpop.permute.xlu0 %1634
    %v1637 = vmul.f32 %v1619, %v1635
    %v1638 = vxor.u32 %v1613, 2147483648
    %v1639 = vmul.f32 %v1638, 1.442695
    %v1640 = vpow.pop %v1639
    %v1641 = vadd.f32 %v1640, 1.0
    %v1642 = vrcp.pop %v1641
    %v1643 = vmul.f32 1.0, %v1642
    %v1644 = vtanh.pop %v1613
    %v1645 = vmul.f32 %v1643, %v1498
    %1647 = vrot.lane.b32.xlu0 %v1644, 64
    %v1648 = vpop.permute.xlu0 %1647
    %v1650 = vmul.f32 %v1643, %v1648
    %1652 = vrot.lane.b32.xlu0 %v1650, 32
    %v1653 = vpop.permute.xlu0 %1652
    %v1655 = vadd.f32 %v1645, %v1653
    %v1656 = vtanh.pop %v1655
    %1658 = vrot.lane.b32.xlu0 %v1656, 64
    %v1659 = vpop.permute.xlu0 %1658
    %v1661 = vmul.f32 %v1643, %v1659
    %v1662 = vstv %s1513
    %vm1663 = vcmp.lt.s32.totalorder %v1662, %v192
    %v1664 = vstv %s1514
    %vm1665 = vcmp.lt.s32.totalorder %v1664, %v192
    %v1666 = vsel %vm1663, 1, 0
    %1667 = vset.pattern.permute.xlu0 0
    %1668 = vperm.xlu0 %1667, %v1666
    %v1669 = vpop.permute.xlu0 %1668
    %vm1670 = vcmp.eq.s32.totalorder %v1669, 1
    %v1671 = vsel %vm1670, %v1637, %v1490
    %v1672 = vsel %vm1670, %v1631, %v1491
    %v1673 = vsel %vm1665, 1, 0
    %1674 = vset.pattern.permute.xlu0 0
    %1675 = vperm.xlu0 %1674, %v1673
    %v1676 = vpop.permute.xlu0 %1675
    %vm1677 = vcmp.eq.s32.totalorder %v1676, 1
    %v1678 = vsel %vm1677, %v1661, %v1497
    %v1679 = vsel %vm1677, %v1655, %v1498
    %v1680 = vsel %vm1670, %v1637, 0.0
    %1682 = vrot.lane.b32.xlu0 %v1680, 32
    %v1683 = vpop.permute.xlu0 %1682
    %s1685 = scalar_lea.vmem %s5, 14
    %1686 = vst.msk [vmem:[%s1685] sm:$0x3] %vm412, %v1683
    %v1687 = vsel %vm1677, %v1661, 0.0
    %1689 = vrot.lane.b32.xlu0 %v1687, 32
    %v1690 = vpop.permute.xlu0 %1689
    %1692 = vst.msk [vmem:[%s179] sm:$0x3] %vm412, %v1690
    %1694 = vrot.lane.b32.xlu0 %v1671, 32
    %v1695 = vpop.permute.xlu0 %1694
    %1697 = vst.msk [vmem:[#allocation2] sm:$0x3] %vm412, %v1695
    %1699 = vrot.lane.b32.xlu0 %v1672, 96
    %v1700 = vpop.permute.xlu0 %1699
    %1702 = vst.msk [vmem:[#allocation3] sm:$0x3] %vm412, %v1700
    %1704 = vrot.lane.b32.xlu0 %v1678, 32
    %v1705 = vpop.permute.xlu0 %1704
    %1707 = vst.msk [vmem:[#allocation4] sm:$0x3] %vm412, %v1705
    %1709 = vrot.lane.b32.xlu0 %v1679, 96
    %v1710 = vpop.permute.xlu0 %1709
    %1712 = vst.msk [vmem:[#allocation5] sm:$0x3] %vm412, %v1710
    %s1713 = ssub.s32 0, 0
    %s1714 = smul.u32 8, %s1713
    %p1715 = scmp.lt.s32.totalorder %s1714, 7
    %s1716 = scalar_select %p1715, %s1714, 7
    %s1717 = smul.addr %s1716, 2
    %s1718 = scalar_lea.vmem %s6, %s1717
    // Predicated region
    $region108: #{_rnn_core.2} parent=1 // pred_check
      _
    $region109: #{_rnn_core.2} parent=1 // pred_check_branch
      %1720 = sbr.rel (0) target = $region111
    $region110: #{_rnn_core.2} parent=1 // pred_region
      _
    $region111: #{_rnn_core.2} parent=1 // pred_fallthru
      _
    // Predicated region
    $region112: #{_rnn_core.2} parent=1 // pred_check
      _
    $region113: #{_rnn_core.2} parent=1 // pred_check_branch
      %1722 = sbr.rel (0) target = $region115
    $region114: #{_rnn_core.2} parent=1 // pred_region
      %s1723 = ssub.s32 0, 0
      %s1724 = smul.u32 8, %s1723
    $region115: #{_rnn_core.2} parent=1 // pred_fallthru
      _
    // Predicated region
    $region116: #{_rnn_core.2} parent=1 // pred_check
      _
    $region117: #{_rnn_core.2} parent=1 // pred_check_branch
      %1726 = sbr.rel (0) target = $region119
    $region118: #{_rnn_core.2} parent=1 // pred_region
      _
    $region119: #{_rnn_core.2} parent=1 // pred_fallthru
      _
    // Predicated region
    $region120: #{_rnn_core.2} parent=1 // pred_check
      _
    $region121: #{_rnn_core.2} parent=1 // pred_check_branch
      %1728 = sbr.rel (0) target = $region123
    $region122: #{_rnn_core.2} parent=1 // pred_region
      %s1729 = ssub.s32 0, 0
      %s1730 = smul.u32 8, %s1729
      %p1731 = scmp.lt.s32.totalorder %s1730, 7
      %s1732 = scalar_select %p1731, %s1730, 7
      %s1733 = smul.addr %s1732, 2
      %s1734 = scalar_lea.vmem %s6, %s1733
    $region123: #{_rnn_core.2} parent=1 // pred_fallthru
      _

</llo_original>
